<compile_context>
chip_gen: v7x
topology: tpu7x:2x2x1
jax: 0.10.0
libtpu: 0.0.40
codegen_flags: <defaults>
</compile_context>

<pallas_src>
import functools
import numpy as np
import jax
import jax.numpy as jnp
from jax.experimental import pallas as pl
from jax.experimental.pallas import tpu as pltpu

# ---------------- config consistent with the module --------------------------
PER_GRAPH   = 8          # per_graph_size (tokens per node graph)
TIME_DIMS   = 16         # time_channels
FEAT_DIMS   = 16         # input_channels (raw edge feature dims)
HIDDEN      = 32         # hidden_channels
OUT_CH      = 32         # out_channels == dim_in_time of the edge predictor
NODE_DIMS   = 0          # dim_in_node (no static node feats)
NUM_LAYERS  = 2
TOKEN_EXP   = 0.5
CHAN_EXP    = 4
PRED_HIDDEN = 100        # EdgePredictor hidden dim (padded to 128 in-kernel)
PRED_PAD    = 128
NEG_SAMPLES = 1
NUM_EDGE    = 4          # link-prediction edges -> (NEG+2)*NUM_EDGE node graphs
N_TEMPORAL  = 48         # temporal edges fed to FeatEncode
EPS         = 1e-5

G2      = int(TOKEN_EXP * PER_GRAPH)     # 4
H4      = int(CHAN_EXP * HIDDEN)         # 128
PRED_IN = OUT_CH + NODE_DIMS             # 32
B_NODES = (NEG_SAMPLES + 2) * NUM_EDGE   # 12
N_TOK   = B_NODES * PER_GRAPH            # 96
LANES   = 128


# ------------------- packed-weight slab layout (host + kernel) ---------------
def _build_layout():
    off, rows = {}, 0

    def add(name, nrows):
        nonlocal rows
        off[name] = rows
        rows += -(-nrows // 8) * 8          # 8-row aligned start for every param

    add("time", 2)                          # row 0: w_time[1,16], row 1: b_time[1,16]
    add("wenc_t", TIME_DIMS + FEAT_DIMS)    # [32, 32]
    add("benc", 1)                          # [1, 32]
    for l in range(NUM_LAYERS):
        add(f"ln_t_{l}", 2)                 # rows: weight, bias [1,32]
        add(f"wt0_{l}", B_NODES * G2)       # [48, 96]  kron(I_B, W0)
        add(f"bt0_{l}", B_NODES * G2)       # [48, 32]  bias pre-broadcast over H
        add(f"wt1_{l}", N_TOK)              # [96, 48]  kron(I_B, W1)
        add(f"bt1_{l}", N_TOK)              # [96, 32]
        add(f"ln_c_{l}", 2)                 # rows: weight, bias [1,32]
        add(f"wc0t_{l}", HIDDEN)            # [32, 128]
        add(f"bc0_{l}", 1)                  # [1, 128]
        add(f"wc1t_{l}", H4)                # [128, 32]
        add(f"bc1_{l}", 1)                  # [1, 32]
    add("pool", B_NODES)                    # [12, 96] mean-pool matrix
    add("w_head_t", HIDDEN)                 # [32, 32] (final-LN affine folded in)
    add("b_head", 1)                        # [1, 32]
    add("wsrc_t", PRED_IN)                  # [32, 128] (100 -> 128 zero-pad)
    add("bsrc", 1)                          # [1, 128]
    add("wdst_t", PRED_IN)                  # [32, 128]
    add("bdst", 1)                          # [1, 128]
    add("pred_out", 2)                      # row 0: wout row [1,128]; row 1 col 0: bout
    return off, rows


_OFF, _SLAB_ROWS = _build_layout()          # 1152 rows x 128 lanes = 576 KiB f32


# ------------------------------ in-kernel math -------------------------------
_SQRT1_2 = 0.7071067811865476


def _gelu(x):
    # PyTorch-default (erf) GELU via Abramowitz & Stegun 7.1.26.  Sign is
    # folded algebraically:  gelu(x) = 0.5*(x + |x|) - 0.5*|x| * poly(t) * e,
    # with t = 1/(1 + p*|x|/sqrt(2)), e = exp(-x^2/2).  The reciprocal goes to
    # the EUP slot (approx=True); fewer live [96,128] temporaries than the
    # naive sign/select formulation.
    a1, a2, a3, a4, a5 = 0.254829592, -0.284496736, 1.421413741, -1.453152027, 1.061405429
    p = 0.3275911
    ax = jnp.abs(x)
    az = ax * _SQRT1_2
    e = jnp.exp(-(az * az))
    t = pl.reciprocal(1.0 + p * az, approx=True)
    poly = ((((a5 * t + a4) * t + a3) * t + a2) * t + a1) * t
    return 0.5 * (x + ax) - 0.5 * ax * (poly * e)


def _norm(v):
    mu = jnp.mean(v, axis=-1, keepdims=True)
    var = jnp.mean(jnp.square(v - mu), axis=-1, keepdims=True)
    return (v - mu) * jax.lax.rsqrt(var + EPS)


def _layernorm(v, w, b):
    return _norm(v) * w + b


# ------------------------------ fused Pallas kernel ---------------------------
def fused_forward_kernel(inds_ref, x_ref, w_ref, out_ref, *, num_edge, neg_samples):
    def blk(name, nrows, ncols, row=0):
        r = _OFF[name] + row
        return w_ref[r:r + nrows, 0:ncols]          # static slice -> zero-cost view

    # --- FeatEncode: Linear(cat([edge_feats, cos(ts*w + b)])) -----------------
    ef = x_ref[:, 0:FEAT_DIMS]                                              # [E, F]
    ts = x_ref[:, FEAT_DIMS:FEAT_DIMS + 1]                                  # [E, 1]
    w_time = blk("time", 1, TIME_DIMS, row=0)
    b_time = blk("time", 1, TIME_DIMS, row=1)
    time_feats = jnp.cos(ts * w_time + b_time)                              # [E, T]
    enc = jnp.dot(ef, blk("wenc_t", FEAT_DIMS, HIDDEN, row=0),
                  preferred_element_type=jnp.float32)
    enc = enc + jnp.dot(time_feats, blk("wenc_t", TIME_DIMS, HIDDEN, row=FEAT_DIMS),
                        preferred_element_type=jnp.float32)
    enc = enc + blk("benc", 1, HIDDEN)                                      # [E, H]

    # --- scatter enc rows into token slots (x[inds] = enc, x starts zero) -----
    # One-hot matmul keeps enc in VMEM; assumes unique inds (as the reference
    # model produces); duplicates would accumulate instead of last-write-wins.
    n_edges = enc.shape[0]
    slot_id = jax.lax.broadcasted_iota(jnp.int32, (N_TOK, n_edges), 0)      # [BG, E]
    scatter = (slot_id == inds_ref[...]).astype(jnp.float32)                # [BG, E]
    x = jnp.dot(scatter, enc, preferred_element_type=jnp.float32)           # [BG, H]

    # --- MLPMixer: all node graphs batched into one [B*G, H] slab -------------
    for l in range(NUM_LAYERS):
        # token mixer: LN over channels, token MLP via block-diagonal weights
        y = _layernorm(x, blk(f"ln_t_{l}", 1, HIDDEN, 0), blk(f"ln_t_{l}", 1, HIDDEN, 1))
        u = _gelu(jnp.dot(blk(f"wt0_{l}", B_NODES * G2, N_TOK), y,
                          preferred_element_type=jnp.float32)
                  + blk(f"bt0_{l}", B_NODES * G2, HIDDEN))                  # [B*G2, H]
        x = x + jnp.dot(blk(f"wt1_{l}", N_TOK, B_NODES * G2), u,
                        preferred_element_type=jnp.float32) \
              + blk(f"bt1_{l}", N_TOK, HIDDEN)
        # channel mixer
        y = _layernorm(x, blk(f"ln_c_{l}", 1, HIDDEN, 0), blk(f"ln_c_{l}", 1, HIDDEN, 1))
        u = _gelu(jnp.dot(y, blk(f"wc0t_{l}", HIDDEN, H4),
                          preferred_element_type=jnp.float32)
                  + blk(f"bc0_{l}", 1, H4))                                 # [BG, 4H]
        x = x + jnp.dot(u, blk(f"wc1t_{l}", H4, HIDDEN),
                        preferred_element_type=jnp.float32) \
              + blk(f"bc1_{l}", 1, HIDDEN)

    # --- final LayerNorm (affine folded into head), mean-pool, mlp_head -------
    xn = _norm(x)                                                           # [BG, H]
    pooled = jnp.dot(blk("pool", B_NODES, N_TOK), xn,
                     preferred_element_type=jnp.float32)                    # [B, H]
    h = jnp.dot(pooled, blk("w_head_t", HIDDEN, OUT_CH),
                preferred_element_type=jnp.float32) + blk("b_head", 1, OUT_CH)

    # --- EdgePredictor_per_node (pos/neg merged; hidden padded 100 -> 128) ----
    h_src = jnp.dot(h[0:num_edge], blk("wsrc_t", PRED_IN, PRED_PAD),
                    preferred_element_type=jnp.float32) + blk("bsrc", 1, PRED_PAD)
    h_dst = jnp.dot(h[num_edge:], blk("wdst_t", PRED_IN, PRED_PAD),
                    preferred_element_type=jnp.float32) + blk("bdst", 1, PRED_PAD)
    src_all = jnp.concatenate([h_src] * (1 + neg_samples), axis=0)          # [(1+neg)NE,128]
    edge = jnp.maximum(src_all + h_dst, 0.0)
    # N=1 output matmul replaced by VPU multiply + XLU lane reduction.
    wout = blk("pred_out", 1, PRED_PAD, 0)                                  # [1, 128]
    bout = blk("pred_out", 1, 1, 1)                                         # [1, 1]
    out_ref[...] = jnp.sum(edge * wout, axis=-1, keepdims=True) + bout      # [(1+neg)NE,1]


# ------------------------------ wrapper (glue) --------------------------------
_VMEM_SPEC = pl.BlockSpec(memory_space=pltpu.MemorySpace.VMEM)


def bce_with_logits(logits, targets):
    # elementwise BCEWithLogitsLoss(reduction='none')
    return jnp.maximum(logits, 0.0) - logits * targets + jnp.log1p(jnp.exp(-jnp.abs(logits)))


def mixer_per_node_forward(param_slab, model_inputs, has_temporal_neighbors, neg_samples):
    edge_feats, edge_ts, batch_size, inds = model_inputs
    assert batch_size == B_NODES, "weight slab was packed for B_NODES node graphs"
    n_edges = edge_feats.shape[0]
    num_edge = batch_size // (neg_samples + 2)
    n_out = (1 + neg_samples) * num_edge

    # pack the two tiny dynamic inputs into one lane-dense slab (ts in col 16)
    x_in = jnp.concatenate([edge_feats, edge_ts.reshape(n_edges, 1)], axis=1)
    inds2 = inds.astype(jnp.int32).reshape(1, n_edges)

    pred = pl.pallas_call(
        functools.partial(fused_forward_kernel,
                          num_edge=num_edge, neg_samples=neg_samples),
        in_specs=[_VMEM_SPEC, _VMEM_SPEC, _VMEM_SPEC],
        out_specs=_VMEM_SPEC,
        out_shape=jax.ShapeDtypeStruct((n_out, 1), jnp.float32),
        cost_estimate=pl.CostEstimate(
            flops=5_300_000, transcendentals=60_000,
            bytes_accessed=int(param_slab.size + x_in.size + inds2.size + n_out) * 4),
    )(inds2, x_in, param_slab)

    pred_pos = pred[:num_edge]
    pred_neg = pred[num_edge:]

    # pos/neg masks + masked BCE losses (tiny; plain JAX).  Denominator is
    # guarded against empty masks (PyTorch would give NaN there).
    src_m = has_temporal_neighbors[:num_edge]
    pos_m = (src_m & has_temporal_neighbors[num_edge:2 * num_edge]).astype(jnp.float32)
    neg_m = (jnp.tile(src_m, neg_samples)
             & has_temporal_neighbors[2 * num_edge:]).astype(jnp.float32)
    lp = bce_with_logits(pred_pos, jnp.ones_like(pred_pos))[:, 0]
    ln_ = bce_with_logits(pred_neg, jnp.zeros_like(pred_neg))[:, 0]
    loss_pos = jnp.sum(lp * pos_m) / jnp.maximum(jnp.sum(pos_m), 1.0)
    loss_neg = jnp.sum(ln_ * neg_m) / jnp.maximum(jnp.sum(neg_m), 1.0)
    # TODO(synk): compute_ap_score uses sklearn average_precision_score /
    # roc_auc_score (host-side metric) -- no Pallas equivalent; not computed.
    return loss_pos + loss_neg, pred_pos, pred_neg


# ------------------------------ parameter packing -----------------------------
def _linear(key, fan_in, fan_out):
    k1, k2 = jax.random.split(key)
    bound = 1.0 / np.sqrt(fan_in)
    w = jax.random.uniform(k1, (fan_out, fan_in), jnp.float32, -bound, bound)
    b = jax.random.uniform(k2, (fan_out,), jnp.float32, -bound, bound)
    return np.asarray(w), np.asarray(b)


def build_param_slab(key):
    """Pack every weight/bias into one [_SLAB_ROWS, 128] f32 slab (host side)."""
    keys = iter(jax.random.split(key, 64))
    slab = np.zeros((_SLAB_ROWS, LANES), np.float32)

    def put(name, arr, row=0):
        arr = np.asarray(arr, np.float32)
        r = _OFF[name] + row
        slab[r:r + arr.shape[0], 0:arr.shape[1]] = arr

    # TimeEncode (fixed weights, bias=0 as in the module)
    put("time", (1.0 / 10 ** np.linspace(0, 9, TIME_DIMS, dtype=np.float32)).reshape(1, TIME_DIMS), row=0)
    # FeatEncode linear (F+T -> H); PyTorch cat order is [edge_feats | time_feats]
    w, b = _linear(next(keys), TIME_DIMS + FEAT_DIMS, HIDDEN)
    put("wenc_t", w.T)
    put("benc", b.reshape(1, HIDDEN))

    # Mixer blocks: token weights stored block-diagonal over the fixed node
    # batch (kron(I_B, W)), biases pre-broadcast over HIDDEN.
    eye_b = np.eye(B_NODES, dtype=np.float32)
    for l in range(NUM_LAYERS):
        put(f"ln_t_{l}", np.ones((1, HIDDEN), np.float32), row=0)   # LN weight=1, bias=0
        w0, b0 = _linear(next(keys), PER_GRAPH, G2)                 # [G2, G]
        w1, b1 = _linear(next(keys), G2, PER_GRAPH)                 # [G, G2]
        put(f"wt0_{l}", np.kron(eye_b, w0))                                     # [48, 96]
        put(f"bt0_{l}", np.tile(b0.reshape(G2, 1), (B_NODES, HIDDEN)))          # [48, 32]
        put(f"wt1_{l}", np.kron(eye_b, w1))                                     # [96, 48]
        put(f"bt1_{l}", np.tile(b1.reshape(PER_GRAPH, 1), (B_NODES, HIDDEN)))   # [96, 32]
        put(f"ln_c_{l}", np.ones((1, HIDDEN), np.float32), row=0)
        wc0, bc0 = _linear(next(keys), HIDDEN, H4)
        wc1, bc1 = _linear(next(keys), H4, HIDDEN)
        put(f"wc0t_{l}", wc0.T)
        put(f"bc0_{l}", bc0.reshape(1, H4))
        put(f"wc1t_{l}", wc1.T)
        put(f"bc1_{l}", bc1.reshape(1, HIDDEN))

    # mean-pool over tokens as a fixed matmul operand
    put("pool", np.kron(eye_b, np.full((1, PER_GRAPH), 1.0 / PER_GRAPH, np.float32)))

    # final LayerNorm affine (weight=1, bias=0 after reset) folded into mlp_head:
    #   head(mean(norm(x)*w + b)) == mean(norm(x)) @ (w[:,None]*W^T) + (b@W^T + b_head)
    ln_f_w = np.ones((HIDDEN,), np.float32)
    ln_f_b = np.zeros((HIDDEN,), np.float32)
    w, b = _linear(next(keys), HIDDEN, OUT_CH)
    w_head_t = w.T                                                   # [H, OUT]
    put("w_head_t", ln_f_w[:, None] * w_head_t)
    put("b_head", (ln_f_b @ w_head_t + b).reshape(1, OUT_CH))

    # EdgePredictor_per_node (hidden dim zero-padded 100 -> 128, math unchanged)
    w, b = _linear(next(keys), PRED_IN, PRED_HIDDEN)
    put("wsrc_t", w.T)
    put("bsrc", b.reshape(1, PRED_HIDDEN))
    w, b = _linear(next(keys), PRED_IN, PRED_HIDDEN)
    put("wdst_t", w.T)
    put("bdst", b.reshape(1, PRED_HIDDEN))
    w, b = _linear(next(keys), PRED_HIDDEN, 1)
    put("pred_out", w.reshape(1, PRED_HIDDEN), row=0)                # out weight as a row
    put("pred_out", b.reshape(1, 1), row=1)                          # out bias scalar
    return jnp.asarray(slab)


# ------------------------------------ main ------------------------------------
if __name__ == "__main__":
    root = jax.random.PRNGKey(0)
    kp, kf, kt = jax.random.split(root, 3)
    param_slab = build_param_slab(kp)

    edge_feats = jax.random.normal(kf, (N_TEMPORAL, FEAT_DIMS), jnp.float32)
    edge_ts = jax.random.uniform(kt, (N_TEMPORAL,), jnp.float32, 0.0, 100.0)
    # unique scatter indices into the (B_NODES * PER_GRAPH) token slots
    inds = (jnp.arange(N_TEMPORAL, dtype=jnp.int32) * 2) % (B_NODES * PER_GRAPH)
    has_temporal_neighbors = jnp.ones((B_NODES,), jnp.bool_).at[1].set(False)

    model_inputs = (edge_feats, edge_ts, B_NODES, inds)
    loss, pred_pos, pred_neg = mixer_per_node_forward(
        param_slab, model_inputs, has_temporal_neighbors, NEG_SAMPLES)
    jax.block_until_ready((loss, pred_pos, pred_neg))

    assert pred_pos.shape == (NUM_EDGE, 1) and pred_neg.shape == (NEG_SAMPLES * NUM_EDGE, 1)
    assert bool(jnp.isfinite(loss))
    assert bool(jnp.all(jnp.isfinite(pred_pos))) and bool(jnp.all(jnp.isfinite(pred_neg)))
    print("KERNEL_OK")
</pallas_src>

<mosaic_0001>
module attributes {stable_mosaic.version = 11 : i64} {
  func.func @fused_forward_kernel(%arg0: memref<1x48xi32, #tpu.memory_space<vmem>>, %arg1: memref<48x17xf32, #tpu.memory_space<vmem>>, %arg2: memref<1152x128xf32, #tpu.memory_space<vmem>>, %arg3: memref<8x1xf32, #tpu.memory_space<vmem>>) attributes {dimension_semantics = [], scalar_prefetch = 0 : i64, scratch_operands = 0 : i64, tpu.core_type = #tpu.core_type<tc>} {
    %c0 = arith.constant 0 : index
    %c0_0 = arith.constant 0 : index
    %0 = vector.load %arg1[%c0, %c0_0] : memref<48x17xf32, #tpu.memory_space<vmem>>, vector<48x16xf32>
    %c0_1 = arith.constant 0 : index
    %c16 = arith.constant 16 : index
    %1 = vector.load %arg1[%c0_1, %c16] : memref<48x17xf32, #tpu.memory_space<vmem>>, vector<48x1xf32>
    %c0_2 = arith.constant 0 : index
    %c0_3 = arith.constant 0 : index
    %2 = vector.load %arg2[%c0_2, %c0_3] : memref<1152x128xf32, #tpu.memory_space<vmem>>, vector<1x16xf32>
    %c1 = arith.constant 1 : index
    %c0_4 = arith.constant 0 : index
    %3 = vector.load %arg2[%c1, %c0_4] : memref<1152x128xf32, #tpu.memory_space<vmem>>, vector<1x16xf32>
    %4 = vector.broadcast %1 : vector<48x1xf32> to vector<48x16xf32>
    %5 = vector.broadcast %2 : vector<1x16xf32> to vector<48x16xf32>
    %6 = arith.mulf %4, %5 : vector<48x16xf32>
    %7 = vector.broadcast %3 : vector<1x16xf32> to vector<48x16xf32>
    %8 = arith.addf %6, %7 : vector<48x16xf32>
    %9 = math.cos %8 : vector<48x16xf32>
    %c8 = arith.constant 8 : index
    %c0_5 = arith.constant 0 : index
    %10 = vector.load %arg2[%c8, %c0_5] : memref<1152x128xf32, #tpu.memory_space<vmem>>, vector<16x32xf32>
    %cst = arith.constant dense<0.000000e+00> : vector<48x32xf32>
    %11 = tpu.matmul %0, %10, %cst {dimension_numbers = #tpu.dot_dimension_numbers<[1], [0], [0], [1], [0, 0, 1, 1], [], []>} : vector<48x16xf32>, vector<16x32xf32>, vector<48x32xf32> -> vector<48x32xf32>
    %c24 = arith.constant 24 : index
    %c0_6 = arith.constant 0 : index
    %12 = vector.load %arg2[%c24, %c0_6] : memref<1152x128xf32, #tpu.memory_space<vmem>>, vector<16x32xf32>
    %cst_7 = arith.constant dense<0.000000e+00> : vector<48x32xf32>
    %13 = tpu.matmul %9, %12, %cst_7 {dimension_numbers = #tpu.dot_dimension_numbers<[1], [0], [0], [1], [0, 0, 1, 1], [], []>} : vector<48x16xf32>, vector<16x32xf32>, vector<48x32xf32> -> vector<48x32xf32>
    %14 = arith.addf %11, %13 : vector<48x32xf32>
    %c40 = arith.constant 40 : index
    %c0_8 = arith.constant 0 : index
    %15 = vector.load %arg2[%c40, %c0_8] : memref<1152x128xf32, #tpu.memory_space<vmem>>, vector<1x32xf32>
    %16 = vector.broadcast %15 : vector<1x32xf32> to vector<48x32xf32>
    %17 = arith.addf %14, %16 : vector<48x32xf32>
    %18 = tpu.iota {dimensions = array<i32: 0>} : vector<96x48xi32>
    %c0_9 = arith.constant 0 : index
    %c0_10 = arith.constant 0 : index
    %19 = vector.load %arg0[%c0_9, %c0_10] : memref<1x48xi32, #tpu.memory_space<vmem>>, vector<1x48xi32>
    %20 = vector.broadcast %19 : vector<1x48xi32> to vector<96x48xi32>
    %21 = arith.cmpi eq, %18, %20 : vector<96x48xi32>
    %22 = arith.extui %21 : vector<96x48xi1> to vector<96x48xi32>
    %23 = arith.sitofp %22 : vector<96x48xi32> to vector<96x48xf32>
    %cst_11 = arith.constant dense<0.000000e+00> : vector<96x32xf32>
    %24 = tpu.matmul %23, %17, %cst_11 {dimension_numbers = #tpu.dot_dimension_numbers<[1], [0], [0], [1], [0, 0, 1, 1], [], []>} : vector<96x48xf32>, vector<48x32xf32>, vector<96x32xf32> -> vector<96x32xf32>
    %c48 = arith.constant 48 : index
    %c0_12 = arith.constant 0 : index
    %25 = vector.load %arg2[%c48, %c0_12] : memref<1152x128xf32, #tpu.memory_space<vmem>>, vector<1x32xf32>
    %c49 = arith.constant 49 : index
    %c0_13 = arith.constant 0 : index
    %26 = vector.load %arg2[%c49, %c0_13] : memref<1152x128xf32, #tpu.memory_space<vmem>>, vector<1x32xf32>
    %cst_14 = arith.constant dense<0.000000e+00> : vector<96xf32>
    %27 = vector.multi_reduction <add>, %24, %cst_14 [1] : vector<96x32xf32> to vector<96xf32>
    %28 = vector.shape_cast %27 : vector<96xf32> to vector<96x1xf32>
    %cst_15 = arith.constant 3.200000e+01 : f32
    %29 = vector.broadcast %cst_15 : f32 to vector<96x1xf32>
    %30 = arith.divf %28, %29 : vector<96x1xf32>
    %31 = vector.broadcast %30 : vector<96x1xf32> to vector<96x32xf32>
    %32 = arith.subf %24, %31 : vector<96x32xf32>
    %33 = arith.mulf %32, %32 : vector<96x32xf32>
    %cst_16 = arith.constant dense<0.000000e+00> : vector<96xf32>
    %34 = vector.multi_reduction <add>, %33, %cst_16 [1] : vector<96x32xf32> to vector<96xf32>
    %35 = vector.shape_cast %34 : vector<96xf32> to vector<96x1xf32>
    %cst_17 = arith.constant 3.200000e+01 : f32
    %36 = vector.broadcast %cst_17 : f32 to vector<96x1xf32>
    %37 = arith.divf %35, %36 : vector<96x1xf32>
    %38 = vector.broadcast %30 : vector<96x1xf32> to vector<96x32xf32>
    %39 = arith.subf %24, %38 : vector<96x32xf32>
    %cst_18 = arith.constant 9.99999974E-6 : f32
    %40 = vector.broadcast %cst_18 : f32 to vector<96x1xf32>
    %41 = arith.addf %37, %40 : vector<96x1xf32>
    %42 = math.rsqrt %41 : vector<96x1xf32>
    %43 = vector.broadcast %42 : vector<96x1xf32> to vector<96x32xf32>
    %44 = arith.mulf %39, %43 : vector<96x32xf32>
    %45 = vector.broadcast %25 : vector<1x32xf32> to vector<96x32xf32>
    %46 = arith.mulf %44, %45 : vector<96x32xf32>
    %47 = vector.broadcast %26 : vector<1x32xf32> to vector<96x32xf32>
    %48 = arith.addf %46, %47 : vector<96x32xf32>
    %c56 = arith.constant 56 : index
    %c0_19 = arith.constant 0 : index
    %49 = vector.load %arg2[%c56, %c0_19] : memref<1152x128xf32, #tpu.memory_space<vmem>>, vector<48x96xf32>
    %cst_20 = arith.constant dense<0.000000e+00> : vector<48x32xf32>
    %50 = tpu.matmul %49, %48, %cst_20 {dimension_numbers = #tpu.dot_dimension_numbers<[1], [0], [0], [1], [0, 0, 1, 1], [], []>} : vector<48x96xf32>, vector<96x32xf32>, vector<48x32xf32> -> vector<48x32xf32>
    %c104 = arith.constant 104 : index
    %c0_21 = arith.constant 0 : index
    %51 = vector.load %arg2[%c104, %c0_21] : memref<1152x128xf32, #tpu.memory_space<vmem>>, vector<48x32xf32>
    %52 = arith.addf %50, %51 : vector<48x32xf32>
    %53 = math.absf %52 : vector<48x32xf32>
    %cst_22 = arith.constant 0.707106769 : f32
    %54 = vector.broadcast %cst_22 : f32 to vector<48x32xf32>
    %55 = arith.mulf %53, %54 : vector<48x32xf32>
    %56 = arith.mulf %55, %55 : vector<48x32xf32>
    %cst_23 = arith.constant 0.000000e+00 : f32
    %57 = vector.broadcast %cst_23 : f32 to vector<48x32xf32>
    %58 = arith.subf %57, %56 : vector<48x32xf32>
    %59 = math.exp %58 : vector<48x32xf32>
    %cst_24 = arith.constant 0.327591091 : f32
    %60 = vector.broadcast %cst_24 : f32 to vector<48x32xf32>
    %61 = arith.mulf %60, %55 : vector<48x32xf32>
    %cst_25 = arith.constant 1.000000e+00 : f32
    %62 = vector.broadcast %cst_25 : f32 to vector<48x32xf32>
    %63 = arith.addf %62, %61 : vector<48x32xf32>
    %64 = tpu.reciprocal %63 {approx = true} : vector<48x32xf32> -> vector<48x32xf32>
    %cst_26 = arith.constant 1.06140542 : f32
    %65 = vector.broadcast %cst_26 : f32 to vector<48x32xf32>
    %66 = arith.mulf %65, %64 : vector<48x32xf32>
    %cst_27 = arith.constant -1.45315206 : f32
    %67 = vector.broadcast %cst_27 : f32 to vector<48x32xf32>
    %68 = arith.addf %66, %67 : vector<48x32xf32>
    %69 = arith.mulf %68, %64 : vector<48x32xf32>
    %cst_28 = arith.constant 1.42141378 : f32
    %70 = vector.broadcast %cst_28 : f32 to vector<48x32xf32>
    %71 = arith.addf %69, %70 : vector<48x32xf32>
    %72 = arith.mulf %71, %64 : vector<48x32xf32>
    %cst_29 = arith.constant -0.284496725 : f32
    %73 = vector.broadcast %cst_29 : f32 to vector<48x32xf32>
    %74 = arith.addf %72, %73 : vector<48x32xf32>
    %75 = arith.mulf %74, %64 : vector<48x32xf32>
    %cst_30 = arith.constant 0.254829586 : f32
    %76 = vector.broadcast %cst_30 : f32 to vector<48x32xf32>
    %77 = arith.addf %75, %76 : vector<48x32xf32>
    %78 = arith.mulf %77, %64 : vector<48x32xf32>
    %79 = arith.addf %52, %53 : vector<48x32xf32>
    %cst_31 = arith.constant 5.000000e-01 : f32
    %80 = vector.broadcast %cst_31 : f32 to vector<48x32xf32>
    %81 = arith.mulf %80, %79 : vector<48x32xf32>
    %cst_32 = arith.constant 5.000000e-01 : f32
    %82 = vector.broadcast %cst_32 : f32 to vector<48x32xf32>
    %83 = arith.mulf %82, %53 : vector<48x32xf32>
    %84 = arith.mulf %78, %59 : vector<48x32xf32>
    %85 = arith.mulf %83, %84 : vector<48x32xf32>
    %86 = arith.subf %81, %85 : vector<48x32xf32>
    %c152 = arith.constant 152 : index
    %c0_33 = arith.constant 0 : index
    %87 = vector.load %arg2[%c152, %c0_33] : memref<1152x128xf32, #tpu.memory_space<vmem>>, vector<96x48xf32>
    %cst_34 = arith.constant dense<0.000000e+00> : vector<96x32xf32>
    %88 = tpu.matmul %87, %86, %cst_34 {dimension_numbers = #tpu.dot_dimension_numbers<[1], [0], [0], [1], [0, 0, 1, 1], [], []>} : vector<96x48xf32>, vector<48x32xf32>, vector<96x32xf32> -> vector<96x32xf32>
    %89 = arith.addf %24, %88 : vector<96x32xf32>
    %c248 = arith.constant 248 : index
    %c0_35 = arith.constant 0 : index
    %90 = vector.load %arg2[%c248, %c0_35] : memref<1152x128xf32, #tpu.memory_space<vmem>>, vector<96x32xf32>
    %91 = arith.addf %89, %90 : vector<96x32xf32>
    %c344 = arith.constant 344 : index
    %c0_36 = arith.constant 0 : index
    %92 = vector.load %arg2[%c344, %c0_36] : memref<1152x128xf32, #tpu.memory_space<vmem>>, vector<1x32xf32>
    %c345 = arith.constant 345 : index
    %c0_37 = arith.constant 0 : index
    %93 = vector.load %arg2[%c345, %c0_37] : memref<1152x128xf32, #tpu.memory_space<vmem>>, vector<1x32xf32>
    %cst_38 = arith.constant dense<0.000000e+00> : vector<96xf32>
    %94 = vector.multi_reduction <add>, %91, %cst_38 [1] : vector<96x32xf32> to vector<96xf32>
    %95 = vector.shape_cast %94 : vector<96xf32> to vector<96x1xf32>
    %cst_39 = arith.constant 3.200000e+01 : f32
    %96 = vector.broadcast %cst_39 : f32 to vector<96x1xf32>
    %97 = arith.divf %95, %96 : vector<96x1xf32>
    %98 = vector.broadcast %97 : vector<96x1xf32> to vector<96x32xf32>
    %99 = arith.subf %91, %98 : vector<96x32xf32>
    %100 = arith.mulf %99, %99 : vector<96x32xf32>
    %cst_40 = arith.constant dense<0.000000e+00> : vector<96xf32>
    %101 = vector.multi_reduction <add>, %100, %cst_40 [1] : vector<96x32xf32> to vector<96xf32>
    %102 = vector.shape_cast %101 : vector<96xf32> to vector<96x1xf32>
    %cst_41 = arith.constant 3.200000e+01 : f32
    %103 = vector.broadcast %cst_41 : f32 to vector<96x1xf32>
    %104 = arith.divf %102, %103 : vector<96x1xf32>
    %105 = vector.broadcast %97 : vector<96x1xf32> to vector<96x32xf32>
    %106 = arith.subf %91, %105 : vector<96x32xf32>
    %cst_42 = arith.constant 9.99999974E-6 : f32
    %107 = vector.broadcast %cst_42 : f32 to vector<96x1xf32>
    %108 = arith.addf %104, %107 : vector<96x1xf32>
    %109 = math.rsqrt %108 : vector<96x1xf32>
    %110 = vector.broadcast %109 : vector<96x1xf32> to vector<96x32xf32>
    %111 = arith.mulf %106, %110 : vector<96x32xf32>
    %112 = vector.broadcast %92 : vector<1x32xf32> to vector<96x32xf32>
    %113 = arith.mulf %111, %112 : vector<96x32xf32>
    %114 = vector.broadcast %93 : vector<1x32xf32> to vector<96x32xf32>
    %115 = arith.addf %113, %114 : vector<96x32xf32>
    %c352 = arith.constant 352 : index
    %c0_43 = arith.constant 0 : index
    %116 = vector.load %arg2[%c352, %c0_43] : memref<1152x128xf32, #tpu.memory_space<vmem>>, vector<32x128xf32>
    %cst_44 = arith.constant dense<0.000000e+00> : vector<96x128xf32>
    %117 = tpu.matmul %115, %116, %cst_44 {dimension_numbers = #tpu.dot_dimension_numbers<[1], [0], [0], [1], [0, 0, 1, 1], [], []>} : vector<96x32xf32>, vector<32x128xf32>, vector<96x128xf32> -> vector<96x128xf32>
    %c384 = arith.constant 384 : index
    %c0_45 = arith.constant 0 : index
    %118 = vector.load %arg2[%c384, %c0_45] : memref<1152x128xf32, #tpu.memory_space<vmem>>, vector<1x128xf32>
    %119 = vector.broadcast %118 : vector<1x128xf32> to vector<96x128xf32>
    %120 = arith.addf %117, %119 : vector<96x128xf32>
    %121 = math.absf %120 : vector<96x128xf32>
    %cst_46 = arith.constant 0.707106769 : f32
    %122 = vector.broadcast %cst_46 : f32 to vector<96x128xf32>
    %123 = arith.mulf %121, %122 : vector<96x128xf32>
    %124 = arith.mulf %123, %123 : vector<96x128xf32>
    %cst_47 = arith.constant 0.000000e+00 : f32
    %125 = vector.broadcast %cst_47 : f32 to vector<96x128xf32>
    %126 = arith.subf %125, %124 : vector<96x128xf32>
    %127 = math.exp %126 : vector<96x128xf32>
    %cst_48 = arith.constant 0.327591091 : f32
    %128 = vector.broadcast %cst_48 : f32 to vector<96x128xf32>
    %129 = arith.mulf %128, %123 : vector<96x128xf32>
    %cst_49 = arith.constant 1.000000e+00 : f32
    %130 = vector.broadcast %cst_49 : f32 to vector<96x128xf32>
    %131 = arith.addf %130, %129 : vector<96x128xf32>
    %132 = tpu.reciprocal %131 {approx = true} : vector<96x128xf32> -> vector<96x128xf32>
    %cst_50 = arith.constant 1.06140542 : f32
    %133 = vector.broadcast %cst_50 : f32 to vector<96x128xf32>
    %134 = arith.mulf %133, %132 : vector<96x128xf32>
    %cst_51 = arith.constant -1.45315206 : f32
    %135 = vector.broadcast %cst_51 : f32 to vector<96x128xf32>
    %136 = arith.addf %134, %135 : vector<96x128xf32>
    %137 = arith.mulf %136, %132 : vector<96x128xf32>
    %cst_52 = arith.constant 1.42141378 : f32
    %138 = vector.broadcast %cst_52 : f32 to vector<96x128xf32>
    %139 = arith.addf %137, %138 : vector<96x128xf32>
    %140 = arith.mulf %139, %132 : vector<96x128xf32>
    %cst_53 = arith.constant -0.284496725 : f32
    %141 = vector.broadcast %cst_53 : f32 to vector<96x128xf32>
    %142 = arith.addf %140, %141 : vector<96x128xf32>
    %143 = arith.mulf %142, %132 : vector<96x128xf32>
    %cst_54 = arith.constant 0.254829586 : f32
    %144 = vector.broadcast %cst_54 : f32 to vector<96x128xf32>
    %145 = arith.addf %143, %144 : vector<96x128xf32>
    %146 = arith.mulf %145, %132 : vector<96x128xf32>
    %147 = arith.addf %120, %121 : vector<96x128xf32>
    %cst_55 = arith.constant 5.000000e-01 : f32
    %148 = vector.broadcast %cst_55 : f32 to vector<96x128xf32>
    %149 = arith.mulf %148, %147 : vector<96x128xf32>
    %cst_56 = arith.constant 5.000000e-01 : f32
    %150 = vector.broadcast %cst_56 : f32 to vector<96x128xf32>
    %151 = arith.mulf %150, %121 : vector<96x128xf32>
    %152 = arith.mulf %146, %127 : vector<96x128xf32>
    %153 = arith.mulf %151, %152 : vector<96x128xf32>
    %154 = arith.subf %149, %153 : vector<96x128xf32>
    %c392 = arith.constant 392 : index
    %c0_57 = arith.constant 0 : index
    %155 = vector.load %arg2[%c392, %c0_57] : memref<1152x128xf32, #tpu.memory_space<vmem>>, vector<128x32xf32>
    %cst_58 = arith.constant dense<0.000000e+00> : vector<96x32xf32>
    %156 = tpu.matmul %154, %155, %cst_58 {dimension_numbers = #tpu.dot_dimension_numbers<[1], [0], [0], [1], [0, 0, 1, 1], [], []>} : vector<96x128xf32>, vector<128x32xf32>, vector<96x32xf32> -> vector<96x32xf32>
    %157 = arith.addf %91, %156 : vector<96x32xf32>
    %c520 = arith.constant 520 : index
    %c0_59 = arith.constant 0 : index
    %158 = vector.load %arg2[%c520, %c0_59] : memref<1152x128xf32, #tpu.memory_space<vmem>>, vector<1x32xf32>
    %159 = vector.broadcast %158 : vector<1x32xf32> to vector<96x32xf32>
    %160 = arith.addf %157, %159 : vector<96x32xf32>
    %c528 = arith.constant 528 : index
    %c0_60 = arith.constant 0 : index
    %161 = vector.load %arg2[%c528, %c0_60] : memref<1152x128xf32, #tpu.memory_space<vmem>>, vector<1x32xf32>
    %c529 = arith.constant 529 : index
    %c0_61 = arith.constant 0 : index
    %162 = vector.load %arg2[%c529, %c0_61] : memref<1152x128xf32, #tpu.memory_space<vmem>>, vector<1x32xf32>
    %cst_62 = arith.constant dense<0.000000e+00> : vector<96xf32>
    %163 = vector.multi_reduction <add>, %160, %cst_62 [1] : vector<96x32xf32> to vector<96xf32>
    %164 = vector.shape_cast %163 : vector<96xf32> to vector<96x1xf32>
    %cst_63 = arith.constant 3.200000e+01 : f32
    %165 = vector.broadcast %cst_63 : f32 to vector<96x1xf32>
    %166 = arith.divf %164, %165 : vector<96x1xf32>
    %167 = vector.broadcast %166 : vector<96x1xf32> to vector<96x32xf32>
    %168 = arith.subf %160, %167 : vector<96x32xf32>
    %169 = arith.mulf %168, %168 : vector<96x32xf32>
    %cst_64 = arith.constant dense<0.000000e+00> : vector<96xf32>
    %170 = vector.multi_reduction <add>, %169, %cst_64 [1] : vector<96x32xf32> to vector<96xf32>
    %171 = vector.shape_cast %170 : vector<96xf32> to vector<96x1xf32>
    %cst_65 = arith.constant 3.200000e+01 : f32
    %172 = vector.broadcast %cst_65 : f32 to vector<96x1xf32>
    %173 = arith.divf %171, %172 : vector<96x1xf32>
    %174 = vector.broadcast %166 : vector<96x1xf32> to vector<96x32xf32>
    %175 = arith.subf %160, %174 : vector<96x32xf32>
    %cst_66 = arith.constant 9.99999974E-6 : f32
    %176 = vector.broadcast %cst_66 : f32 to vector<96x1xf32>
    %177 = arith.addf %173, %176 : vector<96x1xf32>
    %178 = math.rsqrt %177 : vector<96x1xf32>
    %179 = vector.broadcast %178 : vector<96x1xf32> to vector<96x32xf32>
    %180 = arith.mulf %175, %179 : vector<96x32xf32>
    %181 = vector.broadcast %161 : vector<1x32xf32> to vector<96x32xf32>
    %182 = arith.mulf %180, %181 : vector<96x32xf32>
    %183 = vector.broadcast %162 : vector<1x32xf32> to vector<96x32xf32>
    %184 = arith.addf %182, %183 : vector<96x32xf32>
    %c536 = arith.constant 536 : index
    %c0_67 = arith.constant 0 : index
    %185 = vector.load %arg2[%c536, %c0_67] : memref<1152x128xf32, #tpu.memory_space<vmem>>, vector<48x96xf32>
    %cst_68 = arith.constant dense<0.000000e+00> : vector<48x32xf32>
    %186 = tpu.matmul %185, %184, %cst_68 {dimension_numbers = #tpu.dot_dimension_numbers<[1], [0], [0], [1], [0, 0, 1, 1], [], []>} : vector<48x96xf32>, vector<96x32xf32>, vector<48x32xf32> -> vector<48x32xf32>
    %c584 = arith.constant 584 : index
    %c0_69 = arith.constant 0 : index
    %187 = vector.load %arg2[%c584, %c0_69] : memref<1152x128xf32, #tpu.memory_space<vmem>>, vector<48x32xf32>
    %188 = arith.addf %186, %187 : vector<48x32xf32>
    %189 = math.absf %188 : vector<48x32xf32>
    %cst_70 = arith.constant 0.707106769 : f32
    %190 = vector.broadcast %cst_70 : f32 to vector<48x32xf32>
    %191 = arith.mulf %189, %190 : vector<48x32xf32>
    %192 = arith.mulf %191, %191 : vector<48x32xf32>
    %cst_71 = arith.constant 0.000000e+00 : f32
    %193 = vector.broadcast %cst_71 : f32 to vector<48x32xf32>
    %194 = arith.subf %193, %192 : vector<48x32xf32>
    %195 = math.exp %194 : vector<48x32xf32>
    %cst_72 = arith.constant 0.327591091 : f32
    %196 = vector.broadcast %cst_72 : f32 to vector<48x32xf32>
    %197 = arith.mulf %196, %191 : vector<48x32xf32>
    %cst_73 = arith.constant 1.000000e+00 : f32
    %198 = vector.broadcast %cst_73 : f32 to vector<48x32xf32>
    %199 = arith.addf %198, %197 : vector<48x32xf32>
    %200 = tpu.reciprocal %199 {approx = true} : vector<48x32xf32> -> vector<48x32xf32>
    %cst_74 = arith.constant 1.06140542 : f32
    %201 = vector.broadcast %cst_74 : f32 to vector<48x32xf32>
    %202 = arith.mulf %201, %200 : vector<48x32xf32>
    %cst_75 = arith.constant -1.45315206 : f32
    %203 = vector.broadcast %cst_75 : f32 to vector<48x32xf32>
    %204 = arith.addf %202, %203 : vector<48x32xf32>
    %205 = arith.mulf %204, %200 : vector<48x32xf32>
    %cst_76 = arith.constant 1.42141378 : f32
    %206 = vector.broadcast %cst_76 : f32 to vector<48x32xf32>
    %207 = arith.addf %205, %206 : vector<48x32xf32>
    %208 = arith.mulf %207, %200 : vector<48x32xf32>
    %cst_77 = arith.constant -0.284496725 : f32
    %209 = vector.broadcast %cst_77 : f32 to vector<48x32xf32>
    %210 = arith.addf %208, %209 : vector<48x32xf32>
    %211 = arith.mulf %210, %200 : vector<48x32xf32>
    %cst_78 = arith.constant 0.254829586 : f32
    %212 = vector.broadcast %cst_78 : f32 to vector<48x32xf32>
    %213 = arith.addf %211, %212 : vector<48x32xf32>
    %214 = arith.mulf %213, %200 : vector<48x32xf32>
    %215 = arith.addf %188, %189 : vector<48x32xf32>
    %cst_79 = arith.constant 5.000000e-01 : f32
    %216 = vector.broadcast %cst_79 : f32 to vector<48x32xf32>
    %217 = arith.mulf %216, %215 : vector<48x32xf32>
    %cst_80 = arith.constant 5.000000e-01 : f32
    %218 = vector.broadcast %cst_80 : f32 to vector<48x32xf32>
    %219 = arith.mulf %218, %189 : vector<48x32xf32>
    %220 = arith.mulf %214, %195 : vector<48x32xf32>
    %221 = arith.mulf %219, %220 : vector<48x32xf32>
    %222 = arith.subf %217, %221 : vector<48x32xf32>
    %c632 = arith.constant 632 : index
    %c0_81 = arith.constant 0 : index
    %223 = vector.load %arg2[%c632, %c0_81] : memref<1152x128xf32, #tpu.memory_space<vmem>>, vector<96x48xf32>
    %cst_82 = arith.constant dense<0.000000e+00> : vector<96x32xf32>
    %224 = tpu.matmul %223, %222, %cst_82 {dimension_numbers = #tpu.dot_dimension_numbers<[1], [0], [0], [1], [0, 0, 1, 1], [], []>} : vector<96x48xf32>, vector<48x32xf32>, vector<96x32xf32> -> vector<96x32xf32>
    %225 = arith.addf %160, %224 : vector<96x32xf32>
    %c728 = arith.constant 728 : index
    %c0_83 = arith.constant 0 : index
    %226 = vector.load %arg2[%c728, %c0_83] : memref<1152x128xf32, #tpu.memory_space<vmem>>, vector<96x32xf32>
    %227 = arith.addf %225, %226 : vector<96x32xf32>
    %c824 = arith.constant 824 : index
    %c0_84 = arith.constant 0 : index
    %228 = vector.load %arg2[%c824, %c0_84] : memref<1152x128xf32, #tpu.memory_space<vmem>>, vector<1x32xf32>
    %c825 = arith.constant 825 : index
    %c0_85 = arith.constant 0 : index
    %229 = vector.load %arg2[%c825, %c0_85] : memref<1152x128xf32, #tpu.memory_space<vmem>>, vector<1x32xf32>
    %cst_86 = arith.constant dense<0.000000e+00> : vector<96xf32>
    %230 = vector.multi_reduction <add>, %227, %cst_86 [1] : vector<96x32xf32> to vector<96xf32>
    %231 = vector.shape_cast %230 : vector<96xf32> to vector<96x1xf32>
    %cst_87 = arith.constant 3.200000e+01 : f32
    %232 = vector.broadcast %cst_87 : f32 to vector<96x1xf32>
    %233 = arith.divf %231, %232 : vector<96x1xf32>
    %234 = vector.broadcast %233 : vector<96x1xf32> to vector<96x32xf32>
    %235 = arith.subf %227, %234 : vector<96x32xf32>
    %236 = arith.mulf %235, %235 : vector<96x32xf32>
    %cst_88 = arith.constant dense<0.000000e+00> : vector<96xf32>
    %237 = vector.multi_reduction <add>, %236, %cst_88 [1] : vector<96x32xf32> to vector<96xf32>
    %238 = vector.shape_cast %237 : vector<96xf32> to vector<96x1xf32>
    %cst_89 = arith.constant 3.200000e+01 : f32
    %239 = vector.broadcast %cst_89 : f32 to vector<96x1xf32>
    %240 = arith.divf %238, %239 : vector<96x1xf32>
    %241 = vector.broadcast %233 : vector<96x1xf32> to vector<96x32xf32>
    %242 = arith.subf %227, %241 : vector<96x32xf32>
    %cst_90 = arith.constant 9.99999974E-6 : f32
    %243 = vector.broadcast %cst_90 : f32 to vector<96x1xf32>
    %244 = arith.addf %240, %243 : vector<96x1xf32>
    %245 = math.rsqrt %244 : vector<96x1xf32>
    %246 = vector.broadcast %245 : vector<96x1xf32> to vector<96x32xf32>
    %247 = arith.mulf %242, %246 : vector<96x32xf32>
    %248 = vector.broadcast %228 : vector<1x32xf32> to vector<96x32xf32>
    %249 = arith.mulf %247, %248 : vector<96x32xf32>
    %250 = vector.broadcast %229 : vector<1x32xf32> to vector<96x32xf32>
    %251 = arith.addf %249, %250 : vector<96x32xf32>
    %c832 = arith.constant 832 : index
    %c0_91 = arith.constant 0 : index
    %252 = vector.load %arg2[%c832, %c0_91] : memref<1152x128xf32, #tpu.memory_space<vmem>>, vector<32x128xf32>
    %cst_92 = arith.constant dense<0.000000e+00> : vector<96x128xf32>
    %253 = tpu.matmul %251, %252, %cst_92 {dimension_numbers = #tpu.dot_dimension_numbers<[1], [0], [0], [1], [0, 0, 1, 1], [], []>} : vector<96x32xf32>, vector<32x128xf32>, vector<96x128xf32> -> vector<96x128xf32>
    %c864 = arith.constant 864 : index
    %c0_93 = arith.constant 0 : index
    %254 = vector.load %arg2[%c864, %c0_93] : memref<1152x128xf32, #tpu.memory_space<vmem>>, vector<1x128xf32>
    %255 = vector.broadcast %254 : vector<1x128xf32> to vector<96x128xf32>
    %256 = arith.addf %253, %255 : vector<96x128xf32>
    %257 = math.absf %256 : vector<96x128xf32>
    %cst_94 = arith.constant 0.707106769 : f32
    %258 = vector.broadcast %cst_94 : f32 to vector<96x128xf32>
    %259 = arith.mulf %257, %258 : vector<96x128xf32>
    %260 = arith.mulf %259, %259 : vector<96x128xf32>
    %cst_95 = arith.constant 0.000000e+00 : f32
    %261 = vector.broadcast %cst_95 : f32 to vector<96x128xf32>
    %262 = arith.subf %261, %260 : vector<96x128xf32>
    %263 = math.exp %262 : vector<96x128xf32>
    %cst_96 = arith.constant 0.327591091 : f32
    %264 = vector.broadcast %cst_96 : f32 to vector<96x128xf32>
    %265 = arith.mulf %264, %259 : vector<96x128xf32>
    %cst_97 = arith.constant 1.000000e+00 : f32
    %266 = vector.broadcast %cst_97 : f32 to vector<96x128xf32>
    %267 = arith.addf %266, %265 : vector<96x128xf32>
    %268 = tpu.reciprocal %267 {approx = true} : vector<96x128xf32> -> vector<96x128xf32>
    %cst_98 = arith.constant 1.06140542 : f32
    %269 = vector.broadcast %cst_98 : f32 to vector<96x128xf32>
    %270 = arith.mulf %269, %268 : vector<96x128xf32>
    %cst_99 = arith.constant -1.45315206 : f32
    %271 = vector.broadcast %cst_99 : f32 to vector<96x128xf32>
    %272 = arith.addf %270, %271 : vector<96x128xf32>
    %273 = arith.mulf %272, %268 : vector<96x128xf32>
    %cst_100 = arith.constant 1.42141378 : f32
    %274 = vector.broadcast %cst_100 : f32 to vector<96x128xf32>
    %275 = arith.addf %273, %274 : vector<96x128xf32>
    %276 = arith.mulf %275, %268 : vector<96x128xf32>
    %cst_101 = arith.constant -0.284496725 : f32
    %277 = vector.broadcast %cst_101 : f32 to vector<96x128xf32>
    %278 = arith.addf %276, %277 : vector<96x128xf32>
    %279 = arith.mulf %278, %268 : vector<96x128xf32>
    %cst_102 = arith.constant 0.254829586 : f32
    %280 = vector.broadcast %cst_102 : f32 to vector<96x128xf32>
    %281 = arith.addf %279, %280 : vector<96x128xf32>
    %282 = arith.mulf %281, %268 : vector<96x128xf32>
    %283 = arith.addf %256, %257 : vector<96x128xf32>
    %cst_103 = arith.constant 5.000000e-01 : f32
    %284 = vector.broadcast %cst_103 : f32 to vector<96x128xf32>
    %285 = arith.mulf %284, %283 : vector<96x128xf32>
    %cst_104 = arith.constant 5.000000e-01 : f32
    %286 = vector.broadcast %cst_104 : f32 to vector<96x128xf32>
    %287 = arith.mulf %286, %257 : vector<96x128xf32>
    %288 = arith.mulf %282, %263 : vector<96x128xf32>
    %289 = arith.mulf %287, %288 : vector<96x128xf32>
    %290 = arith.subf %285, %289 : vector<96x128xf32>
    %c872 = arith.constant 872 : index
    %c0_105 = arith.constant 0 : index
    %291 = vector.load %arg2[%c872, %c0_105] : memref<1152x128xf32, #tpu.memory_space<vmem>>, vector<128x32xf32>
    %cst_106 = arith.constant dense<0.000000e+00> : vector<96x32xf32>
    %292 = tpu.matmul %290, %291, %cst_106 {dimension_numbers = #tpu.dot_dimension_numbers<[1], [0], [0], [1], [0, 0, 1, 1], [], []>} : vector<96x128xf32>, vector<128x32xf32>, vector<96x32xf32> -> vector<96x32xf32>
    %293 = arith.addf %227, %292 : vector<96x32xf32>
    %c1000 = arith.constant 1000 : index
    %c0_107 = arith.constant 0 : index
    %294 = vector.load %arg2[%c1000, %c0_107] : memref<1152x128xf32, #tpu.memory_space<vmem>>, vector<1x32xf32>
    %295 = vector.broadcast %294 : vector<1x32xf32> to vector<96x32xf32>
    %296 = arith.addf %293, %295 : vector<96x32xf32>
    %cst_108 = arith.constant dense<0.000000e+00> : vector<96xf32>
    %297 = vector.multi_reduction <add>, %296, %cst_108 [1] : vector<96x32xf32> to vector<96xf32>
    %298 = vector.shape_cast %297 : vector<96xf32> to vector<96x1xf32>
    %cst_109 = arith.constant 3.200000e+01 : f32
    %299 = vector.broadcast %cst_109 : f32 to vector<96x1xf32>
    %300 = arith.divf %298, %299 : vector<96x1xf32>
    %301 = vector.broadcast %300 : vector<96x1xf32> to vector<96x32xf32>
    %302 = arith.subf %296, %301 : vector<96x32xf32>
    %303 = arith.mulf %302, %302 : vector<96x32xf32>
    %cst_110 = arith.constant dense<0.000000e+00> : vector<96xf32>
    %304 = vector.multi_reduction <add>, %303, %cst_110 [1] : vector<96x32xf32> to vector<96xf32>
    %305 = vector.shape_cast %304 : vector<96xf32> to vector<96x1xf32>
    %cst_111 = arith.constant 3.200000e+01 : f32
    %306 = vector.broadcast %cst_111 : f32 to vector<96x1xf32>
    %307 = arith.divf %305, %306 : vector<96x1xf32>
    %308 = vector.broadcast %300 : vector<96x1xf32> to vector<96x32xf32>
    %309 = arith.subf %296, %308 : vector<96x32xf32>
    %cst_112 = arith.constant 9.99999974E-6 : f32
    %310 = vector.broadcast %cst_112 : f32 to vector<96x1xf32>
    %311 = arith.addf %307, %310 : vector<96x1xf32>
    %312 = math.rsqrt %311 : vector<96x1xf32>
    %313 = vector.broadcast %312 : vector<96x1xf32> to vector<96x32xf32>
    %314 = arith.mulf %309, %313 : vector<96x32xf32>
    %c1008 = arith.constant 1008 : index
    %c0_113 = arith.constant 0 : index
    %315 = vector.load %arg2[%c1008, %c0_113] : memref<1152x128xf32, #tpu.memory_space<vmem>>, vector<12x96xf32>
    %cst_114 = arith.constant dense<0.000000e+00> : vector<12x32xf32>
    %316 = tpu.matmul %315, %314, %cst_114 {dimension_numbers = #tpu.dot_dimension_numbers<[1], [0], [0], [1], [0, 0, 1, 1], [], []>} : vector<12x96xf32>, vector<96x32xf32>, vector<12x32xf32> -> vector<12x32xf32>
    %c1024 = arith.constant 1024 : index
    %c0_115 = arith.constant 0 : index
    %317 = vector.load %arg2[%c1024, %c0_115] : memref<1152x128xf32, #tpu.memory_space<vmem>>, vector<32x32xf32>
    %cst_116 = arith.constant dense<0.000000e+00> : vector<12x32xf32>
    %318 = tpu.matmul %316, %317, %cst_116 {dimension_numbers = #tpu.dot_dimension_numbers<[1], [0], [0], [1], [0, 0, 1, 1], [], []>} : vector<12x32xf32>, vector<32x32xf32>, vector<12x32xf32> -> vector<12x32xf32>
    %c1056 = arith.constant 1056 : index
    %c0_117 = arith.constant 0 : index
    %319 = vector.load %arg2[%c1056, %c0_117] : memref<1152x128xf32, #tpu.memory_space<vmem>>, vector<1x32xf32>
    %320 = vector.broadcast %319 : vector<1x32xf32> to vector<12x32xf32>
    %321 = arith.addf %318, %320 : vector<12x32xf32>
    %322 = vector.extract_strided_slice %321 {offsets = [0, 0], sizes = [4, 32], strides = [1, 1]} : vector<12x32xf32> to vector<4x32xf32>
    %c1064 = arith.constant 1064 : index
    %c0_118 = arith.constant 0 : index
    %323 = vector.load %arg2[%c1064, %c0_118] : memref<1152x128xf32, #tpu.memory_space<vmem>>, vector<32x128xf32>
    %cst_119 = arith.constant dense<0.000000e+00> : vector<4x128xf32>
    %324 = tpu.matmul %322, %323, %cst_119 {dimension_numbers = #tpu.dot_dimension_numbers<[1], [0], [0], [1], [0, 0, 1, 1], [], []>} : vector<4x32xf32>, vector<32x128xf32>, vector<4x128xf32> -> vector<4x128xf32>
    %c1096 = arith.constant 1096 : index
    %c0_120 = arith.constant 0 : index
    %325 = vector.load %arg2[%c1096, %c0_120] : memref<1152x128xf32, #tpu.memory_space<vmem>>, vector<1x128xf32>
    %326 = vector.broadcast %325 : vector<1x128xf32> to vector<4x128xf32>
    %327 = arith.addf %324, %326 : vector<4x128xf32>
    %328 = vector.extract_strided_slice %321 {offsets = [4, 0], sizes = [8, 32], strides = [1, 1]} : vector<12x32xf32> to vector<8x32xf32>
    %c1104 = arith.constant 1104 : index
    %c0_121 = arith.constant 0 : index
    %329 = vector.load %arg2[%c1104, %c0_121] : memref<1152x128xf32, #tpu.memory_space<vmem>>, vector<32x128xf32>
    %cst_122 = arith.constant dense<0.000000e+00> : vector<8x128xf32>
    %330 = tpu.matmul %328, %329, %cst_122 {dimension_numbers = #tpu.dot_dimension_numbers<[1], [0], [0], [1], [0, 0, 1, 1], [], []>} : vector<8x32xf32>, vector<32x128xf32>, vector<8x128xf32> -> vector<8x128xf32>
    %c1136 = arith.constant 1136 : index
    %c0_123 = arith.constant 0 : index
    %331 = vector.load %arg2[%c1136, %c0_123] : memref<1152x128xf32, #tpu.memory_space<vmem>>, vector<1x128xf32>
    %332 = vector.broadcast %331 : vector<1x128xf32> to vector<8x128xf32>
    %333 = arith.addf %330, %332 : vector<8x128xf32>
    %334 = tpu.concatenate %327, %327 in 0 : vector<4x128xf32>, vector<4x128xf32> -> vector<8x128xf32>
    %335 = arith.addf %334, %333 : vector<8x128xf32>
    %cst_124 = arith.constant 0.000000e+00 : f32
    %336 = vector.broadcast %cst_124 : f32 to vector<8x128xf32>
    %337 = arith.maximumf %335, %336 : vector<8x128xf32>
    %c1144 = arith.constant 1144 : index
    %c0_125 = arith.constant 0 : index
    %338 = vector.load %arg2[%c1144, %c0_125] : memref<1152x128xf32, #tpu.memory_space<vmem>>, vector<1x128xf32>
    %c1145 = arith.constant 1145 : index
    %c0_126 = arith.constant 0 : index
    %339 = vector.load %arg2[%c1145, %c0_126] : memref<1152x128xf32, #tpu.memory_space<vmem>>, vector<1x1xf32>
    %340 = vector.broadcast %338 : vector<1x128xf32> to vector<8x128xf32>
    %341 = arith.mulf %337, %340 : vector<8x128xf32>
    %cst_127 = arith.constant dense<0.000000e+00> : vector<8xf32>
    %342 = vector.multi_reduction <add>, %341, %cst_127 [1] : vector<8x128xf32> to vector<8xf32>
    %343 = vector.shape_cast %342 : vector<8xf32> to vector<8x1xf32>
    %344 = vector.broadcast %339 : vector<1x1xf32> to vector<8x1xf32>
    %345 = arith.addf %343, %344 : vector<8x1xf32>
    %c0_128 = arith.constant 0 : index
    %c0_129 = arith.constant 0 : index
    %346 = vector.load %arg3[%c0_128, %c0_129] : memref<8x1xf32, #tpu.memory_space<vmem>>, vector<8x1xf32>
    tpu.vector_store %arg3[%c0_128, %c0_129], %345 {strides = array<i32>} : memref<8x1xf32, #tpu.memory_space<vmem>>, vector<8x1xf32>,
    return
  }
}

</mosaic_0001>

<llo_original>
// kernel: tpu_custom_call.1
$region0: #{tpu_custom_call.1}
  #allocation0 [shape = 'u32[]', space=smem, size = 0x4, offset = 0x4, fixed_abs, tag = 'smem constant byte address 0x4 - core index']
  #allocation1 [shape = 'u32[144,128]{1,0:T(1,128)}', space=vmem, size = 0x12000, scoped, tag = 'internal scratch']
  %s0 = inlined_call_operand.vmem [shape: s32[1,48], index: 0, kind: input, shape index: {}]
  %s1 = inlined_call_operand.vmem [shape: f32[48,17], index: 1, kind: input, shape index: {}]
  %s2 = inlined_call_operand.hbm [shape: f32[1152,128], index: 2, kind: input, shape index: {}]
  %s3 = inlined_call_operand.vmem [shape: f32[8,1], index: 3, kind: output, shape index: {}]
  %s4 = sld [smem:[#allocation0]]
  $region26: #{tpu_custom_call.1} parent=0
    _
  %s6 = ssub.s32 1, %s4
  %s7 = scalar_select 0, %s6, %s4
  $region1: #{tpu_custom_call.1} parent=0
    #allocation2 [shape = 'u8[589824]{0}', space=vmem, size = 0x90000, scoped, tag = 'input window, operand 2, single buffered']
    #allocation3 [shape = 's32[1]{0}', space=sflag, size = 0x4, scoped, tag = 'scoped memory for tpu_custom_call.1']
    %8 = vsyncpa [#allocation3], 0
    // Predicated region
    $region2: #{tpu_custom_call.1} parent=1 // pred_check
      _
    $region3: #{tpu_custom_call.1} parent=1 // pred_check_branch
      %10 = sbr.rel (0) target = $region5
    $region4: #{tpu_custom_call.1} parent=1 // pred_region
      _
    $region5: #{tpu_custom_call.1} parent=1 // pred_fallthru
      _
    // Predicated region
    $region6: #{tpu_custom_call.1} parent=1 // pred_check
      _
    $region7: #{tpu_custom_call.1} parent=1 // pred_check_branch
      %12 = sbr.rel (0) target = $region9
    $region8: #{tpu_custom_call.1} parent=1 // pred_region
      _
    $region9: #{tpu_custom_call.1} parent=1 // pred_fallthru
      _
    // Predicated region
    $region10: #{tpu_custom_call.1} parent=1 // pred_check
      _
    $region11: #{tpu_custom_call.1} parent=1 // pred_check_branch
      %14 = sbr.rel (0) target = $region13
    $region12: #{tpu_custom_call.1} parent=1 // pred_region
      %s16 = ssub.s32 18432, 18432
      %17 = vsyncadd [#allocation3], %s16
      %s18 = sshll.u32 [#allocation2], 4
      %s19 = int_to_ptr.vmem [resolvable:$true] %s18
      %24 = dma.hbm_to_vmem [thread:$0]  %s2, 18432, %s19, [#allocation3], 128, 128, 8
    $region13: #{tpu_custom_call.1} parent=1 // pred_fallthru
      _
    // Predicated region
    $region14: #{tpu_custom_call.1} parent=1 // pred_check
      _
    $region15: #{tpu_custom_call.1} parent=1 // pred_check_branch
      %26 = sbr.rel (0) target = $region17
    $region16: #{tpu_custom_call.1} parent=1 // pred_region
      %27 = dma.done [#allocation3], 18432
    $region17: #{tpu_custom_call.1} parent=1 // pred_fallthru
      _
    %v28 = vld [vmem:[%s1] sm:$0xff]
    %v29 = vld [vmem:[%s1 + $0x8] sm:$0xff]
    %v30 = vld [vmem:[%s1 + $0x10] sm:$0xff]
    %v31 = vld [vmem:[%s1 + $0x18] sm:$0xff]
    %v32 = vld [vmem:[%s1 + $0x20] sm:$0xff]
    %v33 = vld [vmem:[%s1 + $0x28] sm:$0xff]
    %v34 = vld [vmem:[#allocation2] sm:$0x1]
    %v35 = vld [vmem:[#allocation2 + $0x1] sm:$0x1]
    %37 = vset.pattern.permute.xlu0 16
    %38 = vperm.xlu0 %37, %v28
    %v39 = vpop.permute.xlu0 %38
    %42 = vset.pattern.permute.xlu0 16
    %43 = vperm.xlu0 %42, %v29
    %v44 = vpop.permute.xlu0 %43
    %47 = vset.pattern.permute.xlu0 16
    %48 = vperm.xlu0 %47, %v30
    %v49 = vpop.permute.xlu0 %48
    %52 = vset.pattern.permute.xlu0 16
    %53 = vperm.xlu0 %52, %v31
    %v54 = vpop.permute.xlu0 %53
    %57 = vset.pattern.permute.xlu0 16
    %58 = vperm.xlu0 %57, %v32
    %v59 = vpop.permute.xlu0 %58
    %62 = vset.pattern.permute.xlu0 16
    %63 = vperm.xlu0 %62, %v33
    %v64 = vpop.permute.xlu0 %63
    %v66 = vlaneseq
    %v67 = vshrl.u32 %v66, 7
    %v68 = vsub.s32 0, %v67
    %v69 = vrot.slane %v34, %v68
    %v70 = vmul.f32 %v39, %v69
    %v71 = vmul.f32 %v44, %v69
    %v72 = vmul.f32 %v49, %v69
    %v73 = vmul.f32 %v54, %v69
    %v74 = vmul.f32 %v59, %v69
    %v75 = vmul.f32 %v64, %v69
    %v76 = vlaneseq
    %v77 = vshrl.u32 %v76, 7
    %v78 = vsub.s32 0, %v77
    %v79 = vrot.slane %v35, %v78
    %v80 = vadd.f32 %v70, %v79
    %v81 = vadd.f32 %v71, %v79
    %v82 = vadd.f32 %v72, %v79
    %v83 = vadd.f32 %v73, %v79
    %v84 = vadd.f32 %v74, %v79
    %v85 = vadd.f32 %v75, %v79
    %v86 = vand.u32 2147483647, %v80
    %vm87 = vcmp.le.f32.partialorder %v86, 0.7853982
    %vm88 = vcmp.lt.s32.totalorder %v80, 0
    %v89 = vand.u32 %v80, 2139095040
    %v90 = vshrl.u32 %v89, 23
    %v91 = vsub.s32 %v90, 127
    %v92 = vand.u32 2147483647, %v80
    %v93 = vand.u32 %v92, 8388607
    %v94 = vor.u32 %v93, 8388608
    %v95 = vsub.s32 0, %v94
    %v96 = vadd.s32 %v91, 1
    %vm97 = vcmp.gt.s32.totalorder %v96, 0
    %v98 = vsel %vm97, %v96, 0
    %v99 = vshrl.u32 %v98, 5
    %v100 = vand.u32 %v98, 31
    %v101 = vsub.s32 32, %v100
    %v102 = vshrl.u32 683565275, %v101
    %v103 = vshll.u32 683565275, %v100
    %v104 = vshrl.u32 2475754826, %v101
    %v105 = vor.u32 %v103, %v104
    %v106 = vshll.u32 2475754826, %v100
    %v107 = vshrl.u32 2131351028, %v101
    %v108 = vor.u32 %v106, %v107
    %v109 = vshll.u32 2131351028, %v100
    %v110 = vshrl.u32 2102212464, %v101
    %v111 = vor.u32 %v109, %v110
    %v112 = vshll.u32 2102212464, %v100
    %v113 = vshrl.u32 920167782, %v101
    %v114 = vor.u32 %v112, %v113
    %v115 = vshll.u32 920167782, %v100
    %v116 = vshrl.u32 1326507024, %v101
    %v117 = vor.u32 %v115, %v116
    %vm118 = vcmp.lt.s32.totalorder %v99, 1
    %vm119 = vcmp.lt.s32.totalorder %v99, 2
    %vm120 = vcmp.lt.s32.totalorder %v99, 3
    %vm121 = vcmp.lt.s32.totalorder %v99, 4
    %v122 = vsel %vm118, %v102, %v105
    %v123 = vsel %vm121, %v111, 2102212464
    %v124 = vsel %vm120, %v108, %v123
    %v125 = vsel %vm119, %v122, %v124
    %v126 = vsel %vm118, %v105, %v108
    %v127 = vsel %vm121, %v114, 920167782
    %v128 = vsel %vm120, %v111, %v127
    %v129 = vsel %vm119, %v126, %v128
    %v130 = vsel %vm118, %v108, %v111
    %v131 = vsel %vm121, %v117, 1326507024
    %v132 = vsel %vm120, %v114, %v131
    %v133 = vsel %vm119, %v130, %v132
    %v134 = vshll.u32 %v94, 8
    %v135 = vmul.u32.u64.compose %v134, %v133
    %v136 = vextract.low.u32 %v135
    %v137 = vextract.high.u32 %v135
    %v138 = vmul.u32.u64.compose %v134, %v129
    %v139 = vextract.low.u32 %v138
    %v140 = vextract.high.u32 %v138
    %v141 = vmul.u32 %v134, %v125
    %v142 = vadd.s32 %v137, %v139
    %vm143 = vc.u32 %v137, %v139
    %v144 = vadd.s32 %v140, 1
    %v145 = vsel %vm143, %v144, %v140
    %v146 = vadd.s32 %v141, %v145
    %v147 = vadd.s32 %v146, 536870912
    %v148 = vshrl.u32 %v147, 30
    %v149 = vshll.u32 %v148, 30
    %v150 = vsub.s32 %v146, %v149
    %vm151 = vcmp.lt.s32.totalorder %v150, 0
    %v152 = vsub.s32 0, %v150
    %v153 = vsel %vm151, %v152, %v150
    %v154 = vclz %v153
    %v155 = vsub.s32 %v154, 2
    %vm156 = vcmp.gt.s32.totalorder 0, %v155
    %v157 = vsel %vm156, 0, %v155
    %v158 = vsub.s32 32, %v157
    %v159 = vshll.u32 %v150, %v157
    %v160 = vshrl.u32 %v142, %v158
    %v161 = vor.u32 %v159, %v160
    %v162 = vsub.s32 4294967266, %v157
    %v163 = vadd.s32 %v162, 127
    %v164 = vshll.u32 %v163, 23
    %v165 = vor.u32 4788187, %v164
    %v166 = vand.u32 2147483647, %v165
    %v168 = vcvt.s32.f32 %v161
    %v169 = vmul.f32 %v168, %v166
    %v170 = vxor.u32 %v169, 2147483648
    %v171 = vsel %vm88, %v170, %v169
    %v172 = vsub.s32 4, %v148
    %v173 = vsel %vm88, %v172, %v148
    %v174 = vsel %vm87, %v80, %v171
    %v175 = vsel %vm87, 0, %v173
    %v176 = vcosq.f32.pop %v174
    %v177 = vsinq.f32.pop %v174
    %vm178 = vweird.f32 %v80
    %v179 = vand.u32 %v175, 3
    %vm180 = vcmp.lt.s32.totalorder %v179, 2
    %vm181 = vcmp.eq.s32.totalorder %v179, 0
    %v182 = vxor.u32 %v177, 2147483648
    %v183 = vsel %vm181, %v176, %v182
    %vm184 = vcmp.eq.s32.totalorder %v179, 2
    %v185 = vxor.u32 %v176, 2147483648
    %v186 = vsel %vm184, %v185, %v177
    %v187 = vsel %vm180, %v183, %v186
    %v188 = vsel %vm178, nan, %v187
    %v189 = vand.u32 2147483647, %v81
    %vm190 = vcmp.le.f32.partialorder %v189, 0.7853982
    %vm191 = vcmp.lt.s32.totalorder %v81, 0
    %v192 = vand.u32 %v81, 2139095040
    %v193 = vshrl.u32 %v192, 23
    %v194 = vsub.s32 %v193, 127
    %v195 = vand.u32 2147483647, %v81
    %v196 = vand.u32 %v195, 8388607
    %v197 = vor.u32 %v196, 8388608
    %v198 = vsub.s32 0, %v197
    %v199 = vadd.s32 %v194, 1
    %vm200 = vcmp.gt.s32.totalorder %v199, 0
    %v201 = vsel %vm200, %v199, 0
    %v202 = vshrl.u32 %v201, 5
    %v203 = vand.u32 %v201, 31
    %v204 = vsub.s32 32, %v203
    %v205 = vshrl.u32 683565275, %v204
    %v206 = vshll.u32 683565275, %v203
    %v207 = vshrl.u32 2475754826, %v204
    %v208 = vor.u32 %v206, %v207
    %v209 = vshll.u32 2475754826, %v203
    %v210 = vshrl.u32 2131351028, %v204
    %v211 = vor.u32 %v209, %v210
    %v212 = vshll.u32 2131351028, %v203
    %v213 = vshrl.u32 2102212464, %v204
    %v214 = vor.u32 %v212, %v213
    %v215 = vshll.u32 2102212464, %v203
    %v216 = vshrl.u32 920167782, %v204
    %v217 = vor.u32 %v215, %v216
    %v218 = vshll.u32 920167782, %v203
    %v219 = vshrl.u32 1326507024, %v204
    %v220 = vor.u32 %v218, %v219
    %vm221 = vcmp.lt.s32.totalorder %v202, 1
    %vm222 = vcmp.lt.s32.totalorder %v202, 2
    %vm223 = vcmp.lt.s32.totalorder %v202, 3
    %vm224 = vcmp.lt.s32.totalorder %v202, 4
    %v225 = vsel %vm221, %v205, %v208
    %v226 = vsel %vm224, %v214, 2102212464
    %v227 = vsel %vm223, %v211, %v226
    %v228 = vsel %vm222, %v225, %v227
    %v229 = vsel %vm221, %v208, %v211
    %v230 = vsel %vm224, %v217, 920167782
    %v231 = vsel %vm223, %v214, %v230
    %v232 = vsel %vm222, %v229, %v231
    %v233 = vsel %vm221, %v211, %v214
    %v234 = vsel %vm224, %v220, 1326507024
    %v235 = vsel %vm223, %v217, %v234
    %v236 = vsel %vm222, %v233, %v235
    %v237 = vshll.u32 %v197, 8
    %v238 = vmul.u32.u64.compose %v237, %v236
    %v239 = vextract.low.u32 %v238
    %v240 = vextract.high.u32 %v238
    %v241 = vmul.u32.u64.compose %v237, %v232
    %v242 = vextract.low.u32 %v241
    %v243 = vextract.high.u32 %v241
    %v244 = vmul.u32 %v237, %v228
    %v245 = vadd.s32 %v240, %v242
    %vm246 = vc.u32 %v240, %v242
    %v247 = vadd.s32 %v243, 1
    %v248 = vsel %vm246, %v247, %v243
    %v249 = vadd.s32 %v244, %v248
    %v250 = vadd.s32 %v249, 536870912
    %v251 = vshrl.u32 %v250, 30
    %v252 = vshll.u32 %v251, 30
    %v253 = vsub.s32 %v249, %v252
    %vm254 = vcmp.lt.s32.totalorder %v253, 0
    %v255 = vsub.s32 0, %v253
    %v256 = vsel %vm254, %v255, %v253
    %v257 = vclz %v256
    %v258 = vsub.s32 %v257, 2
    %vm259 = vcmp.gt.s32.totalorder 0, %v258
    %v260 = vsel %vm259, 0, %v258
    %v261 = vsub.s32 32, %v260
    %v262 = vshll.u32 %v253, %v260
    %v263 = vshrl.u32 %v245, %v261
    %v264 = vor.u32 %v262, %v263
    %v265 = vsub.s32 4294967266, %v260
    %v266 = vadd.s32 %v265, 127
    %v267 = vshll.u32 %v266, 23
    %v268 = vor.u32 4788187, %v267
    %v269 = vand.u32 2147483647, %v268
    %v271 = vcvt.s32.f32 %v264
    %v272 = vmul.f32 %v271, %v269
    %v273 = vxor.u32 %v272, 2147483648
    %v274 = vsel %vm191, %v273, %v272
    %v275 = vsub.s32 4, %v251
    %v276 = vsel %vm191, %v275, %v251
    %v277 = vsel %vm190, %v81, %v274
    %v278 = vsel %vm190, 0, %v276
    %v279 = vcosq.f32.pop %v277
    %v280 = vsinq.f32.pop %v277
    %vm281 = vweird.f32 %v81
    %v282 = vand.u32 %v278, 3
    %vm283 = vcmp.lt.s32.totalorder %v282, 2
    %vm284 = vcmp.eq.s32.totalorder %v282, 0
    %v285 = vxor.u32 %v280, 2147483648
    %v286 = vsel %vm284, %v279, %v285
    %vm287 = vcmp.eq.s32.totalorder %v282, 2
    %v288 = vxor.u32 %v279, 2147483648
    %v289 = vsel %vm287, %v288, %v280
    %v290 = vsel %vm283, %v286, %v289
    %v291 = vsel %vm281, nan, %v290
    %v292 = vand.u32 2147483647, %v82
    %vm293 = vcmp.le.f32.partialorder %v292, 0.7853982
    %vm294 = vcmp.lt.s32.totalorder %v82, 0
    %v295 = vand.u32 %v82, 2139095040
    %v296 = vshrl.u32 %v295, 23
    %v297 = vsub.s32 %v296, 127
    %v298 = vand.u32 2147483647, %v82
    %v299 = vand.u32 %v298, 8388607
    %v300 = vor.u32 %v299, 8388608
    %v301 = vsub.s32 0, %v300
    %v302 = vadd.s32 %v297, 1
    %vm303 = vcmp.gt.s32.totalorder %v302, 0
    %v304 = vsel %vm303, %v302, 0
    %v305 = vshrl.u32 %v304, 5
    %v306 = vand.u32 %v304, 31
    %v307 = vsub.s32 32, %v306
    %v308 = vshrl.u32 683565275, %v307
    %v309 = vshll.u32 683565275, %v306
    %v310 = vshrl.u32 2475754826, %v307
    %v311 = vor.u32 %v309, %v310
    %v312 = vshll.u32 2475754826, %v306
    %v313 = vshrl.u32 2131351028, %v307
    %v314 = vor.u32 %v312, %v313
    %v315 = vshll.u32 2131351028, %v306
    %v316 = vshrl.u32 2102212464, %v307
    %v317 = vor.u32 %v315, %v316
    %v318 = vshll.u32 2102212464, %v306
    %v319 = vshrl.u32 920167782, %v307
    %v320 = vor.u32 %v318, %v319
    %v321 = vshll.u32 920167782, %v306
    %v322 = vshrl.u32 1326507024, %v307
    %v323 = vor.u32 %v321, %v322
    %vm324 = vcmp.lt.s32.totalorder %v305, 1
    %vm325 = vcmp.lt.s32.totalorder %v305, 2
    %vm326 = vcmp.lt.s32.totalorder %v305, 3
    %vm327 = vcmp.lt.s32.totalorder %v305, 4
    %v328 = vsel %vm324, %v308, %v311
    %v329 = vsel %vm327, %v317, 2102212464
    %v330 = vsel %vm326, %v314, %v329
    %v331 = vsel %vm325, %v328, %v330
    %v332 = vsel %vm324, %v311, %v314
    %v333 = vsel %vm327, %v320, 920167782
    %v334 = vsel %vm326, %v317, %v333
    %v335 = vsel %vm325, %v332, %v334
    %v336 = vsel %vm324, %v314, %v317
    %v337 = vsel %vm327, %v323, 1326507024
    %v338 = vsel %vm326, %v320, %v337
    %v339 = vsel %vm325, %v336, %v338
    %v340 = vshll.u32 %v300, 8
    %v341 = vmul.u32.u64.compose %v340, %v339
    %v342 = vextract.low.u32 %v341
    %v343 = vextract.high.u32 %v341
    %v344 = vmul.u32.u64.compose %v340, %v335
    %v345 = vextract.low.u32 %v344
    %v346 = vextract.high.u32 %v344
    %v347 = vmul.u32 %v340, %v331
    %v348 = vadd.s32 %v343, %v345
    %vm349 = vc.u32 %v343, %v345
    %v350 = vadd.s32 %v346, 1
    %v351 = vsel %vm349, %v350, %v346
    %v352 = vadd.s32 %v347, %v351
    %v353 = vadd.s32 %v352, 536870912
    %v354 = vshrl.u32 %v353, 30
    %v355 = vshll.u32 %v354, 30
    %v356 = vsub.s32 %v352, %v355
    %vm357 = vcmp.lt.s32.totalorder %v356, 0
    %v358 = vsub.s32 0, %v356
    %v359 = vsel %vm357, %v358, %v356
    %v360 = vclz %v359
    %v361 = vsub.s32 %v360, 2
    %vm362 = vcmp.gt.s32.totalorder 0, %v361
    %v363 = vsel %vm362, 0, %v361
    %v364 = vsub.s32 32, %v363
    %v365 = vshll.u32 %v356, %v363
    %v366 = vshrl.u32 %v348, %v364
    %v367 = vor.u32 %v365, %v366
    %v368 = vsub.s32 4294967266, %v363
    %v369 = vadd.s32 %v368, 127
    %v370 = vshll.u32 %v369, 23
    %v371 = vor.u32 4788187, %v370
    %v372 = vand.u32 2147483647, %v371
    %v374 = vcvt.s32.f32 %v367
    %v375 = vmul.f32 %v374, %v372
    %v376 = vxor.u32 %v375, 2147483648
    %v377 = vsel %vm294, %v376, %v375
    %v378 = vsub.s32 4, %v354
    %v379 = vsel %vm294, %v378, %v354
    %v380 = vsel %vm293, %v82, %v377
    %v381 = vsel %vm293, 0, %v379
    %v382 = vcosq.f32.pop %v380
    %v383 = vsinq.f32.pop %v380
    %vm384 = vweird.f32 %v82
    %v385 = vand.u32 %v381, 3
    %vm386 = vcmp.lt.s32.totalorder %v385, 2
    %vm387 = vcmp.eq.s32.totalorder %v385, 0
    %v388 = vxor.u32 %v383, 2147483648
    %v389 = vsel %vm387, %v382, %v388
    %vm390 = vcmp.eq.s32.totalorder %v385, 2
    %v391 = vxor.u32 %v382, 2147483648
    %v392 = vsel %vm390, %v391, %v383
    %v393 = vsel %vm386, %v389, %v392
    %v394 = vsel %vm384, nan, %v393
    %v395 = vand.u32 2147483647, %v83
    %vm396 = vcmp.le.f32.partialorder %v395, 0.7853982
    %vm397 = vcmp.lt.s32.totalorder %v83, 0
    %v398 = vand.u32 %v83, 2139095040
    %v399 = vshrl.u32 %v398, 23
    %v400 = vsub.s32 %v399, 127
    %v401 = vand.u32 2147483647, %v83
    %v402 = vand.u32 %v401, 8388607
    %v403 = vor.u32 %v402, 8388608
    %v404 = vsub.s32 0, %v403
    %v405 = vadd.s32 %v400, 1
    %vm406 = vcmp.gt.s32.totalorder %v405, 0
    %v407 = vsel %vm406, %v405, 0
    %v408 = vshrl.u32 %v407, 5
    %v409 = vand.u32 %v407, 31
    %v410 = vsub.s32 32, %v409
    %v411 = vshrl.u32 683565275, %v410
    %v412 = vshll.u32 683565275, %v409
    %v413 = vshrl.u32 2475754826, %v410
    %v414 = vor.u32 %v412, %v413
    %v415 = vshll.u32 2475754826, %v409
    %v416 = vshrl.u32 2131351028, %v410
    %v417 = vor.u32 %v415, %v416
    %v418 = vshll.u32 2131351028, %v409
    %v419 = vshrl.u32 2102212464, %v410
    %v420 = vor.u32 %v418, %v419
    %v421 = vshll.u32 2102212464, %v409
    %v422 = vshrl.u32 920167782, %v410
    %v423 = vor.u32 %v421, %v422
    %v424 = vshll.u32 920167782, %v409
    %v425 = vshrl.u32 1326507024, %v410
    %v426 = vor.u32 %v424, %v425
    %vm427 = vcmp.lt.s32.totalorder %v408, 1
    %vm428 = vcmp.lt.s32.totalorder %v408, 2
    %vm429 = vcmp.lt.s32.totalorder %v408, 3
    %vm430 = vcmp.lt.s32.totalorder %v408, 4
    %v431 = vsel %vm427, %v411, %v414
    %v432 = vsel %vm430, %v420, 2102212464
    %v433 = vsel %vm429, %v417, %v432
    %v434 = vsel %vm428, %v431, %v433
    %v435 = vsel %vm427, %v414, %v417
    %v436 = vsel %vm430, %v423, 920167782
    %v437 = vsel %vm429, %v420, %v436
    %v438 = vsel %vm428, %v435, %v437
    %v439 = vsel %vm427, %v417, %v420
    %v440 = vsel %vm430, %v426, 1326507024
    %v441 = vsel %vm429, %v423, %v440
    %v442 = vsel %vm428, %v439, %v441
    %v443 = vshll.u32 %v403, 8
    %v444 = vmul.u32.u64.compose %v443, %v442
    %v445 = vextract.low.u32 %v444
    %v446 = vextract.high.u32 %v444
    %v447 = vmul.u32.u64.compose %v443, %v438
    %v448 = vextract.low.u32 %v447
    %v449 = vextract.high.u32 %v447
    %v450 = vmul.u32 %v443, %v434
    %v451 = vadd.s32 %v446, %v448
    %vm452 = vc.u32 %v446, %v448
    %v453 = vadd.s32 %v449, 1
    %v454 = vsel %vm452, %v453, %v449
    %v455 = vadd.s32 %v450, %v454
    %v456 = vadd.s32 %v455, 536870912
    %v457 = vshrl.u32 %v456, 30
    %v458 = vshll.u32 %v457, 30
    %v459 = vsub.s32 %v455, %v458
    %vm460 = vcmp.lt.s32.totalorder %v459, 0
    %v461 = vsub.s32 0, %v459
    %v462 = vsel %vm460, %v461, %v459
    %v463 = vclz %v462
    %v464 = vsub.s32 %v463, 2
    %vm465 = vcmp.gt.s32.totalorder 0, %v464
    %v466 = vsel %vm465, 0, %v464
    %v467 = vsub.s32 32, %v466
    %v468 = vshll.u32 %v459, %v466
    %v469 = vshrl.u32 %v451, %v467
    %v470 = vor.u32 %v468, %v469
    %v471 = vsub.s32 4294967266, %v466
    %v472 = vadd.s32 %v471, 127
    %v473 = vshll.u32 %v472, 23
    %v474 = vor.u32 4788187, %v473
    %v475 = vand.u32 2147483647, %v474
    %v477 = vcvt.s32.f32 %v470
    %v478 = vmul.f32 %v477, %v475
    %v479 = vxor.u32 %v478, 2147483648
    %v480 = vsel %vm397, %v479, %v478
    %v481 = vsub.s32 4, %v457
    %v482 = vsel %vm397, %v481, %v457
    %v483 = vsel %vm396, %v83, %v480
    %v484 = vsel %vm396, 0, %v482
    %v485 = vcosq.f32.pop %v483
    %v486 = vsinq.f32.pop %v483
    %vm487 = vweird.f32 %v83
    %v488 = vand.u32 %v484, 3
    %vm489 = vcmp.lt.s32.totalorder %v488, 2
    %vm490 = vcmp.eq.s32.totalorder %v488, 0
    %v491 = vxor.u32 %v486, 2147483648
    %v492 = vsel %vm490, %v485, %v491
    %vm493 = vcmp.eq.s32.totalorder %v488, 2
    %v494 = vxor.u32 %v485, 2147483648
    %v495 = vsel %vm493, %v494, %v486
    %v496 = vsel %vm489, %v492, %v495
    %v497 = vsel %vm487, nan, %v496
    %v498 = vand.u32 2147483647, %v84
    %vm499 = vcmp.le.f32.partialorder %v498, 0.7853982
    %vm500 = vcmp.lt.s32.totalorder %v84, 0
    %v501 = vand.u32 %v84, 2139095040
    %v502 = vshrl.u32 %v501, 23
    %v503 = vsub.s32 %v502, 127
    %v504 = vand.u32 2147483647, %v84
    %v505 = vand.u32 %v504, 8388607
    %v506 = vor.u32 %v505, 8388608
    %v507 = vsub.s32 0, %v506
    %v508 = vadd.s32 %v503, 1
    %vm509 = vcmp.gt.s32.totalorder %v508, 0
    %v510 = vsel %vm509, %v508, 0
    %v511 = vshrl.u32 %v510, 5
    %v512 = vand.u32 %v510, 31
    %v513 = vsub.s32 32, %v512
    %v514 = vshrl.u32 683565275, %v513
    %v515 = vshll.u32 683565275, %v512
    %v516 = vshrl.u32 2475754826, %v513
    %v517 = vor.u32 %v515, %v516
    %v518 = vshll.u32 2475754826, %v512
    %v519 = vshrl.u32 2131351028, %v513
    %v520 = vor.u32 %v518, %v519
    %v521 = vshll.u32 2131351028, %v512
    %v522 = vshrl.u32 2102212464, %v513
    %v523 = vor.u32 %v521, %v522
    %v524 = vshll.u32 2102212464, %v512
    %v525 = vshrl.u32 920167782, %v513
    %v526 = vor.u32 %v524, %v525
    %v527 = vshll.u32 920167782, %v512
    %v528 = vshrl.u32 1326507024, %v513
    %v529 = vor.u32 %v527, %v528
    %vm530 = vcmp.lt.s32.totalorder %v511, 1
    %vm531 = vcmp.lt.s32.totalorder %v511, 2
    %vm532 = vcmp.lt.s32.totalorder %v511, 3
    %vm533 = vcmp.lt.s32.totalorder %v511, 4
    %v534 = vsel %vm530, %v514, %v517
    %v535 = vsel %vm533, %v523, 2102212464
    %v536 = vsel %vm532, %v520, %v535
    %v537 = vsel %vm531, %v534, %v536
    %v538 = vsel %vm530, %v517, %v520
    %v539 = vsel %vm533, %v526, 920167782
    %v540 = vsel %vm532, %v523, %v539
    %v541 = vsel %vm531, %v538, %v540
    %v542 = vsel %vm530, %v520, %v523
    %v543 = vsel %vm533, %v529, 1326507024
    %v544 = vsel %vm532, %v526, %v543
    %v545 = vsel %vm531, %v542, %v544
    %v546 = vshll.u32 %v506, 8
    %v547 = vmul.u32.u64.compose %v546, %v545
    %v548 = vextract.low.u32 %v547
    %v549 = vextract.high.u32 %v547
    %v550 = vmul.u32.u64.compose %v546, %v541
    %v551 = vextract.low.u32 %v550
    %v552 = vextract.high.u32 %v550
    %v553 = vmul.u32 %v546, %v537
    %v554 = vadd.s32 %v549, %v551
    %vm555 = vc.u32 %v549, %v551
    %v556 = vadd.s32 %v552, 1
    %v557 = vsel %vm555, %v556, %v552
    %v558 = vadd.s32 %v553, %v557
    %v559 = vadd.s32 %v558, 536870912
    %v560 = vshrl.u32 %v559, 30
    %v561 = vshll.u32 %v560, 30
    %v562 = vsub.s32 %v558, %v561
    %vm563 = vcmp.lt.s32.totalorder %v562, 0
    %v564 = vsub.s32 0, %v562
    %v565 = vsel %vm563, %v564, %v562
    %v566 = vclz %v565
    %v567 = vsub.s32 %v566, 2
    %vm568 = vcmp.gt.s32.totalorder 0, %v567
    %v569 = vsel %vm568, 0, %v567
    %v570 = vsub.s32 32, %v569
    %v571 = vshll.u32 %v562, %v569
    %v572 = vshrl.u32 %v554, %v570
    %v573 = vor.u32 %v571, %v572
    %v574 = vsub.s32 4294967266, %v569
    %v575 = vadd.s32 %v574, 127
    %v576 = vshll.u32 %v575, 23
    %v577 = vor.u32 4788187, %v576
    %v578 = vand.u32 2147483647, %v577
    %v580 = vcvt.s32.f32 %v573
    %v581 = vmul.f32 %v580, %v578
    %v582 = vxor.u32 %v581, 2147483648
    %v583 = vsel %vm500, %v582, %v581
    %v584 = vsub.s32 4, %v560
    %v585 = vsel %vm500, %v584, %v560
    %v586 = vsel %vm499, %v84, %v583
    %v587 = vsel %vm499, 0, %v585
    %v588 = vcosq.f32.pop %v586
    %v589 = vsinq.f32.pop %v586
    %vm590 = vweird.f32 %v84
    %v591 = vand.u32 %v587, 3
    %vm592 = vcmp.lt.s32.totalorder %v591, 2
    %vm593 = vcmp.eq.s32.totalorder %v591, 0
    %v594 = vxor.u32 %v589, 2147483648
    %v595 = vsel %vm593, %v588, %v594
    %vm596 = vcmp.eq.s32.totalorder %v591, 2
    %v597 = vxor.u32 %v588, 2147483648
    %v598 = vsel %vm596, %v597, %v589
    %v599 = vsel %vm592, %v595, %v598
    %v600 = vsel %vm590, nan, %v599
    %v601 = vand.u32 2147483647, %v85
    %vm602 = vcmp.le.f32.partialorder %v601, 0.7853982
    %vm603 = vcmp.lt.s32.totalorder %v85, 0
    %v604 = vand.u32 %v85, 2139095040
    %v605 = vshrl.u32 %v604, 23
    %v606 = vsub.s32 %v605, 127
    %v607 = vand.u32 2147483647, %v85
    %v608 = vand.u32 %v607, 8388607
    %v609 = vor.u32 %v608, 8388608
    %v610 = vsub.s32 0, %v609
    %v611 = vadd.s32 %v606, 1
    %vm612 = vcmp.gt.s32.totalorder %v611, 0
    %v613 = vsel %vm612, %v611, 0
    %v614 = vshrl.u32 %v613, 5
    %v615 = vand.u32 %v613, 31
    %v616 = vsub.s32 32, %v615
    %v617 = vshrl.u32 683565275, %v616
    %v618 = vshll.u32 683565275, %v615
    %v619 = vshrl.u32 2475754826, %v616
    %v620 = vor.u32 %v618, %v619
    %v621 = vshll.u32 2475754826, %v615
    %v622 = vshrl.u32 2131351028, %v616
    %v623 = vor.u32 %v621, %v622
    %v624 = vshll.u32 2131351028, %v615
    %v625 = vshrl.u32 2102212464, %v616
    %v626 = vor.u32 %v624, %v625
    %v627 = vshll.u32 2102212464, %v615
    %v628 = vshrl.u32 920167782, %v616
    %v629 = vor.u32 %v627, %v628
    %v630 = vshll.u32 920167782, %v615
    %v631 = vshrl.u32 1326507024, %v616
    %v632 = vor.u32 %v630, %v631
    %vm633 = vcmp.lt.s32.totalorder %v614, 1
    %vm634 = vcmp.lt.s32.totalorder %v614, 2
    %vm635 = vcmp.lt.s32.totalorder %v614, 3
    %vm636 = vcmp.lt.s32.totalorder %v614, 4
    %v637 = vsel %vm633, %v617, %v620
    %v638 = vsel %vm636, %v626, 2102212464
    %v639 = vsel %vm635, %v623, %v638
    %v640 = vsel %vm634, %v637, %v639
    %v641 = vsel %vm633, %v620, %v623
    %v642 = vsel %vm636, %v629, 920167782
    %v643 = vsel %vm635, %v626, %v642
    %v644 = vsel %vm634, %v641, %v643
    %v645 = vsel %vm633, %v623, %v626
    %v646 = vsel %vm636, %v632, 1326507024
    %v647 = vsel %vm635, %v629, %v646
    %v648 = vsel %vm634, %v645, %v647
    %v649 = vshll.u32 %v609, 8
    %v650 = vmul.u32.u64.compose %v649, %v648
    %v651 = vextract.low.u32 %v650
    %v652 = vextract.high.u32 %v650
    %v653 = vmul.u32.u64.compose %v649, %v644
    %v654 = vextract.low.u32 %v653
    %v655 = vextract.high.u32 %v653
    %v656 = vmul.u32 %v649, %v640
    %v657 = vadd.s32 %v652, %v654
    %vm658 = vc.u32 %v652, %v654
    %v659 = vadd.s32 %v655, 1
    %v660 = vsel %vm658, %v659, %v655
    %v661 = vadd.s32 %v656, %v660
    %v662 = vadd.s32 %v661, 536870912
    %v663 = vshrl.u32 %v662, 30
    %v664 = vshll.u32 %v663, 30
    %v665 = vsub.s32 %v661, %v664
    %vm666 = vcmp.lt.s32.totalorder %v665, 0
    %v667 = vsub.s32 0, %v665
    %v668 = vsel %vm666, %v667, %v665
    %v669 = vclz %v668
    %v670 = vsub.s32 %v669, 2
    %vm671 = vcmp.gt.s32.totalorder 0, %v670
    %v672 = vsel %vm671, 0, %v670
    %v673 = vsub.s32 32, %v672
    %v674 = vshll.u32 %v665, %v672
    %v675 = vshrl.u32 %v657, %v673
    %v676 = vor.u32 %v674, %v675
    %v677 = vsub.s32 4294967266, %v672
    %v678 = vadd.s32 %v677, 127
    %v679 = vshll.u32 %v678, 23
    %v680 = vor.u32 4788187, %v679
    %v681 = vand.u32 2147483647, %v680
    %v683 = vcvt.s32.f32 %v676
    %v684 = vmul.f32 %v683, %v681
    %v685 = vxor.u32 %v684, 2147483648
    %v686 = vsel %vm603, %v685, %v684
    %v687 = vsub.s32 4, %v663
    %v688 = vsel %vm603, %v687, %v663
    %v689 = vsel %vm602, %v85, %v686
    %v690 = vsel %vm602, 0, %v688
    %v691 = vcosq.f32.pop %v689
    %v692 = vsinq.f32.pop %v689
    %vm693 = vweird.f32 %v85
    %v694 = vand.u32 %v690, 3
    %vm695 = vcmp.lt.s32.totalorder %v694, 2
    %vm696 = vcmp.eq.s32.totalorder %v694, 0
    %v697 = vxor.u32 %v692, 2147483648
    %v698 = vsel %vm696, %v691, %v697
    %vm699 = vcmp.eq.s32.totalorder %v694, 2
    %v700 = vxor.u32 %v691, 2147483648
    %v701 = vsel %vm699, %v700, %v692
    %v702 = vsel %vm695, %v698, %v701
    %v703 = vsel %vm693, nan, %v702
    %v704 = vld [vmem:[#allocation2 + $0x8] sm:$0xff]
    %v705 = vld [vmem:[#allocation2 + $0x10] sm:$0xff]
    %v706 = vld [vmem:[#allocation2 + $0x18] sm:$0xff]
    %v707 = vld [vmem:[#allocation2 + $0x20] sm:$0xff]
    %vm708 = vcmask 130048
    %v710 = vsel %vm708, %v188, 0
    %v713 = vsel %vm708, %v291, 0
    %v716 = vsel %vm708, %v394, 0
    %v719 = vsel %vm708, %v497, 0
    %v722 = vsel %vm708, %v600, 0
    %v725 = vsel %vm708, %v703, 0
    %727 = vmatprep.subr.mxu0 0.0
    %728 = vmatpush1.msra.mxu0 %v706
    %729 = vmatprep.subr.mxu0 0.0
    %730 = vmatpush1.msra.mxu0 %v707
    %731 = vmatprep.subr.mxu0 0.0
    %732 = vmatpush1.msra.mxu0 0.0
    %733 = vmatprep.subr.mxu0 0.0
    %734 = vmatpush1.msra.mxu0 0.0
    %735 = vmatprep.subr.mxu0 0.0
    %736 = vmatpush1.msra.mxu0 0.0
    %737 = vmatprep.subr.mxu0 0.0
    %738 = vmatpush1.msra.mxu0 0.0
    %739 = vmatprep.subr.mxu0 0.0
    %740 = vmatpush1.msra.mxu0 0.0
    %741 = vmatprep.subr.mxu0 0.0
    %742 = vmatpush1.msra.mxu0 0.0
    %743 = vmatprep.subr.mxu0 0.0
    %744 = vmatpush1.msra.mxu0 0.0
    %745 = vmatprep.subr.mxu0 0.0
    %746 = vmatpush1.msra.mxu0 0.0
    %747 = vmatprep.subr.mxu0 0.0
    %748 = vmatpush1.msra.mxu0 0.0
    %749 = vmatprep.subr.mxu0 0.0
    %750 = vmatpush1.msra.mxu0 0.0
    %751 = vmatprep.subr.mxu0 0.0
    %752 = vmatpush1.msra.mxu0 0.0
    %753 = vmatprep.subr.mxu0 0.0
    %754 = vmatpush1.msra.mxu0 0.0
    %755 = vmatprep.subr.mxu0 0.0
    %756 = vmatpush1.msra.mxu0 0.0
    %757 = vmatprep.subr.mxu0 0.0
    %758 = vmatpush1.msra.mxu0 0.0
    %759 = vmatprep.subr.mxu0 0.0
    %760 = vmatpush1.msra.mxu0 0.0
    %761 = vmatprep.subr.mxu0 0.0
    %762 = vmatpush1.msra.mxu0 0.0
    %763 = vmatprep.subr.mxu0 0.0
    %764 = vmatpush1.msra.mxu0 0.0
    %765 = vmatprep.subr.mxu0 0.0
    %766 = vmatpush1.msra.mxu0 0.0
    %767 = vmatprep.subr.mxu0 0.0
    %768 = vmatpush1.msra.mxu0 0.0
    %769 = vmatprep.subr.mxu0 0.0
    %770 = vmatpush1.msra.mxu0 0.0
    %771 = vmatprep.subr.mxu0 0.0
    %772 = vmatpush1.msra.mxu0 0.0
    %773 = vmatprep.subr.mxu0 0.0
    %774 = vmatpush1.msra.mxu0 0.0
    %775 = vmatprep.subr.mxu0 0.0
    %776 = vmatpush1.msra.mxu0 0.0
    %777 = vmatprep.subr.mxu0 0.0
    %778 = vmatpush1.msra.mxu0 0.0
    %779 = vmatprep.subr.mxu0 0.0
    %780 = vmatpush1.msra.mxu0 0.0
    %781 = vmatprep.subr.mxu0 0.0
    %782 = vmatpush1.msra.mxu0 0.0
    %783 = vmatprep.subr.mxu0 0.0
    %784 = vmatpush1.msra.mxu0 0.0
    %785 = vmatprep.subr.mxu0 0.0
    %786 = vmatpush1.msra.mxu0 0.0
    %787 = vmatprep.subr.mxu0 0.0
    %788 = vmatpush1.msra.mxu0 0.0
    %789 = vmatprep.subr.mxu0 0.0
    %790 = vmatpush1.msra.mxu0 0.0
    %791 = vmatprep.mubr.f32.mxu0 0.0
    %792 = vmatmul.mubr.f32.gmra.mrb[0].mxu0 %v710
    %v793 = vpop.f32.mrb[0].mxu0
    %v794 = vadd.f32 0.0, %v793
    %v795 = vpop.f32.mrb[0].mxu0
    %796 = vmatprep.mubr.f32.mxu0 0.0
    %797 = vmatmul.mubr.f32.gmra.mrb[0].mxu0 %v713
    %v798 = vpop.f32.mrb[0].mxu0
    %v799 = vadd.f32 0.0, %v798
    %v800 = vpop.f32.mrb[0].mxu0
    %801 = vmatprep.mubr.f32.mxu0 0.0
    %802 = vmatmul.mubr.f32.gmra.mrb[0].mxu0 %v716
    %v803 = vpop.f32.mrb[0].mxu0
    %v804 = vadd.f32 0.0, %v803
    %v805 = vpop.f32.mrb[0].mxu0
    %806 = vmatprep.mubr.f32.mxu0 0.0
    %807 = vmatmul.mubr.f32.gmra.mrb[0].mxu0 %v719
    %v808 = vpop.f32.mrb[0].mxu0
    %v809 = vadd.f32 0.0, %v808
    %v810 = vpop.f32.mrb[0].mxu0
    %811 = vmatprep.mubr.f32.mxu0 0.0
    %812 = vmatmul.mubr.f32.gmra.mrb[0].mxu0 %v722
    %v813 = vpop.f32.mrb[0].mxu0
    %v814 = vadd.f32 0.0, %v813
    %v815 = vpop.f32.mrb[0].mxu0
    %816 = vmatprep.mubr.f32.mxu0 0.0
    %817 = vmatmul.mubr.f32.gmra.mrb[0].mxu0 %v725
    %v818 = vpop.f32.mrb[0].mxu0
    %v819 = vadd.f32 0.0, %v818
    %v820 = vpop.f32.mrb[0].mxu0
    %821 = vdwg.mxu0
    %v822 = vsel %vm708, %v28, 0
    %v824 = vsel %vm708, %v29, 0
    %v826 = vsel %vm708, %v30, 0
    %v828 = vsel %vm708, %v31, 0
    %v830 = vsel %vm708, %v32, 0
    %v832 = vsel %vm708, %v33, 0
    %834 = vmatprep.subr.mxu0 0.0
    %835 = vmatpush1.msra.mxu0 %v704
    %836 = vmatprep.subr.mxu0 0.0
    %837 = vmatpush1.msra.mxu0 %v705
    %838 = vmatprep.subr.mxu0 0.0
    %839 = vmatpush1.msra.mxu0 0.0
    %840 = vmatprep.subr.mxu0 0.0
    %841 = vmatpush1.msra.mxu0 0.0
    %842 = vmatprep.subr.mxu0 0.0
    %843 = vmatpush1.msra.mxu0 0.0
    %844 = vmatprep.subr.mxu0 0.0
    %845 = vmatpush1.msra.mxu0 0.0
    %846 = vmatprep.subr.mxu0 0.0
    %847 = vmatpush1.msra.mxu0 0.0
    %848 = vmatprep.subr.mxu0 0.0
    %849 = vmatpush1.msra.mxu0 0.0
    %850 = vmatprep.subr.mxu0 0.0
    %851 = vmatpush1.msra.mxu0 0.0
    %852 = vmatprep.subr.mxu0 0.0
    %853 = vmatpush1.msra.mxu0 0.0
    %854 = vmatprep.subr.mxu0 0.0
    %855 = vmatpush1.msra.mxu0 0.0
    %856 = vmatprep.subr.mxu0 0.0
    %857 = vmatpush1.msra.mxu0 0.0
    %858 = vmatprep.subr.mxu0 0.0
    %859 = vmatpush1.msra.mxu0 0.0
    %860 = vmatprep.subr.mxu0 0.0
    %861 = vmatpush1.msra.mxu0 0.0
    %862 = vmatprep.subr.mxu0 0.0
    %863 = vmatpush1.msra.mxu0 0.0
    %864 = vmatprep.subr.mxu0 0.0
    %865 = vmatpush1.msra.mxu0 0.0
    %866 = vmatprep.subr.mxu0 0.0
    %867 = vmatpush1.msra.mxu0 0.0
    %868 = vmatprep.subr.mxu0 0.0
    %869 = vmatpush1.msra.mxu0 0.0
    %870 = vmatprep.subr.mxu0 0.0
    %871 = vmatpush1.msra.mxu0 0.0
    %872 = vmatprep.subr.mxu0 0.0
    %873 = vmatpush1.msra.mxu0 0.0
    %874 = vmatprep.subr.mxu0 0.0
    %875 = vmatpush1.msra.mxu0 0.0
    %876 = vmatprep.subr.mxu0 0.0
    %877 = vmatpush1.msra.mxu0 0.0
    %878 = vmatprep.subr.mxu0 0.0
    %879 = vmatpush1.msra.mxu0 0.0
    %880 = vmatprep.subr.mxu0 0.0
    %881 = vmatpush1.msra.mxu0 0.0
    %882 = vmatprep.subr.mxu0 0.0
    %883 = vmatpush1.msra.mxu0 0.0
    %884 = vmatprep.subr.mxu0 0.0
    %885 = vmatpush1.msra.mxu0 0.0
    %886 = vmatprep.subr.mxu0 0.0
    %887 = vmatpush1.msra.mxu0 0.0
    %888 = vmatprep.subr.mxu0 0.0
    %889 = vmatpush1.msra.mxu0 0.0
    %890 = vmatprep.subr.mxu0 0.0
    %891 = vmatpush1.msra.mxu0 0.0
    %892 = vmatprep.subr.mxu0 0.0
    %893 = vmatpush1.msra.mxu0 0.0
    %894 = vmatprep.subr.mxu0 0.0
    %895 = vmatpush1.msra.mxu0 0.0
    %896 = vmatprep.subr.mxu0 0.0
    %897 = vmatpush1.msra.mxu0 0.0
    %898 = vmatprep.mubr.f32.mxu0 0.0
    %899 = vmatmul.mubr.f32.gmra.mrb[0].mxu0 %v822
    %v900 = vpop.f32.mrb[0].mxu0
    %v901 = vadd.f32 %v794, %v900
    %v902 = vpop.f32.mrb[0].mxu0
    %903 = vmatprep.mubr.f32.mxu0 0.0
    %904 = vmatmul.mubr.f32.gmra.mrb[0].mxu0 %v824
    %v905 = vpop.f32.mrb[0].mxu0
    %v906 = vadd.f32 %v799, %v905
    %v907 = vpop.f32.mrb[0].mxu0
    %908 = vmatprep.mubr.f32.mxu0 0.0
    %909 = vmatmul.mubr.f32.gmra.mrb[0].mxu0 %v826
    %v910 = vpop.f32.mrb[0].mxu0
    %v911 = vadd.f32 %v804, %v910
    %v912 = vpop.f32.mrb[0].mxu0
    %913 = vmatprep.mubr.f32.mxu0 0.0
    %914 = vmatmul.mubr.f32.gmra.mrb[0].mxu0 %v828
    %v915 = vpop.f32.mrb[0].mxu0
    %v916 = vadd.f32 %v809, %v915
    %v917 = vpop.f32.mrb[0].mxu0
    %918 = vmatprep.mubr.f32.mxu0 0.0
    %919 = vmatmul.mubr.f32.gmra.mrb[0].mxu0 %v830
    %v920 = vpop.f32.mrb[0].mxu0
    %v921 = vadd.f32 %v814, %v920
    %v922 = vpop.f32.mrb[0].mxu0
    %923 = vmatprep.mubr.f32.mxu0 0.0
    %924 = vmatmul.mubr.f32.gmra.mrb[0].mxu0 %v832
    %v925 = vpop.f32.mrb[0].mxu0
    %v926 = vadd.f32 %v819, %v925
    %v927 = vpop.f32.mrb[0].mxu0
    %928 = vdwg.mxu0
    %v929 = vld [vmem:[#allocation2 + $0x28] sm:$0x1]
    %v930 = vlaneseq
    %v931 = vshrl.u32 %v930, 7
    %v932 = vsub.s32 0, %v931
    %v933 = vrot.slane %v929, %v932
    %v934 = vadd.f32 %v901, %v933
    %v935 = vadd.f32 %v906, %v933
    %v936 = vadd.f32 %v911, %v933
    %v937 = vadd.f32 %v916, %v933
    %v938 = vadd.f32 %v921, %v933
    %v939 = vadd.f32 %v926, %v933
    %v940 = vlaneseq
    %v941 = vshrl.u32 %v940, 7
    %v942 = vadd.s32 %v941, 8
    %v943 = vadd.s32 %v941, 16
    %v944 = vadd.s32 %v941, 24
    %v945 = vadd.s32 %v941, 32
    %v946 = vadd.s32 %v941, 40
    %v947 = vadd.s32 %v941, 48
    %v948 = vadd.s32 %v941, 56
    %v949 = vadd.s32 %v941, 64
    %v950 = vadd.s32 %v941, 72
    %v951 = vadd.s32 %v941, 80
    %v952 = vadd.s32 %v941, 88
    %v953 = vld [vmem:[%s0] sm:$0x1]
    %v954 = vlaneseq
    %v955 = vshrl.u32 %v954, 7
    %v956 = vsub.s32 0, %v955
    %v957 = vrot.slane %v953, %v956
    %vm958 = vcmp.eq.s32.totalorder %v941, %v957
    %vm959 = vcmp.eq.s32.totalorder %v942, %v957
    %vm960 = vcmp.eq.s32.totalorder %v943, %v957
    %vm961 = vcmp.eq.s32.totalorder %v944, %v957
    %vm962 = vcmp.eq.s32.totalorder %v945, %v957
    %vm963 = vcmp.eq.s32.totalorder %v946, %v957
    %vm964 = vcmp.eq.s32.totalorder %v947, %v957
    %vm965 = vcmp.eq.s32.totalorder %v948, %v957
    %vm966 = vcmp.eq.s32.totalorder %v949, %v957
    %vm967 = vcmp.eq.s32.totalorder %v950, %v957
    %vm968 = vcmp.eq.s32.totalorder %v951, %v957
    %vm969 = vcmp.eq.s32.totalorder %v952, %v957
    %v970 = vsel %vm958, 1, 0
    %v971 = vsel %vm959, 1, 0
    %v972 = vsel %vm960, 1, 0
    %v973 = vsel %vm961, 1, 0
    %v974 = vsel %vm962, 1, 0
    %v975 = vsel %vm963, 1, 0
    %v976 = vsel %vm964, 1, 0
    %v977 = vsel %vm965, 1, 0
    %v978 = vsel %vm966, 1, 0
    %v979 = vsel %vm967, 1, 0
    %v980 = vsel %vm968, 1, 0
    %v981 = vsel %vm969, 1, 0
    %v982 = vcvt.s32.f32 %v970
    %v983 = vcvt.s32.f32 %v971
    %v984 = vcvt.s32.f32 %v972
    %v985 = vcvt.s32.f32 %v973
    %v986 = vcvt.s32.f32 %v974
    %v987 = vcvt.s32.f32 %v975
    %v988 = vcvt.s32.f32 %v976
    %v989 = vcvt.s32.f32 %v977
    %v990 = vcvt.s32.f32 %v978
    %v991 = vcvt.s32.f32 %v979
    %v992 = vcvt.s32.f32 %v980
    %v993 = vcvt.s32.f32 %v981
    %vm994 = vcmask 392192
    %v996 = vsel %vm994, %v982, 0
    %v999 = vsel %vm994, %v983, 0
    %v1002 = vsel %vm994, %v984, 0
    %v1005 = vsel %vm994, %v985, 0
    %v1008 = vsel %vm994, %v986, 0
    %v1011 = vsel %vm994, %v987, 0
    %v1014 = vsel %vm994, %v988, 0
    %v1017 = vsel %vm994, %v989, 0
    %v1020 = vsel %vm994, %v990, 0
    %v1023 = vsel %vm994, %v991, 0
    %v1026 = vsel %vm994, %v992, 0
    %v1029 = vsel %vm994, %v993, 0
    %1031 = vmatprep.subr.mxu0 0.0
    %1032 = vmatpush1.msra.mxu0 %v934
    %1033 = vmatprep.subr.mxu0 0.0
    %1034 = vmatpush1.msra.mxu0 %v935
    %1035 = vmatprep.subr.mxu0 0.0
    %1036 = vmatpush1.msra.mxu0 %v936
    %1037 = vmatprep.subr.mxu0 0.0
    %1038 = vmatpush1.msra.mxu0 %v937
    %1039 = vmatprep.subr.mxu0 0.0
    %1040 = vmatpush1.msra.mxu0 %v938
    %1041 = vmatprep.subr.mxu0 0.0
    %1042 = vmatpush1.msra.mxu0 %v939
    %1043 = vmatprep.subr.mxu0 0.0
    %1044 = vmatpush1.msra.mxu0 0.0
    %1045 = vmatprep.subr.mxu0 0.0
    %1046 = vmatpush1.msra.mxu0 0.0
    %1047 = vmatprep.subr.mxu0 0.0
    %1048 = vmatpush1.msra.mxu0 0.0
    %1049 = vmatprep.subr.mxu0 0.0
    %1050 = vmatpush1.msra.mxu0 0.0
    %1051 = vmatprep.subr.mxu0 0.0
    %1052 = vmatpush1.msra.mxu0 0.0
    %1053 = vmatprep.subr.mxu0 0.0
    %1054 = vmatpush1.msra.mxu0 0.0
    %1055 = vmatprep.subr.mxu0 0.0
    %1056 = vmatpush1.msra.mxu0 0.0
    %1057 = vmatprep.subr.mxu0 0.0
    %1058 = vmatpush1.msra.mxu0 0.0
    %1059 = vmatprep.subr.mxu0 0.0
    %1060 = vmatpush1.msra.mxu0 0.0
    %1061 = vmatprep.subr.mxu0 0.0
    %1062 = vmatpush1.msra.mxu0 0.0
    %1063 = vmatprep.subr.mxu0 0.0
    %1064 = vmatpush1.msra.mxu0 0.0
    %1065 = vmatprep.subr.mxu0 0.0
    %1066 = vmatpush1.msra.mxu0 0.0
    %1067 = vmatprep.subr.mxu0 0.0
    %1068 = vmatpush1.msra.mxu0 0.0
    %1069 = vmatprep.subr.mxu0 0.0
    %1070 = vmatpush1.msra.mxu0 0.0
    %1071 = vmatprep.subr.mxu0 0.0
    %1072 = vmatpush1.msra.mxu0 0.0
    %1073 = vmatprep.subr.mxu0 0.0
    %1074 = vmatpush1.msra.mxu0 0.0
    %1075 = vmatprep.subr.mxu0 0.0
    %1076 = vmatpush1.msra.mxu0 0.0
    %1077 = vmatprep.subr.mxu0 0.0
    %1078 = vmatpush1.msra.mxu0 0.0
    %1079 = vmatprep.subr.mxu0 0.0
    %1080 = vmatpush1.msra.mxu0 0.0
    %1081 = vmatprep.subr.mxu0 0.0
    %1082 = vmatpush1.msra.mxu0 0.0
    %1083 = vmatprep.subr.mxu0 0.0
    %1084 = vmatpush1.msra.mxu0 0.0
    %1085 = vmatprep.subr.mxu0 0.0
    %1086 = vmatpush1.msra.mxu0 0.0
    %1087 = vmatprep.subr.mxu0 0.0
    %1088 = vmatpush1.msra.mxu0 0.0
    %1089 = vmatprep.subr.mxu0 0.0
    %1090 = vmatpush1.msra.mxu0 0.0
    %1091 = vmatprep.subr.mxu0 0.0
    %1092 = vmatpush1.msra.mxu0 0.0
    %1093 = vmatprep.subr.mxu0 0.0
    %1094 = vmatpush1.msra.mxu0 0.0
    %1095 = vmatprep.mubr.f32.mxu0 0.0
    %1096 = vmatmul.mubr.f32.gmra.mrb[0].mxu0 %v996
    %v1097 = vpop.f32.mrb[0].mxu0
    %v1098 = vadd.f32 0.0, %v1097
    %v1099 = vpop.f32.mrb[0].mxu0
    %1100 = vmatprep.mubr.f32.mxu0 0.0
    %1101 = vmatmul.mubr.f32.gmra.mrb[0].mxu0 %v999
    %v1102 = vpop.f32.mrb[0].mxu0
    %v1103 = vadd.f32 0.0, %v1102
    %v1104 = vpop.f32.mrb[0].mxu0
    %1105 = vmatprep.mubr.f32.mxu0 0.0
    %1106 = vmatmul.mubr.f32.gmra.mrb[0].mxu0 %v1002
    %v1107 = vpop.f32.mrb[0].mxu0
    %v1108 = vadd.f32 0.0, %v1107
    %v1109 = vpop.f32.mrb[0].mxu0
    %1110 = vmatprep.mubr.f32.mxu0 0.0
    %1111 = vmatmul.mubr.f32.gmra.mrb[0].mxu0 %v1005
    %v1112 = vpop.f32.mrb[0].mxu0
    %v1113 = vadd.f32 0.0, %v1112
    %v1114 = vpop.f32.mrb[0].mxu0
    %1115 = vmatprep.mubr.f32.mxu0 0.0
    %1116 = vmatmul.mubr.f32.gmra.mrb[0].mxu0 %v1008
    %v1117 = vpop.f32.mrb[0].mxu0
    %v1118 = vadd.f32 0.0, %v1117
    %v1119 = vpop.f32.mrb[0].mxu0
    %1120 = vmatprep.mubr.f32.mxu0 0.0
    %1121 = vmatmul.mubr.f32.gmra.mrb[0].mxu0 %v1011
    %v1122 = vpop.f32.mrb[0].mxu0
    %v1123 = vadd.f32 0.0, %v1122
    %v1124 = vpop.f32.mrb[0].mxu0
    %1125 = vmatprep.mubr.f32.mxu0 0.0
    %1126 = vmatmul.mubr.f32.gmra.mrb[0].mxu0 %v1014
    %v1127 = vpop.f32.mrb[0].mxu0
    %v1128 = vadd.f32 0.0, %v1127
    %v1129 = vpop.f32.mrb[0].mxu0
    %1130 = vmatprep.mubr.f32.mxu0 0.0
    %1131 = vmatmul.mubr.f32.gmra.mrb[0].mxu0 %v1017
    %v1132 = vpop.f32.mrb[0].mxu0
    %v1133 = vadd.f32 0.0, %v1132
    %v1134 = vpop.f32.mrb[0].mxu0
    %1135 = vmatprep.mubr.f32.mxu0 0.0
    %1136 = vmatmul.mubr.f32.gmra.mrb[0].mxu0 %v1020
    %v1137 = vpop.f32.mrb[0].mxu0
    %v1138 = vadd.f32 0.0, %v1137
    %v1139 = vpop.f32.mrb[0].mxu0
    %1140 = vmatprep.mubr.f32.mxu0 0.0
    %1141 = vmatmul.mubr.f32.gmra.mrb[0].mxu0 %v1023
    %v1142 = vpop.f32.mrb[0].mxu0
    %v1143 = vadd.f32 0.0, %v1142
    %v1144 = vpop.f32.mrb[0].mxu0
    %1145 = vmatprep.mubr.f32.mxu0 0.0
    %1146 = vmatmul.mubr.f32.gmra.mrb[0].mxu0 %v1026
    %v1147 = vpop.f32.mrb[0].mxu0
    %v1148 = vadd.f32 0.0, %v1147
    %v1149 = vpop.f32.mrb[0].mxu0
    %1150 = vmatprep.mubr.f32.mxu0 0.0
    %1151 = vmatmul.mubr.f32.gmra.mrb[0].mxu0 %v1029
    %v1152 = vpop.f32.mrb[0].mxu0
    %v1153 = vadd.f32 0.0, %v1152
    %v1154 = vpop.f32.mrb[0].mxu0
    %1155 = vdwg.mxu0
    %v1156 = vld [vmem:[#allocation2 + $0x30] sm:$0x1]
    %v1157 = vld [vmem:[#allocation2 + $0x31] sm:$0x1]
    %vm1158 = vcmask 261120
    %v1159 = vsel %vm1158, %v1098, 0.0
    %1160 = vadd.xlane.f32.xlu0 %v1159
    %v1161 = vpop.xlane.xlu0 %1160
    %v1162 = vsel %vm1158, %v1103, 0.0
    %1163 = vadd.xlane.f32.xlu0 %v1162
    %v1164 = vpop.xlane.xlu0 %1163
    %v1165 = vsel %vm1158, %v1108, 0.0
    %1166 = vadd.xlane.f32.xlu0 %v1165
    %v1167 = vpop.xlane.xlu0 %1166
    %v1168 = vsel %vm1158, %v1113, 0.0
    %1169 = vadd.xlane.f32.xlu0 %v1168
    %v1170 = vpop.xlane.xlu0 %1169
    %v1171 = vsel %vm1158, %v1118, 0.0
    %1172 = vadd.xlane.f32.xlu0 %v1171
    %v1173 = vpop.xlane.xlu0 %1172
    %v1174 = vsel %vm1158, %v1123, 0.0
    %1175 = vadd.xlane.f32.xlu0 %v1174
    %v1176 = vpop.xlane.xlu0 %1175
    %v1177 = vsel %vm1158, %v1128, 0.0
    %1178 = vadd.xlane.f32.xlu0 %v1177
    %v1179 = vpop.xlane.xlu0 %1178
    %v1180 = vsel %vm1158, %v1133, 0.0
    %1181 = vadd.xlane.f32.xlu0 %v1180
    %v1182 = vpop.xlane.xlu0 %1181
    %v1183 = vsel %vm1158, %v1138, 0.0
    %1184 = vadd.xlane.f32.xlu0 %v1183
    %v1185 = vpop.xlane.xlu0 %1184
    %v1186 = vsel %vm1158, %v1143, 0.0
    %1187 = vadd.xlane.f32.xlu0 %v1186
    %v1188 = vpop.xlane.xlu0 %1187
    %v1189 = vsel %vm1158, %v1148, 0.0
    %1190 = vadd.xlane.f32.xlu0 %v1189
    %v1191 = vpop.xlane.xlu0 %1190
    %v1192 = vsel %vm1158, %v1153, 0.0
    %1193 = vadd.xlane.f32.xlu0 %v1192
    %v1194 = vpop.xlane.xlu0 %1193
    %v1195 = vrcp.pop 32.0
    %v1196 = vmul.f32 %v1161, %v1195
    %v1197 = vmul.f32 %v1164, %v1195
    %v1198 = vmul.f32 %v1167, %v1195
    %v1199 = vmul.f32 %v1170, %v1195
    %v1200 = vmul.f32 %v1173, %v1195
    %v1201 = vmul.f32 %v1176, %v1195
    %v1202 = vmul.f32 %v1179, %v1195
    %v1203 = vmul.f32 %v1182, %v1195
    %v1204 = vmul.f32 %v1185, %v1195
    %v1205 = vmul.f32 %v1188, %v1195
    %v1206 = vmul.f32 %v1191, %v1195
    %v1207 = vmul.f32 %v1194, %v1195
    %v1208 = vsub.f32 %v1098, %v1196
    %v1209 = vsub.f32 %v1103, %v1197
    %v1210 = vsub.f32 %v1108, %v1198
    %v1211 = vsub.f32 %v1113, %v1199
    %v1212 = vsub.f32 %v1118, %v1200
    %v1213 = vsub.f32 %v1123, %v1201
    %v1214 = vsub.f32 %v1128, %v1202
    %v1215 = vsub.f32 %v1133, %v1203
    %v1216 = vsub.f32 %v1138, %v1204
    %v1217 = vsub.f32 %v1143, %v1205
    %v1218 = vsub.f32 %v1148, %v1206
    %v1219 = vsub.f32 %v1153, %v1207
    %v1220 = vmul.f32 %v1208, %v1208
    %v1221 = vmul.f32 %v1209, %v1209
    %v1222 = vmul.f32 %v1210, %v1210
    %v1223 = vmul.f32 %v1211, %v1211
    %v1224 = vmul.f32 %v1212, %v1212
    %v1225 = vmul.f32 %v1213, %v1213
    %v1226 = vmul.f32 %v1214, %v1214
    %v1227 = vmul.f32 %v1215, %v1215
    %v1228 = vmul.f32 %v1216, %v1216
    %v1229 = vmul.f32 %v1217, %v1217
    %v1230 = vmul.f32 %v1218, %v1218
    %v1231 = vmul.f32 %v1219, %v1219
    %v1232 = vsel %vm1158, %v1220, 0.0
    %1233 = vadd.xlane.f32.xlu0 %v1232
    %v1234 = vpop.xlane.xlu0 %1233
    %v1235 = vsel %vm1158, %v1221, 0.0
    %1236 = vadd.xlane.f32.xlu0 %v1235
    %v1237 = vpop.xlane.xlu0 %1236
    %v1238 = vsel %vm1158, %v1222, 0.0
    %1239 = vadd.xlane.f32.xlu0 %v1238
    %v1240 = vpop.xlane.xlu0 %1239
    %v1241 = vsel %vm1158, %v1223, 0.0
    %1242 = vadd.xlane.f32.xlu0 %v1241
    %v1243 = vpop.xlane.xlu0 %1242
    %v1244 = vsel %vm1158, %v1224, 0.0
    %1245 = vadd.xlane.f32.xlu0 %v1244
    %v1246 = vpop.xlane.xlu0 %1245
    %v1247 = vsel %vm1158, %v1225, 0.0
    %1248 = vadd.xlane.f32.xlu0 %v1247
    %v1249 = vpop.xlane.xlu0 %1248
    %v1250 = vsel %vm1158, %v1226, 0.0
    %1251 = vadd.xlane.f32.xlu0 %v1250
    %v1252 = vpop.xlane.xlu0 %1251
    %v1253 = vsel %vm1158, %v1227, 0.0
    %1254 = vadd.xlane.f32.xlu0 %v1253
    %v1255 = vpop.xlane.xlu0 %1254
    %v1256 = vsel %vm1158, %v1228, 0.0
    %1257 = vadd.xlane.f32.xlu0 %v1256
    %v1258 = vpop.xlane.xlu0 %1257
    %v1259 = vsel %vm1158, %v1229, 0.0
    %1260 = vadd.xlane.f32.xlu0 %v1259
    %v1261 = vpop.xlane.xlu0 %1260
    %v1262 = vsel %vm1158, %v1230, 0.0
    %1263 = vadd.xlane.f32.xlu0 %v1262
    %v1264 = vpop.xlane.xlu0 %1263
    %v1265 = vsel %vm1158, %v1231, 0.0
    %1266 = vadd.xlane.f32.xlu0 %v1265
    %v1267 = vpop.xlane.xlu0 %1266
    %v1268 = vmul.f32 %v1234, %v1195
    %v1269 = vmul.f32 %v1237, %v1195
    %v1270 = vmul.f32 %v1240, %v1195
    %v1271 = vmul.f32 %v1243, %v1195
    %v1272 = vmul.f32 %v1246, %v1195
    %v1273 = vmul.f32 %v1249, %v1195
    %v1274 = vmul.f32 %v1252, %v1195
    %v1275 = vmul.f32 %v1255, %v1195
    %v1276 = vmul.f32 %v1258, %v1195
    %v1277 = vmul.f32 %v1261, %v1195
    %v1278 = vmul.f32 %v1264, %v1195
    %v1279 = vmul.f32 %v1267, %v1195
    %v1280 = vadd.f32 %v1268, 1e-05
    %v1281 = vadd.f32 %v1269, 1e-05
    %v1282 = vadd.f32 %v1270, 1e-05
    %v1283 = vadd.f32 %v1271, 1e-05
    %v1284 = vadd.f32 %v1272, 1e-05
    %v1285 = vadd.f32 %v1273, 1e-05
    %v1286 = vadd.f32 %v1274, 1e-05
    %v1287 = vadd.f32 %v1275, 1e-05
    %v1288 = vadd.f32 %v1276, 1e-05
    %v1289 = vadd.f32 %v1277, 1e-05
    %v1290 = vadd.f32 %v1278, 1e-05
    %v1291 = vadd.f32 %v1279, 1e-05
    %v1292 = vrsqrt.pop %v1280
    %v1293 = vrsqrt.pop %v1281
    %v1294 = vrsqrt.pop %v1282
    %v1295 = vrsqrt.pop %v1283
    %v1296 = vrsqrt.pop %v1284
    %v1297 = vrsqrt.pop %v1285
    %v1298 = vrsqrt.pop %v1286
    %v1299 = vrsqrt.pop %v1287
    %v1300 = vrsqrt.pop %v1288
    %v1301 = vrsqrt.pop %v1289
    %v1302 = vrsqrt.pop %v1290
    %v1303 = vrsqrt.pop %v1291
    %v1304 = vmul.f32 %v1208, %v1292
    %v1305 = vmul.f32 %v1209, %v1293
    %v1306 = vmul.f32 %v1210, %v1294
    %v1307 = vmul.f32 %v1211, %v1295
    %v1308 = vmul.f32 %v1212, %v1296
    %v1309 = vmul.f32 %v1213, %v1297
    %v1310 = vmul.f32 %v1214, %v1298
    %v1311 = vmul.f32 %v1215, %v1299
    %v1312 = vmul.f32 %v1216, %v1300
    %v1313 = vmul.f32 %v1217, %v1301
    %v1314 = vmul.f32 %v1218, %v1302
    %v1315 = vmul.f32 %v1219, %v1303
    %v1316 = vlaneseq
    %v1317 = vshrl.u32 %v1316, 7
    %v1318 = vsub.s32 0, %v1317
    %v1319 = vrot.slane %v1156, %v1318
    %v1320 = vmul.f32 %v1304, %v1319
    %v1321 = vmul.f32 %v1305, %v1319
    %v1322 = vmul.f32 %v1306, %v1319
    %v1323 = vmul.f32 %v1307, %v1319
    %v1324 = vmul.f32 %v1308, %v1319
    %v1325 = vmul.f32 %v1309, %v1319
    %v1326 = vmul.f32 %v1310, %v1319
    %v1327 = vmul.f32 %v1311, %v1319
    %v1328 = vmul.f32 %v1312, %v1319
    %v1329 = vmul.f32 %v1313, %v1319
    %v1330 = vmul.f32 %v1314, %v1319
    %v1331 = vmul.f32 %v1315, %v1319
    %v1332 = vlaneseq
    %v1333 = vshrl.u32 %v1332, 7
    %v1334 = vsub.s32 0, %v1333
    %v1335 = vrot.slane %v1157, %v1334
    %v1336 = vadd.f32 %v1320, %v1335
    %v1337 = vadd.f32 %v1321, %v1335
    %v1338 = vadd.f32 %v1322, %v1335
    %v1339 = vadd.f32 %v1323, %v1335
    %v1340 = vadd.f32 %v1324, %v1335
    %v1341 = vadd.f32 %v1325, %v1335
    %v1342 = vadd.f32 %v1326, %v1335
    %v1343 = vadd.f32 %v1327, %v1335
    %v1344 = vadd.f32 %v1328, %v1335
    %v1345 = vadd.f32 %v1329, %v1335
    %v1346 = vadd.f32 %v1330, %v1335
    %v1347 = vadd.f32 %v1331, %v1335
    %v1348 = vld [vmem:[#allocation2 + $0x38] sm:$0xff]
    %v1349 = vld [vmem:[#allocation2 + $0x40] sm:$0xff]
    %v1350 = vld [vmem:[#allocation2 + $0x48] sm:$0xff]
    %v1351 = vld [vmem:[#allocation2 + $0x50] sm:$0xff]
    %v1352 = vld [vmem:[#allocation2 + $0x58] sm:$0xff]
    %v1353 = vld [vmem:[#allocation2 + $0x60] sm:$0xff]
    %v1354 = vld [vmem:[#allocation2 + $0x68] sm:$0xff]
    %v1355 = vld [vmem:[#allocation2 + $0x70] sm:$0xff]
    %v1356 = vld [vmem:[#allocation2 + $0x78] sm:$0xff]
    %v1357 = vld [vmem:[#allocation2 + $0x80] sm:$0xff]
    %v1358 = vld [vmem:[#allocation2 + $0x88] sm:$0xff]
    %v1359 = vld [vmem:[#allocation2 + $0x90] sm:$0xff]
    %vm1360 = vcmask 785408
    %v1362 = vsel %vm1360, %v1348, 0
    %v1365 = vsel %vm1360, %v1349, 0
    %v1368 = vsel %vm1360, %v1350, 0
    %v1371 = vsel %vm1360, %v1351, 0
    %v1374 = vsel %vm1360, %v1352, 0
    %v1377 = vsel %vm1360, %v1353, 0
    %1379 = vmatprep.subr.mxu0 0.0
    %1380 = vmatpush1.msra.mxu0 %v1336
    %1381 = vmatprep.subr.mxu0 0.0
    %1382 = vmatpush1.msra.mxu0 %v1337
    %1383 = vmatprep.subr.mxu0 0.0
    %1384 = vmatpush1.msra.mxu0 %v1338
    %1385 = vmatprep.subr.mxu0 0.0
    %1386 = vmatpush1.msra.mxu0 %v1339
    %1387 = vmatprep.subr.mxu0 0.0
    %1388 = vmatpush1.msra.mxu0 %v1340
    %1389 = vmatprep.subr.mxu0 0.0
    %1390 = vmatpush1.msra.mxu0 %v1341
    %1391 = vmatprep.subr.mxu0 0.0
    %1392 = vmatpush1.msra.mxu0 %v1342
    %1393 = vmatprep.subr.mxu0 0.0
    %1394 = vmatpush1.msra.mxu0 %v1343
    %1395 = vmatprep.subr.mxu0 0.0
    %1396 = vmatpush1.msra.mxu0 %v1344
    %1397 = vmatprep.subr.mxu0 0.0
    %1398 = vmatpush1.msra.mxu0 %v1345
    %1399 = vmatprep.subr.mxu0 0.0
    %1400 = vmatpush1.msra.mxu0 %v1346
    %1401 = vmatprep.subr.mxu0 0.0
    %1402 = vmatpush1.msra.mxu0 %v1347
    %1403 = vmatprep.subr.mxu0 0.0
    %1404 = vmatpush1.msra.mxu0 0.0
    %1405 = vmatprep.subr.mxu0 0.0
    %1406 = vmatpush1.msra.mxu0 0.0
    %1407 = vmatprep.subr.mxu0 0.0
    %1408 = vmatpush1.msra.mxu0 0.0
    %1409 = vmatprep.subr.mxu0 0.0
    %1410 = vmatpush1.msra.mxu0 0.0
    %1411 = vmatprep.subr.mxu0 0.0
    %1412 = vmatpush1.msra.mxu0 0.0
    %1413 = vmatprep.subr.mxu0 0.0
    %1414 = vmatpush1.msra.mxu0 0.0
    %1415 = vmatprep.subr.mxu0 0.0
    %1416 = vmatpush1.msra.mxu0 0.0
    %1417 = vmatprep.subr.mxu0 0.0
    %1418 = vmatpush1.msra.mxu0 0.0
    %1419 = vmatprep.subr.mxu0 0.0
    %1420 = vmatpush1.msra.mxu0 0.0
    %1421 = vmatprep.subr.mxu0 0.0
    %1422 = vmatpush1.msra.mxu0 0.0
    %1423 = vmatprep.subr.mxu0 0.0
    %1424 = vmatpush1.msra.mxu0 0.0
    %1425 = vmatprep.subr.mxu0 0.0
    %1426 = vmatpush1.msra.mxu0 0.0
    %1427 = vmatprep.subr.mxu0 0.0
    %1428 = vmatpush1.msra.mxu0 0.0
    %1429 = vmatprep.subr.mxu0 0.0
    %1430 = vmatpush1.msra.mxu0 0.0
    %1431 = vmatprep.subr.mxu0 0.0
    %1432 = vmatpush1.msra.mxu0 0.0
    %1433 = vmatprep.subr.mxu0 0.0
    %1434 = vmatpush1.msra.mxu0 0.0
    %1435 = vmatprep.subr.mxu0 0.0
    %1436 = vmatpush1.msra.mxu0 0.0
    %1437 = vmatprep.subr.mxu0 0.0
    %1438 = vmatpush1.msra.mxu0 0.0
    %1439 = vmatprep.subr.mxu0 0.0
    %1440 = vmatpush1.msra.mxu0 0.0
    %1441 = vmatprep.subr.mxu0 0.0
    %1442 = vmatpush1.msra.mxu0 0.0
    %1443 = vmatprep.mubr.f32.mxu0 0.0
    %1444 = vmatmul.mubr.f32.gmra.mrb[0].mxu0 %v1362
    %v1445 = vpop.f32.mrb[0].mxu0
    %v1446 = vadd.f32 %v1354, %v1445
    %v1447 = vpop.f32.mrb[0].mxu0
    %1448 = vmatprep.mubr.f32.mxu0 0.0
    %1449 = vmatmul.mubr.f32.gmra.mrb[0].mxu0 %v1365
    %v1450 = vpop.f32.mrb[0].mxu0
    %v1451 = vadd.f32 %v1355, %v1450
    %v1452 = vpop.f32.mrb[0].mxu0
    %1453 = vmatprep.mubr.f32.mxu0 0.0
    %1454 = vmatmul.mubr.f32.gmra.mrb[0].mxu0 %v1368
    %v1455 = vpop.f32.mrb[0].mxu0
    %v1456 = vadd.f32 %v1356, %v1455
    %v1457 = vpop.f32.mrb[0].mxu0
    %1458 = vmatprep.mubr.f32.mxu0 0.0
    %1459 = vmatmul.mubr.f32.gmra.mrb[0].mxu0 %v1371
    %v1460 = vpop.f32.mrb[0].mxu0
    %v1461 = vadd.f32 %v1357, %v1460
    %v1462 = vpop.f32.mrb[0].mxu0
    %1463 = vmatprep.mubr.f32.mxu0 0.0
    %1464 = vmatmul.mubr.f32.gmra.mrb[0].mxu0 %v1374
    %v1465 = vpop.f32.mrb[0].mxu0
    %v1466 = vadd.f32 %v1358, %v1465
    %v1467 = vpop.f32.mrb[0].mxu0
    %1468 = vmatprep.mubr.f32.mxu0 0.0
    %1469 = vmatmul.mubr.f32.gmra.mrb[0].mxu0 %v1377
    %v1470 = vpop.f32.mrb[0].mxu0
    %v1471 = vadd.f32 %v1359, %v1470
    %v1472 = vpop.f32.mrb[0].mxu0
    %1473 = vdwg.mxu0
    %v1474 = vand.u32 2147483647, %v1446
    %v1475 = vand.u32 2147483647, %v1451
    %v1476 = vand.u32 2147483647, %v1456
    %v1477 = vand.u32 2147483647, %v1461
    %v1478 = vand.u32 2147483647, %v1466
    %v1479 = vand.u32 2147483647, %v1471
    %v1480 = vmul.f32 %v1474, 0.70710677
    %v1481 = vmul.f32 %v1475, 0.70710677
    %v1482 = vmul.f32 %v1476, 0.70710677
    %v1483 = vmul.f32 %v1477, 0.70710677
    %v1484 = vmul.f32 %v1478, 0.70710677
    %v1485 = vmul.f32 %v1479, 0.70710677
    %v1486 = vmul.f32 %v1480, %v1480
    %v1487 = vmul.f32 %v1481, %v1481
    %v1488 = vmul.f32 %v1482, %v1482
    %v1489 = vmul.f32 %v1483, %v1483
    %v1490 = vmul.f32 %v1484, %v1484
    %v1491 = vmul.f32 %v1485, %v1485
    %v1492 = vsub.f32 0.0, %v1486
    %v1493 = vsub.f32 0.0, %v1487
    %v1494 = vsub.f32 0.0, %v1488
    %v1495 = vsub.f32 0.0, %v1489
    %v1496 = vsub.f32 0.0, %v1490
    %v1497 = vsub.f32 0.0, %v1491
    %v1498 = vmul.f32 %v1492, 1.442695
    %v1499 = vpow.pop %v1498
    %v1500 = vmul.f32 %v1493, 1.442695
    %v1501 = vpow.pop %v1500
    %v1502 = vmul.f32 %v1494, 1.442695
    %v1503 = vpow.pop %v1502
    %v1504 = vmul.f32 %v1495, 1.442695
    %v1505 = vpow.pop %v1504
    %v1506 = vmul.f32 %v1496, 1.442695
    %v1507 = vpow.pop %v1506
    %v1508 = vmul.f32 %v1497, 1.442695
    %v1509 = vpow.pop %v1508
    %v1510 = vmul.f32 %v1480, 0.3275911
    %v1511 = vmul.f32 %v1481, 0.3275911
    %v1512 = vmul.f32 %v1482, 0.3275911
    %v1513 = vmul.f32 %v1483, 0.3275911
    %v1514 = vmul.f32 %v1484, 0.3275911
    %v1515 = vmul.f32 %v1485, 0.3275911
    %v1516 = vadd.f32 %v1510, 1.0
    %v1517 = vadd.f32 %v1511, 1.0
    %v1518 = vadd.f32 %v1512, 1.0
    %v1519 = vadd.f32 %v1513, 1.0
    %v1520 = vadd.f32 %v1514, 1.0
    %v1521 = vadd.f32 %v1515, 1.0
    %v1522 = vrcp.pop %v1516
    %v1523 = vrcp.pop %v1517
    %v1524 = vrcp.pop %v1518
    %v1525 = vrcp.pop %v1519
    %v1526 = vrcp.pop %v1520
    %v1527 = vrcp.pop %v1521
    %v1528 = vmul.f32 %v1522, 1.0614054
    %v1529 = vmul.f32 %v1523, 1.0614054
    %v1530 = vmul.f32 %v1524, 1.0614054
    %v1531 = vmul.f32 %v1525, 1.0614054
    %v1532 = vmul.f32 %v1526, 1.0614054
    %v1533 = vmul.f32 %v1527, 1.0614054
    %v1534 = vadd.f32 %v1528, -1.4531521
    %v1535 = vadd.f32 %v1529, -1.4531521
    %v1536 = vadd.f32 %v1530, -1.4531521
    %v1537 = vadd.f32 %v1531, -1.4531521
    %v1538 = vadd.f32 %v1532, -1.4531521
    %v1539 = vadd.f32 %v1533, -1.4531521
    %v1540 = vmul.f32 %v1534, %v1522
    %v1541 = vmul.f32 %v1535, %v1523
    %v1542 = vmul.f32 %v1536, %v1524
    %v1543 = vmul.f32 %v1537, %v1525
    %v1544 = vmul.f32 %v1538, %v1526
    %v1545 = vmul.f32 %v1539, %v1527
    %v1546 = vadd.f32 %v1540, 1.4214138
    %v1547 = vadd.f32 %v1541, 1.4214138
    %v1548 = vadd.f32 %v1542, 1.4214138
    %v1549 = vadd.f32 %v1543, 1.4214138
    %v1550 = vadd.f32 %v1544, 1.4214138
    %v1551 = vadd.f32 %v1545, 1.4214138
    %v1552 = vmul.f32 %v1546, %v1522
    %v1553 = vmul.f32 %v1547, %v1523
    %v1554 = vmul.f32 %v1548, %v1524
    %v1555 = vmul.f32 %v1549, %v1525
    %v1556 = vmul.f32 %v1550, %v1526
    %v1557 = vmul.f32 %v1551, %v1527
    %v1558 = vadd.f32 %v1552, -0.28449672
    %v1559 = vadd.f32 %v1553, -0.28449672
    %v1560 = vadd.f32 %v1554, -0.28449672
    %v1561 = vadd.f32 %v1555, -0.28449672
    %v1562 = vadd.f32 %v1556, -0.28449672
    %v1563 = vadd.f32 %v1557, -0.28449672
    %v1564 = vmul.f32 %v1558, %v1522
    %v1565 = vmul.f32 %v1559, %v1523
    %v1566 = vmul.f32 %v1560, %v1524
    %v1567 = vmul.f32 %v1561, %v1525
    %v1568 = vmul.f32 %v1562, %v1526
    %v1569 = vmul.f32 %v1563, %v1527
    %v1570 = vadd.f32 %v1564, 0.2548296
    %v1571 = vadd.f32 %v1565, 0.2548296
    %v1572 = vadd.f32 %v1566, 0.2548296
    %v1573 = vadd.f32 %v1567, 0.2548296
    %v1574 = vadd.f32 %v1568, 0.2548296
    %v1575 = vadd.f32 %v1569, 0.2548296
    %v1576 = vmul.f32 %v1570, %v1522
    %v1577 = vmul.f32 %v1571, %v1523
    %v1578 = vmul.f32 %v1572, %v1524
    %v1579 = vmul.f32 %v1573, %v1525
    %v1580 = vmul.f32 %v1574, %v1526
    %v1581 = vmul.f32 %v1575, %v1527
    %v1582 = vadd.f32 %v1446, %v1474
    %v1583 = vadd.f32 %v1451, %v1475
    %v1584 = vadd.f32 %v1456, %v1476
    %v1585 = vadd.f32 %v1461, %v1477
    %v1586 = vadd.f32 %v1466, %v1478
    %v1587 = vadd.f32 %v1471, %v1479
    %v1588 = vmul.f32 %v1582, 0.5
    %v1589 = vmul.f32 %v1583, 0.5
    %v1590 = vmul.f32 %v1584, 0.5
    %v1591 = vmul.f32 %v1585, 0.5
    %v1592 = vmul.f32 %v1586, 0.5
    %v1593 = vmul.f32 %v1587, 0.5
    %v1594 = vmul.f32 %v1474, 0.5
    %v1595 = vmul.f32 %v1475, 0.5
    %v1596 = vmul.f32 %v1476, 0.5
    %v1597 = vmul.f32 %v1477, 0.5
    %v1598 = vmul.f32 %v1478, 0.5
    %v1599 = vmul.f32 %v1479, 0.5
    %v1600 = vmul.f32 %v1576, %v1499
    %v1601 = vmul.f32 %v1577, %v1501
    %v1602 = vmul.f32 %v1578, %v1503
    %v1603 = vmul.f32 %v1579, %v1505
    %v1604 = vmul.f32 %v1580, %v1507
    %v1605 = vmul.f32 %v1581, %v1509
    %v1606 = vmul.f32 %v1594, %v1600
    %v1607 = vmul.f32 %v1595, %v1601
    %v1608 = vmul.f32 %v1596, %v1602
    %v1609 = vmul.f32 %v1597, %v1603
    %v1610 = vmul.f32 %v1598, %v1604
    %v1611 = vmul.f32 %v1599, %v1605
    %v1612 = vsub.f32 %v1588, %v1606
    %v1613 = vsub.f32 %v1589, %v1607
    %v1614 = vsub.f32 %v1590, %v1608
    %v1615 = vsub.f32 %v1591, %v1609
    %v1616 = vsub.f32 %v1592, %v1610
    %v1617 = vsub.f32 %v1593, %v1611
    %v1618 = vld [vmem:[#allocation2 + $0x98] sm:$0xff]
    %v1619 = vld [vmem:[#allocation2 + $0xa0] sm:$0xff]
    %v1620 = vld [vmem:[#allocation2 + $0xa8] sm:$0xff]
    %v1621 = vld [vmem:[#allocation2 + $0xb0] sm:$0xff]
    %v1622 = vld [vmem:[#allocation2 + $0xb8] sm:$0xff]
    %v1623 = vld [vmem:[#allocation2 + $0xc0] sm:$0xff]
    %v1624 = vld [vmem:[#allocation2 + $0xc8] sm:$0xff]
    %v1625 = vld [vmem:[#allocation2 + $0xd0] sm:$0xff]
    %v1626 = vld [vmem:[#allocation2 + $0xd8] sm:$0xff]
    %v1627 = vld [vmem:[#allocation2 + $0xe0] sm:$0xff]
    %v1628 = vld [vmem:[#allocation2 + $0xe8] sm:$0xff]
    %v1629 = vld [vmem:[#allocation2 + $0xf0] sm:$0xff]
    %v1631 = vsel %vm994, %v1618, 0
    %v1634 = vsel %vm994, %v1619, 0
    %v1637 = vsel %vm994, %v1620, 0
    %v1640 = vsel %vm994, %v1621, 0
    %v1643 = vsel %vm994, %v1622, 0
    %v1646 = vsel %vm994, %v1623, 0
    %v1649 = vsel %vm994, %v1624, 0
    %v1652 = vsel %vm994, %v1625, 0
    %v1655 = vsel %vm994, %v1626, 0
    %v1658 = vsel %vm994, %v1627, 0
    %v1661 = vsel %vm994, %v1628, 0
    %v1664 = vsel %vm994, %v1629, 0
    %1666 = vmatprep.subr.mxu0 0.0
    %1667 = vmatpush1.msra.mxu0 %v1612
    %1668 = vmatprep.subr.mxu0 0.0
    %1669 = vmatpush1.msra.mxu0 %v1613
    %1670 = vmatprep.subr.mxu0 0.0
    %1671 = vmatpush1.msra.mxu0 %v1614
    %1672 = vmatprep.subr.mxu0 0.0
    %1673 = vmatpush1.msra.mxu0 %v1615
    %1674 = vmatprep.subr.mxu0 0.0
    %1675 = vmatpush1.msra.mxu0 %v1616
    %1676 = vmatprep.subr.mxu0 0.0
    %1677 = vmatpush1.msra.mxu0 %v1617
    %1678 = vmatprep.subr.mxu0 0.0
    %1679 = vmatpush1.msra.mxu0 0.0
    %1680 = vmatprep.subr.mxu0 0.0
    %1681 = vmatpush1.msra.mxu0 0.0
    %1682 = vmatprep.subr.mxu0 0.0
    %1683 = vmatpush1.msra.mxu0 0.0
    %1684 = vmatprep.subr.mxu0 0.0
    %1685 = vmatpush1.msra.mxu0 0.0
    %1686 = vmatprep.subr.mxu0 0.0
    %1687 = vmatpush1.msra.mxu0 0.0
    %1688 = vmatprep.subr.mxu0 0.0
    %1689 = vmatpush1.msra.mxu0 0.0
    %1690 = vmatprep.subr.mxu0 0.0
    %1691 = vmatpush1.msra.mxu0 0.0
    %1692 = vmatprep.subr.mxu0 0.0
    %1693 = vmatpush1.msra.mxu0 0.0
    %1694 = vmatprep.subr.mxu0 0.0
    %1695 = vmatpush1.msra.mxu0 0.0
    %1696 = vmatprep.subr.mxu0 0.0
    %1697 = vmatpush1.msra.mxu0 0.0
    %1698 = vmatprep.subr.mxu0 0.0
    %1699 = vmatpush1.msra.mxu0 0.0
    %1700 = vmatprep.subr.mxu0 0.0
    %1701 = vmatpush1.msra.mxu0 0.0
    %1702 = vmatprep.subr.mxu0 0.0
    %1703 = vmatpush1.msra.mxu0 0.0
    %1704 = vmatprep.subr.mxu0 0.0
    %1705 = vmatpush1.msra.mxu0 0.0
    %1706 = vmatprep.subr.mxu0 0.0
    %1707 = vmatpush1.msra.mxu0 0.0
    %1708 = vmatprep.subr.mxu0 0.0
    %1709 = vmatpush1.msra.mxu0 0.0
    %1710 = vmatprep.subr.mxu0 0.0
    %1711 = vmatpush1.msra.mxu0 0.0
    %1712 = vmatprep.subr.mxu0 0.0
    %1713 = vmatpush1.msra.mxu0 0.0
    %1714 = vmatprep.subr.mxu0 0.0
    %1715 = vmatpush1.msra.mxu0 0.0
    %1716 = vmatprep.subr.mxu0 0.0
    %1717 = vmatpush1.msra.mxu0 0.0
    %1718 = vmatprep.subr.mxu0 0.0
    %1719 = vmatpush1.msra.mxu0 0.0
    %1720 = vmatprep.subr.mxu0 0.0
    %1721 = vmatpush1.msra.mxu0 0.0
    %1722 = vmatprep.subr.mxu0 0.0
    %1723 = vmatpush1.msra.mxu0 0.0
    %1724 = vmatprep.subr.mxu0 0.0
    %1725 = vmatpush1.msra.mxu0 0.0
    %1726 = vmatprep.subr.mxu0 0.0
    %1727 = vmatpush1.msra.mxu0 0.0
    %1728 = vmatprep.subr.mxu0 0.0
    %1729 = vmatpush1.msra.mxu0 0.0
    %1730 = vmatprep.mubr.f32.mxu0 0.0
    %1731 = vmatmul.mubr.f32.gmra.mrb[0].mxu0 %v1631
    %v1732 = vpop.f32.mrb[0].mxu0
    %v1733 = vadd.f32 0.0, %v1732
    %v1734 = vpop.f32.mrb[0].mxu0
    %1735 = vmatprep.mubr.f32.mxu0 0.0
    %1736 = vmatmul.mubr.f32.gmra.mrb[0].mxu0 %v1634
    %v1737 = vpop.f32.mrb[0].mxu0
    %v1738 = vadd.f32 0.0, %v1737
    %v1739 = vpop.f32.mrb[0].mxu0
    %1740 = vmatprep.mubr.f32.mxu0 0.0
    %1741 = vmatmul.mubr.f32.gmra.mrb[0].mxu0 %v1637
    %v1742 = vpop.f32.mrb[0].mxu0
    %v1743 = vadd.f32 0.0, %v1742
    %v1744 = vpop.f32.mrb[0].mxu0
    %1745 = vmatprep.mubr.f32.mxu0 0.0
    %1746 = vmatmul.mubr.f32.gmra.mrb[0].mxu0 %v1640
    %v1747 = vpop.f32.mrb[0].mxu0
    %v1748 = vadd.f32 0.0, %v1747
    %v1749 = vpop.f32.mrb[0].mxu0
    %1750 = vmatprep.mubr.f32.mxu0 0.0
    %1751 = vmatmul.mubr.f32.gmra.mrb[0].mxu0 %v1643
    %v1752 = vpop.f32.mrb[0].mxu0
    %v1753 = vadd.f32 0.0, %v1752
    %v1754 = vpop.f32.mrb[0].mxu0
    %1755 = vmatprep.mubr.f32.mxu0 0.0
    %1756 = vmatmul.mubr.f32.gmra.mrb[0].mxu0 %v1646
    %v1757 = vpop.f32.mrb[0].mxu0
    %v1758 = vadd.f32 0.0, %v1757
    %v1759 = vpop.f32.mrb[0].mxu0
    %1760 = vmatprep.mubr.f32.mxu0 0.0
    %1761 = vmatmul.mubr.f32.gmra.mrb[0].mxu0 %v1649
    %v1762 = vpop.f32.mrb[0].mxu0
    %v1763 = vadd.f32 0.0, %v1762
    %v1764 = vpop.f32.mrb[0].mxu0
    %1765 = vmatprep.mubr.f32.mxu0 0.0
    %1766 = vmatmul.mubr.f32.gmra.mrb[0].mxu0 %v1652
    %v1767 = vpop.f32.mrb[0].mxu0
    %v1768 = vadd.f32 0.0, %v1767
    %v1769 = vpop.f32.mrb[0].mxu0
    %1770 = vmatprep.mubr.f32.mxu0 0.0
    %1771 = vmatmul.mubr.f32.gmra.mrb[0].mxu0 %v1655
    %v1772 = vpop.f32.mrb[0].mxu0
    %v1773 = vadd.f32 0.0, %v1772
    %v1774 = vpop.f32.mrb[0].mxu0
    %1775 = vmatprep.mubr.f32.mxu0 0.0
    %1776 = vmatmul.mubr.f32.gmra.mrb[0].mxu0 %v1658
    %v1777 = vpop.f32.mrb[0].mxu0
    %v1778 = vadd.f32 0.0, %v1777
    %v1779 = vpop.f32.mrb[0].mxu0
    %1780 = vmatprep.mubr.f32.mxu0 0.0
    %1781 = vmatmul.mubr.f32.gmra.mrb[0].mxu0 %v1661
    %v1782 = vpop.f32.mrb[0].mxu0
    %v1783 = vadd.f32 0.0, %v1782
    %v1784 = vpop.f32.mrb[0].mxu0
    %1785 = vmatprep.mubr.f32.mxu0 0.0
    %1786 = vmatmul.mubr.f32.gmra.mrb[0].mxu0 %v1664
    %v1787 = vpop.f32.mrb[0].mxu0
    %v1788 = vadd.f32 0.0, %v1787
    %v1789 = vpop.f32.mrb[0].mxu0
    %1790 = vdwg.mxu0
    %v1791 = vadd.f32 %v1098, %v1733
    %v1792 = vadd.f32 %v1103, %v1738
    %v1793 = vadd.f32 %v1108, %v1743
    %v1794 = vadd.f32 %v1113, %v1748
    %v1795 = vadd.f32 %v1118, %v1753
    %v1796 = vadd.f32 %v1123, %v1758
    %v1797 = vadd.f32 %v1128, %v1763
    %v1798 = vadd.f32 %v1133, %v1768
    %v1799 = vadd.f32 %v1138, %v1773
    %v1800 = vadd.f32 %v1143, %v1778
    %v1801 = vadd.f32 %v1148, %v1783
    %v1802 = vadd.f32 %v1153, %v1788
    %v1803 = vld [vmem:[#allocation2 + $0xf8] sm:$0xff]
    %v1804 = vld [vmem:[#allocation2 + $0x100] sm:$0xff]
    %v1805 = vld [vmem:[#allocation2 + $0x108] sm:$0xff]
    %v1806 = vld [vmem:[#allocation2 + $0x110] sm:$0xff]
    %v1807 = vld [vmem:[#allocation2 + $0x118] sm:$0xff]
    %v1808 = vld [vmem:[#allocation2 + $0x120] sm:$0xff]
    %v1809 = vld [vmem:[#allocation2 + $0x128] sm:$0xff]
    %v1810 = vld [vmem:[#allocation2 + $0x130] sm:$0xff]
    %v1811 = vld [vmem:[#allocation2 + $0x138] sm:$0xff]
    %v1812 = vld [vmem:[#allocation2 + $0x140] sm:$0xff]
    %v1813 = vld [vmem:[#allocation2 + $0x148] sm:$0xff]
    %v1814 = vld [vmem:[#allocation2 + $0x150] sm:$0xff]
    %v1815 = vadd.f32 %v1791, %v1803
    %v1816 = vadd.f32 %v1792, %v1804
    %v1817 = vadd.f32 %v1793, %v1805
    %v1818 = vadd.f32 %v1794, %v1806
    %v1819 = vadd.f32 %v1795, %v1807
    %v1820 = vadd.f32 %v1796, %v1808
    %v1821 = vadd.f32 %v1797, %v1809
    %v1822 = vadd.f32 %v1798, %v1810
    %v1823 = vadd.f32 %v1799, %v1811
    %v1824 = vadd.f32 %v1800, %v1812
    %v1825 = vadd.f32 %v1801, %v1813
    %v1826 = vadd.f32 %v1802, %v1814
    %v1827 = vld [vmem:[#allocation2 + $0x158] sm:$0x1]
    %v1828 = vld [vmem:[#allocation2 + $0x159] sm:$0x1]
    %v1829 = vsel %vm1158, %v1815, 0.0
    %1830 = vadd.xlane.f32.xlu0 %v1829
    %v1831 = vpop.xlane.xlu0 %1830
    %v1832 = vsel %vm1158, %v1816, 0.0
    %1833 = vadd.xlane.f32.xlu0 %v1832
    %v1834 = vpop.xlane.xlu0 %1833
    %v1835 = vsel %vm1158, %v1817, 0.0
    %1836 = vadd.xlane.f32.xlu0 %v1835
    %v1837 = vpop.xlane.xlu0 %1836
    %v1838 = vsel %vm1158, %v1818, 0.0
    %1839 = vadd.xlane.f32.xlu0 %v1838
    %v1840 = vpop.xlane.xlu0 %1839
    %v1841 = vsel %vm1158, %v1819, 0.0
    %1842 = vadd.xlane.f32.xlu0 %v1841
    %v1843 = vpop.xlane.xlu0 %1842
    %v1844 = vsel %vm1158, %v1820, 0.0
    %1845 = vadd.xlane.f32.xlu0 %v1844
    %v1846 = vpop.xlane.xlu0 %1845
    %v1847 = vsel %vm1158, %v1821, 0.0
    %1848 = vadd.xlane.f32.xlu0 %v1847
    %v1849 = vpop.xlane.xlu0 %1848
    %v1850 = vsel %vm1158, %v1822, 0.0
    %1851 = vadd.xlane.f32.xlu0 %v1850
    %v1852 = vpop.xlane.xlu0 %1851
    %v1853 = vsel %vm1158, %v1823, 0.0
    %1854 = vadd.xlane.f32.xlu0 %v1853
    %v1855 = vpop.xlane.xlu0 %1854
    %v1856 = vsel %vm1158, %v1824, 0.0
    %1857 = vadd.xlane.f32.xlu0 %v1856
    %v1858 = vpop.xlane.xlu0 %1857
    %v1859 = vsel %vm1158, %v1825, 0.0
    %1860 = vadd.xlane.f32.xlu0 %v1859
    %v1861 = vpop.xlane.xlu0 %1860
    %v1862 = vsel %vm1158, %v1826, 0.0
    %1863 = vadd.xlane.f32.xlu0 %v1862
    %v1864 = vpop.xlane.xlu0 %1863
    %v1865 = vmul.f32 %v1831, %v1195
    %v1866 = vmul.f32 %v1834, %v1195
    %v1867 = vmul.f32 %v1837, %v1195
    %v1868 = vmul.f32 %v1840, %v1195
    %v1869 = vmul.f32 %v1843, %v1195
    %v1870 = vmul.f32 %v1846, %v1195
    %v1871 = vmul.f32 %v1849, %v1195
    %v1872 = vmul.f32 %v1852, %v1195
    %v1873 = vmul.f32 %v1855, %v1195
    %v1874 = vmul.f32 %v1858, %v1195
    %v1875 = vmul.f32 %v1861, %v1195
    %v1876 = vmul.f32 %v1864, %v1195
    %v1877 = vsub.f32 %v1815, %v1865
    %v1878 = vsub.f32 %v1816, %v1866
    %v1879 = vsub.f32 %v1817, %v1867
    %v1880 = vsub.f32 %v1818, %v1868
    %v1881 = vsub.f32 %v1819, %v1869
    %v1882 = vsub.f32 %v1820, %v1870
    %v1883 = vsub.f32 %v1821, %v1871
    %v1884 = vsub.f32 %v1822, %v1872
    %v1885 = vsub.f32 %v1823, %v1873
    %v1886 = vsub.f32 %v1824, %v1874
    %v1887 = vsub.f32 %v1825, %v1875
    %v1888 = vsub.f32 %v1826, %v1876
    %v1889 = vmul.f32 %v1877, %v1877
    %v1890 = vmul.f32 %v1878, %v1878
    %v1891 = vmul.f32 %v1879, %v1879
    %v1892 = vmul.f32 %v1880, %v1880
    %v1893 = vmul.f32 %v1881, %v1881
    %v1894 = vmul.f32 %v1882, %v1882
    %v1895 = vmul.f32 %v1883, %v1883
    %v1896 = vmul.f32 %v1884, %v1884
    %v1897 = vmul.f32 %v1885, %v1885
    %v1898 = vmul.f32 %v1886, %v1886
    %v1899 = vmul.f32 %v1887, %v1887
    %v1900 = vmul.f32 %v1888, %v1888
    %v1901 = vsel %vm1158, %v1889, 0.0
    %1902 = vadd.xlane.f32.xlu0 %v1901
    %v1903 = vpop.xlane.xlu0 %1902
    %v1904 = vsel %vm1158, %v1890, 0.0
    %1905 = vadd.xlane.f32.xlu0 %v1904
    %v1906 = vpop.xlane.xlu0 %1905
    %v1907 = vsel %vm1158, %v1891, 0.0
    %1908 = vadd.xlane.f32.xlu0 %v1907
    %v1909 = vpop.xlane.xlu0 %1908
    %v1910 = vsel %vm1158, %v1892, 0.0
    %1911 = vadd.xlane.f32.xlu0 %v1910
    %v1912 = vpop.xlane.xlu0 %1911
    %v1913 = vsel %vm1158, %v1893, 0.0
    %1914 = vadd.xlane.f32.xlu0 %v1913
    %v1915 = vpop.xlane.xlu0 %1914
    %v1916 = vsel %vm1158, %v1894, 0.0
    %1917 = vadd.xlane.f32.xlu0 %v1916
    %v1918 = vpop.xlane.xlu0 %1917
    %v1919 = vsel %vm1158, %v1895, 0.0
    %1920 = vadd.xlane.f32.xlu0 %v1919
    %v1921 = vpop.xlane.xlu0 %1920
    %v1922 = vsel %vm1158, %v1896, 0.0
    %1923 = vadd.xlane.f32.xlu0 %v1922
    %v1924 = vpop.xlane.xlu0 %1923
    %v1925 = vsel %vm1158, %v1897, 0.0
    %1926 = vadd.xlane.f32.xlu0 %v1925
    %v1927 = vpop.xlane.xlu0 %1926
    %v1928 = vsel %vm1158, %v1898, 0.0
    %1929 = vadd.xlane.f32.xlu0 %v1928
    %v1930 = vpop.xlane.xlu0 %1929
    %v1931 = vsel %vm1158, %v1899, 0.0
    %1932 = vadd.xlane.f32.xlu0 %v1931
    %v1933 = vpop.xlane.xlu0 %1932
    %v1934 = vsel %vm1158, %v1900, 0.0
    %1935 = vadd.xlane.f32.xlu0 %v1934
    %v1936 = vpop.xlane.xlu0 %1935
    %v1937 = vmul.f32 %v1903, %v1195
    %v1938 = vmul.f32 %v1906, %v1195
    %v1939 = vmul.f32 %v1909, %v1195
    %v1940 = vmul.f32 %v1912, %v1195
    %v1941 = vmul.f32 %v1915, %v1195
    %v1942 = vmul.f32 %v1918, %v1195
    %v1943 = vmul.f32 %v1921, %v1195
    %v1944 = vmul.f32 %v1924, %v1195
    %v1945 = vmul.f32 %v1927, %v1195
    %v1946 = vmul.f32 %v1930, %v1195
    %v1947 = vmul.f32 %v1933, %v1195
    %v1948 = vmul.f32 %v1936, %v1195
    %v1949 = vadd.f32 %v1937, 1e-05
    %v1950 = vadd.f32 %v1938, 1e-05
    %v1951 = vadd.f32 %v1939, 1e-05
    %v1952 = vadd.f32 %v1940, 1e-05
    %v1953 = vadd.f32 %v1941, 1e-05
    %v1954 = vadd.f32 %v1942, 1e-05
    %v1955 = vadd.f32 %v1943, 1e-05
    %v1956 = vadd.f32 %v1944, 1e-05
    %v1957 = vadd.f32 %v1945, 1e-05
    %v1958 = vadd.f32 %v1946, 1e-05
    %v1959 = vadd.f32 %v1947, 1e-05
    %v1960 = vadd.f32 %v1948, 1e-05
    %v1961 = vrsqrt.pop %v1949
    %v1962 = vrsqrt.pop %v1950
    %v1963 = vrsqrt.pop %v1951
    %v1964 = vrsqrt.pop %v1952
    %v1965 = vrsqrt.pop %v1953
    %v1966 = vrsqrt.pop %v1954
    %v1967 = vrsqrt.pop %v1955
    %v1968 = vrsqrt.pop %v1956
    %v1969 = vrsqrt.pop %v1957
    %v1970 = vrsqrt.pop %v1958
    %v1971 = vrsqrt.pop %v1959
    %v1972 = vrsqrt.pop %v1960
    %v1973 = vmul.f32 %v1877, %v1961
    %v1974 = vmul.f32 %v1878, %v1962
    %v1975 = vmul.f32 %v1879, %v1963
    %v1976 = vmul.f32 %v1880, %v1964
    %v1977 = vmul.f32 %v1881, %v1965
    %v1978 = vmul.f32 %v1882, %v1966
    %v1979 = vmul.f32 %v1883, %v1967
    %v1980 = vmul.f32 %v1884, %v1968
    %v1981 = vmul.f32 %v1885, %v1969
    %v1982 = vmul.f32 %v1886, %v1970
    %v1983 = vmul.f32 %v1887, %v1971
    %v1984 = vmul.f32 %v1888, %v1972
    %v1985 = vlaneseq
    %v1986 = vshrl.u32 %v1985, 7
    %v1987 = vsub.s32 0, %v1986
    %v1988 = vrot.slane %v1827, %v1987
    %v1989 = vmul.f32 %v1973, %v1988
    %v1990 = vmul.f32 %v1974, %v1988
    %v1991 = vmul.f32 %v1975, %v1988
    %v1992 = vmul.f32 %v1976, %v1988
    %v1993 = vmul.f32 %v1977, %v1988
    %v1994 = vmul.f32 %v1978, %v1988
    %v1995 = vmul.f32 %v1979, %v1988
    %v1996 = vmul.f32 %v1980, %v1988
    %v1997 = vmul.f32 %v1981, %v1988
    %v1998 = vmul.f32 %v1982, %v1988
    %v1999 = vmul.f32 %v1983, %v1988
    %v2000 = vmul.f32 %v1984, %v1988
    %v2001 = vlaneseq
    %v2002 = vshrl.u32 %v2001, 7
    %v2003 = vsub.s32 0, %v2002
    %v2004 = vrot.slane %v1828, %v2003
    %v2005 = vadd.f32 %v1989, %v2004
    %v2006 = vadd.f32 %v1990, %v2004
    %v2007 = vadd.f32 %v1991, %v2004
    %v2008 = vadd.f32 %v1992, %v2004
    %v2009 = vadd.f32 %v1993, %v2004
    %v2010 = vadd.f32 %v1994, %v2004
    %v2011 = vadd.f32 %v1995, %v2004
    %v2012 = vadd.f32 %v1996, %v2004
    %v2013 = vadd.f32 %v1997, %v2004
    %v2014 = vadd.f32 %v1998, %v2004
    %v2015 = vadd.f32 %v1999, %v2004
    %v2016 = vadd.f32 %v2000, %v2004
    %v2017 = vld [vmem:[#allocation2 + $0x160] sm:$0xff]
    %v2018 = vld [vmem:[#allocation2 + $0x168] sm:$0xff]
    %v2019 = vld [vmem:[#allocation2 + $0x170] sm:$0xff]
    %v2020 = vld [vmem:[#allocation2 + $0x178] sm:$0xff]
    %v2021 = vld [vmem:[#allocation2 + $0x180] sm:$0x1]
    %v2022 = vlaneseq
    %v2023 = vshrl.u32 %v2022, 7
    %v2024 = vsub.s32 0, %v2023
    %v2025 = vrot.slane %v2021, %v2024
    %v2027 = vsel %vm1158, %v2005, 0
    %v2030 = vsel %vm1158, %v2006, 0
    %v2033 = vsel %vm1158, %v2007, 0
    %v2036 = vsel %vm1158, %v2008, 0
    %v2039 = vsel %vm1158, %v2009, 0
    %v2042 = vsel %vm1158, %v2010, 0
    %v2045 = vsel %vm1158, %v2011, 0
    %v2048 = vsel %vm1158, %v2012, 0
    %v2051 = vsel %vm1158, %v2013, 0
    %v2054 = vsel %vm1158, %v2014, 0
    %v2057 = vsel %vm1158, %v2015, 0
    %v2060 = vsel %vm1158, %v2016, 0
    %2062 = vmatprep.subr.mxu0 0.0
    %2063 = vmatpush1.msra.mxu0 %v2017
    %2064 = vmatprep.subr.mxu0 0.0
    %2065 = vmatpush1.msra.mxu0 %v2018
    %2066 = vmatprep.subr.mxu0 0.0
    %2067 = vmatpush1.msra.mxu0 %v2019
    %2068 = vmatprep.subr.mxu0 0.0
    %2069 = vmatpush1.msra.mxu0 %v2020
    %2070 = vmatprep.subr.mxu0 0.0
    %2071 = vmatpush1.msra.mxu0 0.0
    %2072 = vmatprep.subr.mxu0 0.0
    %2073 = vmatpush1.msra.mxu0 0.0
    %2074 = vmatprep.subr.mxu0 0.0
    %2075 = vmatpush1.msra.mxu0 0.0
    %2076 = vmatprep.subr.mxu0 0.0
    %2077 = vmatpush1.msra.mxu0 0.0
    %2078 = vmatprep.subr.mxu0 0.0
    %2079 = vmatpush1.msra.mxu0 0.0
    %2080 = vmatprep.subr.mxu0 0.0
    %2081 = vmatpush1.msra.mxu0 0.0
    %2082 = vmatprep.subr.mxu0 0.0
    %2083 = vmatpush1.msra.mxu0 0.0
    %2084 = vmatprep.subr.mxu0 0.0
    %2085 = vmatpush1.msra.mxu0 0.0
    %2086 = vmatprep.subr.mxu0 0.0
    %2087 = vmatpush1.msra.mxu0 0.0
    %2088 = vmatprep.subr.mxu0 0.0
    %2089 = vmatpush1.msra.mxu0 0.0
    %2090 = vmatprep.subr.mxu0 0.0
    %2091 = vmatpush1.msra.mxu0 0.0
    %2092 = vmatprep.subr.mxu0 0.0
    %2093 = vmatpush1.msra.mxu0 0.0
    %2094 = vmatprep.subr.mxu0 0.0
    %2095 = vmatpush1.msra.mxu0 0.0
    %2096 = vmatprep.subr.mxu0 0.0
    %2097 = vmatpush1.msra.mxu0 0.0
    %2098 = vmatprep.subr.mxu0 0.0
    %2099 = vmatpush1.msra.mxu0 0.0
    %2100 = vmatprep.subr.mxu0 0.0
    %2101 = vmatpush1.msra.mxu0 0.0
    %2102 = vmatprep.subr.mxu0 0.0
    %2103 = vmatpush1.msra.mxu0 0.0
    %2104 = vmatprep.subr.mxu0 0.0
    %2105 = vmatpush1.msra.mxu0 0.0
    %2106 = vmatprep.subr.mxu0 0.0
    %2107 = vmatpush1.msra.mxu0 0.0
    %2108 = vmatprep.subr.mxu0 0.0
    %2109 = vmatpush1.msra.mxu0 0.0
    %2110 = vmatprep.subr.mxu0 0.0
    %2111 = vmatpush1.msra.mxu0 0.0
    %2112 = vmatprep.subr.mxu0 0.0
    %2113 = vmatpush1.msra.mxu0 0.0
    %2114 = vmatprep.subr.mxu0 0.0
    %2115 = vmatpush1.msra.mxu0 0.0
    %2116 = vmatprep.subr.mxu0 0.0
    %2117 = vmatpush1.msra.mxu0 0.0
    %2118 = vmatprep.subr.mxu0 0.0
    %2119 = vmatpush1.msra.mxu0 0.0
    %2120 = vmatprep.subr.mxu0 0.0
    %2121 = vmatpush1.msra.mxu0 0.0
    %2122 = vmatprep.subr.mxu0 0.0
    %2123 = vmatpush1.msra.mxu0 0.0
    %2124 = vmatprep.subr.mxu0 0.0
    %2125 = vmatpush1.msra.mxu0 0.0
    %2126 = vmatprep.mubr.f32.mxu0 0.0
    %2127 = vmatmul.mubr.f32.gmra.mrb[0].mxu0 %v2027
    %v2128 = vpop.f32.mrb[0].mxu0
    %v2129 = vadd.f32 %v2025, %v2128
    %v2130 = vpop.f32.mrb[0].mxu0
    %2131 = vmatprep.mubr.f32.mxu0 0.0
    %2132 = vmatmul.mubr.f32.gmra.mrb[0].mxu0 %v2030
    %v2133 = vpop.f32.mrb[0].mxu0
    %v2134 = vadd.f32 %v2025, %v2133
    %v2135 = vpop.f32.mrb[0].mxu0
    %2136 = vmatprep.mubr.f32.mxu0 0.0
    %2137 = vmatmul.mubr.f32.gmra.mrb[0].mxu0 %v2033
    %v2138 = vpop.f32.mrb[0].mxu0
    %v2139 = vadd.f32 %v2025, %v2138
    %v2140 = vpop.f32.mrb[0].mxu0
    %2141 = vmatprep.mubr.f32.mxu0 0.0
    %2142 = vmatmul.mubr.f32.gmra.mrb[0].mxu0 %v2036
    %v2143 = vpop.f32.mrb[0].mxu0
    %v2144 = vadd.f32 %v2025, %v2143
    %v2145 = vpop.f32.mrb[0].mxu0
    %2146 = vmatprep.mubr.f32.mxu0 0.0
    %2147 = vmatmul.mubr.f32.gmra.mrb[0].mxu0 %v2039
    %v2148 = vpop.f32.mrb[0].mxu0
    %v2149 = vadd.f32 %v2025, %v2148
    %v2150 = vpop.f32.mrb[0].mxu0
    %2151 = vmatprep.mubr.f32.mxu0 0.0
    %2152 = vmatmul.mubr.f32.gmra.mrb[0].mxu0 %v2042
    %v2153 = vpop.f32.mrb[0].mxu0
    %v2154 = vadd.f32 %v2025, %v2153
    %v2155 = vpop.f32.mrb[0].mxu0
    %2156 = vmatprep.mubr.f32.mxu0 0.0
    %2157 = vmatmul.mubr.f32.gmra.mrb[0].mxu0 %v2045
    %v2158 = vpop.f32.mrb[0].mxu0
    %v2159 = vadd.f32 %v2025, %v2158
    %v2160 = vpop.f32.mrb[0].mxu0
    %2161 = vmatprep.mubr.f32.mxu0 0.0
    %2162 = vmatmul.mubr.f32.gmra.mrb[0].mxu0 %v2048
    %v2163 = vpop.f32.mrb[0].mxu0
    %v2164 = vadd.f32 %v2025, %v2163
    %v2165 = vpop.f32.mrb[0].mxu0
    %2166 = vmatprep.mubr.f32.mxu0 0.0
    %2167 = vmatmul.mubr.f32.gmra.mrb[0].mxu0 %v2051
    %v2168 = vpop.f32.mrb[0].mxu0
    %v2169 = vadd.f32 %v2025, %v2168
    %v2170 = vpop.f32.mrb[0].mxu0
    %2171 = vmatprep.mubr.f32.mxu0 0.0
    %2172 = vmatmul.mubr.f32.gmra.mrb[0].mxu0 %v2054
    %v2173 = vpop.f32.mrb[0].mxu0
    %v2174 = vadd.f32 %v2025, %v2173
    %v2175 = vpop.f32.mrb[0].mxu0
    %2176 = vmatprep.mubr.f32.mxu0 0.0
    %2177 = vmatmul.mubr.f32.gmra.mrb[0].mxu0 %v2057
    %v2178 = vpop.f32.mrb[0].mxu0
    %v2179 = vadd.f32 %v2025, %v2178
    %v2180 = vpop.f32.mrb[0].mxu0
    %2181 = vmatprep.mubr.f32.mxu0 0.0
    %2182 = vmatmul.mubr.f32.gmra.mrb[0].mxu0 %v2060
    %v2183 = vpop.f32.mrb[0].mxu0
    %v2184 = vadd.f32 %v2025, %v2183
    %v2185 = vpop.f32.mrb[0].mxu0
    %2186 = vdwg.mxu0
    %v2187 = vand.u32 2147483647, %v2129
    %v2188 = vand.u32 2147483647, %v2134
    %v2189 = vand.u32 2147483647, %v2139
    %v2190 = vand.u32 2147483647, %v2144
    %v2191 = vand.u32 2147483647, %v2149
    %v2192 = vand.u32 2147483647, %v2154
    %v2193 = vand.u32 2147483647, %v2159
    %v2194 = vand.u32 2147483647, %v2164
    %v2195 = vand.u32 2147483647, %v2169
    %v2196 = vand.u32 2147483647, %v2174
    %v2197 = vand.u32 2147483647, %v2179
    %v2198 = vand.u32 2147483647, %v2184
    %v2199 = vmul.f32 %v2187, 0.70710677
    %v2200 = vmul.f32 %v2188, 0.70710677
    %v2201 = vmul.f32 %v2189, 0.70710677
    %v2202 = vmul.f32 %v2190, 0.70710677
    %v2203 = vmul.f32 %v2191, 0.70710677
    %v2204 = vmul.f32 %v2192, 0.70710677
    %v2205 = vmul.f32 %v2193, 0.70710677
    %v2206 = vmul.f32 %v2194, 0.70710677
    %v2207 = vmul.f32 %v2195, 0.70710677
    %v2208 = vmul.f32 %v2196, 0.70710677
    %v2209 = vmul.f32 %v2197, 0.70710677
    %v2210 = vmul.f32 %v2198, 0.70710677
    %v2211 = vmul.f32 %v2199, %v2199
    %v2212 = vmul.f32 %v2200, %v2200
    %v2213 = vmul.f32 %v2201, %v2201
    %v2214 = vmul.f32 %v2202, %v2202
    %v2215 = vmul.f32 %v2203, %v2203
    %v2216 = vmul.f32 %v2204, %v2204
    %v2217 = vmul.f32 %v2205, %v2205
    %v2218 = vmul.f32 %v2206, %v2206
    %v2219 = vmul.f32 %v2207, %v2207
    %v2220 = vmul.f32 %v2208, %v2208
    %v2221 = vmul.f32 %v2209, %v2209
    %v2222 = vmul.f32 %v2210, %v2210
    %v2223 = vsub.f32 0.0, %v2211
    %v2224 = vsub.f32 0.0, %v2212
    %v2225 = vsub.f32 0.0, %v2213
    %v2226 = vsub.f32 0.0, %v2214
    %v2227 = vsub.f32 0.0, %v2215
    %v2228 = vsub.f32 0.0, %v2216
    %v2229 = vsub.f32 0.0, %v2217
    %v2230 = vsub.f32 0.0, %v2218
    %v2231 = vsub.f32 0.0, %v2219
    %v2232 = vsub.f32 0.0, %v2220
    %v2233 = vsub.f32 0.0, %v2221
    %v2234 = vsub.f32 0.0, %v2222
    %v2235 = vmul.f32 %v2223, 1.442695
    %v2236 = vpow.pop %v2235
    %v2237 = vmul.f32 %v2224, 1.442695
    %v2238 = vpow.pop %v2237
    %v2239 = vmul.f32 %v2225, 1.442695
    %v2240 = vpow.pop %v2239
    %v2241 = vmul.f32 %v2226, 1.442695
    %v2242 = vpow.pop %v2241
    %v2243 = vmul.f32 %v2227, 1.442695
    %v2244 = vpow.pop %v2243
    %v2245 = vmul.f32 %v2228, 1.442695
    %v2246 = vpow.pop %v2245
    %v2247 = vmul.f32 %v2229, 1.442695
    %v2248 = vpow.pop %v2247
    %v2249 = vmul.f32 %v2230, 1.442695
    %v2250 = vpow.pop %v2249
    %v2251 = vmul.f32 %v2231, 1.442695
    %v2252 = vpow.pop %v2251
    %v2253 = vmul.f32 %v2232, 1.442695
    %v2254 = vpow.pop %v2253
    %v2255 = vmul.f32 %v2233, 1.442695
    %v2256 = vpow.pop %v2255
    %v2257 = vmul.f32 %v2234, 1.442695
    %v2258 = vpow.pop %v2257
    %v2259 = vmul.f32 %v2199, 0.3275911
    %v2260 = vmul.f32 %v2200, 0.3275911
    %v2261 = vmul.f32 %v2201, 0.3275911
    %v2262 = vmul.f32 %v2202, 0.3275911
    %v2263 = vmul.f32 %v2203, 0.3275911
    %v2264 = vmul.f32 %v2204, 0.3275911
    %v2265 = vmul.f32 %v2205, 0.3275911
    %v2266 = vmul.f32 %v2206, 0.3275911
    %v2267 = vmul.f32 %v2207, 0.3275911
    %v2268 = vmul.f32 %v2208, 0.3275911
    %v2269 = vmul.f32 %v2209, 0.3275911
    %v2270 = vmul.f32 %v2210, 0.3275911
    %v2271 = vadd.f32 %v2259, 1.0
    %v2272 = vadd.f32 %v2260, 1.0
    %v2273 = vadd.f32 %v2261, 1.0
    %v2274 = vadd.f32 %v2262, 1.0
    %v2275 = vadd.f32 %v2263, 1.0
    %v2276 = vadd.f32 %v2264, 1.0
    %v2277 = vadd.f32 %v2265, 1.0
    %v2278 = vadd.f32 %v2266, 1.0
    %v2279 = vadd.f32 %v2267, 1.0
    %v2280 = vadd.f32 %v2268, 1.0
    %v2281 = vadd.f32 %v2269, 1.0
    %v2282 = vadd.f32 %v2270, 1.0
    %v2283 = vrcp.pop %v2271
    %v2284 = vrcp.pop %v2272
    %v2285 = vrcp.pop %v2273
    %v2286 = vrcp.pop %v2274
    %v2287 = vrcp.pop %v2275
    %v2288 = vrcp.pop %v2276
    %v2289 = vrcp.pop %v2277
    %v2290 = vrcp.pop %v2278
    %v2291 = vrcp.pop %v2279
    %v2292 = vrcp.pop %v2280
    %v2293 = vrcp.pop %v2281
    %v2294 = vrcp.pop %v2282
    %v2295 = vmul.f32 %v2283, 1.0614054
    %v2296 = vmul.f32 %v2284, 1.0614054
    %v2297 = vmul.f32 %v2285, 1.0614054
    %v2298 = vmul.f32 %v2286, 1.0614054
    %v2299 = vmul.f32 %v2287, 1.0614054
    %v2300 = vmul.f32 %v2288, 1.0614054
    %v2301 = vmul.f32 %v2289, 1.0614054
    %v2302 = vmul.f32 %v2290, 1.0614054
    %v2303 = vmul.f32 %v2291, 1.0614054
    %v2304 = vmul.f32 %v2292, 1.0614054
    %v2305 = vmul.f32 %v2293, 1.0614054
    %v2306 = vmul.f32 %v2294, 1.0614054
    %v2307 = vadd.f32 %v2295, -1.4531521
    %v2308 = vadd.f32 %v2296, -1.4531521
    %v2309 = vadd.f32 %v2297, -1.4531521
    %v2310 = vadd.f32 %v2298, -1.4531521
    %v2311 = vadd.f32 %v2299, -1.4531521
    %v2312 = vadd.f32 %v2300, -1.4531521
    %v2313 = vadd.f32 %v2301, -1.4531521
    %v2314 = vadd.f32 %v2302, -1.4531521
    %v2315 = vadd.f32 %v2303, -1.4531521
    %v2316 = vadd.f32 %v2304, -1.4531521
    %v2317 = vadd.f32 %v2305, -1.4531521
    %v2318 = vadd.f32 %v2306, -1.4531521
    %v2319 = vmul.f32 %v2307, %v2283
    %v2320 = vmul.f32 %v2308, %v2284
    %v2321 = vmul.f32 %v2309, %v2285
    %v2322 = vmul.f32 %v2310, %v2286
    %v2323 = vmul.f32 %v2311, %v2287
    %v2324 = vmul.f32 %v2312, %v2288
    %v2325 = vmul.f32 %v2313, %v2289
    %v2326 = vmul.f32 %v2314, %v2290
    %v2327 = vmul.f32 %v2315, %v2291
    %v2328 = vmul.f32 %v2316, %v2292
    %v2329 = vmul.f32 %v2317, %v2293
    %v2330 = vmul.f32 %v2318, %v2294
    %v2331 = vadd.f32 %v2319, 1.4214138
    %v2332 = vadd.f32 %v2320, 1.4214138
    %v2333 = vadd.f32 %v2321, 1.4214138
    %v2334 = vadd.f32 %v2322, 1.4214138
    %v2335 = vadd.f32 %v2323, 1.4214138
    %v2336 = vadd.f32 %v2324, 1.4214138
    %v2337 = vadd.f32 %v2325, 1.4214138
    %v2338 = vadd.f32 %v2326, 1.4214138
    %v2339 = vadd.f32 %v2327, 1.4214138
    %v2340 = vadd.f32 %v2328, 1.4214138
    %v2341 = vadd.f32 %v2329, 1.4214138
    %v2342 = vadd.f32 %v2330, 1.4214138
    %v2343 = vmul.f32 %v2331, %v2283
    %v2344 = vmul.f32 %v2332, %v2284
    %v2345 = vmul.f32 %v2333, %v2285
    %v2346 = vmul.f32 %v2334, %v2286
    %v2347 = vmul.f32 %v2335, %v2287
    %v2348 = vmul.f32 %v2336, %v2288
    %v2349 = vmul.f32 %v2337, %v2289
    %v2350 = vmul.f32 %v2338, %v2290
    %v2351 = vmul.f32 %v2339, %v2291
    %v2352 = vmul.f32 %v2340, %v2292
    %v2353 = vmul.f32 %v2341, %v2293
    %v2354 = vmul.f32 %v2342, %v2294
    %v2355 = vadd.f32 %v2343, -0.28449672
    %v2356 = vadd.f32 %v2344, -0.28449672
    %v2357 = vadd.f32 %v2345, -0.28449672
    %v2358 = vadd.f32 %v2346, -0.28449672
    %v2359 = vadd.f32 %v2347, -0.28449672
    %v2360 = vadd.f32 %v2348, -0.28449672
    %v2361 = vadd.f32 %v2349, -0.28449672
    %v2362 = vadd.f32 %v2350, -0.28449672
    %v2363 = vadd.f32 %v2351, -0.28449672
    %v2364 = vadd.f32 %v2352, -0.28449672
    %v2365 = vadd.f32 %v2353, -0.28449672
    %v2366 = vadd.f32 %v2354, -0.28449672
    %v2367 = vmul.f32 %v2355, %v2283
    %v2368 = vmul.f32 %v2356, %v2284
    %v2369 = vmul.f32 %v2357, %v2285
    %v2370 = vmul.f32 %v2358, %v2286
    %v2371 = vmul.f32 %v2359, %v2287
    %v2372 = vmul.f32 %v2360, %v2288
    %v2373 = vmul.f32 %v2361, %v2289
    %v2374 = vmul.f32 %v2362, %v2290
    %v2375 = vmul.f32 %v2363, %v2291
    %v2376 = vmul.f32 %v2364, %v2292
    %v2377 = vmul.f32 %v2365, %v2293
    %v2378 = vmul.f32 %v2366, %v2294
    %v2379 = vadd.f32 %v2367, 0.2548296
    %v2380 = vadd.f32 %v2368, 0.2548296
    %v2381 = vadd.f32 %v2369, 0.2548296
    %v2382 = vadd.f32 %v2370, 0.2548296
    %v2383 = vadd.f32 %v2371, 0.2548296
    %v2384 = vadd.f32 %v2372, 0.2548296
    %v2385 = vadd.f32 %v2373, 0.2548296
    %v2386 = vadd.f32 %v2374, 0.2548296
    %v2387 = vadd.f32 %v2375, 0.2548296
    %v2388 = vadd.f32 %v2376, 0.2548296
    %v2389 = vadd.f32 %v2377, 0.2548296
    %v2390 = vadd.f32 %v2378, 0.2548296
    %v2391 = vmul.f32 %v2379, %v2283
    %v2392 = vmul.f32 %v2380, %v2284
    %v2393 = vmul.f32 %v2381, %v2285
    %v2394 = vmul.f32 %v2382, %v2286
    %v2395 = vmul.f32 %v2383, %v2287
    %v2396 = vmul.f32 %v2384, %v2288
    %v2397 = vmul.f32 %v2385, %v2289
    %v2398 = vmul.f32 %v2386, %v2290
    %v2399 = vmul.f32 %v2387, %v2291
    %v2400 = vmul.f32 %v2388, %v2292
    %v2401 = vmul.f32 %v2389, %v2293
    %v2402 = vmul.f32 %v2390, %v2294
    %v2403 = vadd.f32 %v2129, %v2187
    %v2404 = vadd.f32 %v2134, %v2188
    %v2405 = vadd.f32 %v2139, %v2189
    %v2406 = vadd.f32 %v2144, %v2190
    %v2407 = vadd.f32 %v2149, %v2191
    %v2408 = vadd.f32 %v2154, %v2192
    %v2409 = vadd.f32 %v2159, %v2193
    %v2410 = vadd.f32 %v2164, %v2194
    %v2411 = vadd.f32 %v2169, %v2195
    %v2412 = vadd.f32 %v2174, %v2196
    %v2413 = vadd.f32 %v2179, %v2197
    %v2414 = vadd.f32 %v2184, %v2198
    %v2415 = vmul.f32 %v2403, 0.5
    %v2416 = vmul.f32 %v2404, 0.5
    %v2417 = vmul.f32 %v2405, 0.5
    %v2418 = vmul.f32 %v2406, 0.5
    %v2419 = vmul.f32 %v2407, 0.5
    %v2420 = vmul.f32 %v2408, 0.5
    %v2421 = vmul.f32 %v2409, 0.5
    %v2422 = vmul.f32 %v2410, 0.5
    %v2423 = vmul.f32 %v2411, 0.5
    %v2424 = vmul.f32 %v2412, 0.5
    %v2425 = vmul.f32 %v2413, 0.5
    %v2426 = vmul.f32 %v2414, 0.5
    %v2427 = vmul.f32 %v2187, 0.5
    %v2428 = vmul.f32 %v2188, 0.5
    %v2429 = vmul.f32 %v2189, 0.5
    %v2430 = vmul.f32 %v2190, 0.5
    %v2431 = vmul.f32 %v2191, 0.5
    %v2432 = vmul.f32 %v2192, 0.5
    %v2433 = vmul.f32 %v2193, 0.5
    %v2434 = vmul.f32 %v2194, 0.5
    %v2435 = vmul.f32 %v2195, 0.5
    %v2436 = vmul.f32 %v2196, 0.5
    %v2437 = vmul.f32 %v2197, 0.5
    %v2438 = vmul.f32 %v2198, 0.5
    %v2439 = vmul.f32 %v2391, %v2236
    %v2440 = vmul.f32 %v2392, %v2238
    %v2441 = vmul.f32 %v2393, %v2240
    %v2442 = vmul.f32 %v2394, %v2242
    %v2443 = vmul.f32 %v2395, %v2244
    %v2444 = vmul.f32 %v2396, %v2246
    %v2445 = vmul.f32 %v2397, %v2248
    %v2446 = vmul.f32 %v2398, %v2250
    %v2447 = vmul.f32 %v2399, %v2252
    %v2448 = vmul.f32 %v2400, %v2254
    %v2449 = vmul.f32 %v2401, %v2256
    %v2450 = vmul.f32 %v2402, %v2258
    %v2451 = vmul.f32 %v2427, %v2439
    %v2452 = vmul.f32 %v2428, %v2440
    %v2453 = vmul.f32 %v2429, %v2441
    %v2454 = vmul.f32 %v2430, %v2442
    %v2455 = vmul.f32 %v2431, %v2443
    %v2456 = vmul.f32 %v2432, %v2444
    %v2457 = vmul.f32 %v2433, %v2445
    %v2458 = vmul.f32 %v2434, %v2446
    %v2459 = vmul.f32 %v2435, %v2447
    %v2460 = vmul.f32 %v2436, %v2448
    %v2461 = vmul.f32 %v2437, %v2449
    %v2462 = vmul.f32 %v2438, %v2450
    %v2463 = vsub.f32 %v2415, %v2451
    %v2464 = vsub.f32 %v2416, %v2452
    %v2465 = vsub.f32 %v2417, %v2453
    %v2466 = vsub.f32 %v2418, %v2454
    %v2467 = vsub.f32 %v2419, %v2455
    %v2468 = vsub.f32 %v2420, %v2456
    %v2469 = vsub.f32 %v2421, %v2457
    %v2470 = vsub.f32 %v2422, %v2458
    %v2471 = vsub.f32 %v2423, %v2459
    %v2472 = vsub.f32 %v2424, %v2460
    %v2473 = vsub.f32 %v2425, %v2461
    %v2474 = vsub.f32 %v2426, %v2462
    %v2475 = vld [vmem:[#allocation2 + $0x188] sm:$0xff]
    %v2476 = vld [vmem:[#allocation2 + $0x190] sm:$0xff]
    %v2477 = vld [vmem:[#allocation2 + $0x198] sm:$0xff]
    %v2478 = vld [vmem:[#allocation2 + $0x1a0] sm:$0xff]
    %v2479 = vld [vmem:[#allocation2 + $0x1a8] sm:$0xff]
    %v2480 = vld [vmem:[#allocation2 + $0x1b0] sm:$0xff]
    %v2481 = vld [vmem:[#allocation2 + $0x1b8] sm:$0xff]
    %v2482 = vld [vmem:[#allocation2 + $0x1c0] sm:$0xff]
    %v2483 = vld [vmem:[#allocation2 + $0x1c8] sm:$0xff]
    %v2484 = vld [vmem:[#allocation2 + $0x1d0] sm:$0xff]
    %v2485 = vld [vmem:[#allocation2 + $0x1d8] sm:$0xff]
    %v2486 = vld [vmem:[#allocation2 + $0x1e0] sm:$0xff]
    %v2487 = vld [vmem:[#allocation2 + $0x1e8] sm:$0xff]
    %v2488 = vld [vmem:[#allocation2 + $0x1f0] sm:$0xff]
    %v2489 = vld [vmem:[#allocation2 + $0x1f8] sm:$0xff]
    %v2490 = vld [vmem:[#allocation2 + $0x200] sm:$0xff]
    %2491 = vmatprep.subr.mxu0 0.0
    %2492 = vmatpush1.msra.mxu0 %v2475
    %2493 = vmatprep.subr.mxu0 0.0
    %2494 = vmatpush1.msra.mxu0 %v2476
    %2495 = vmatprep.subr.mxu0 0.0
    %2496 = vmatpush1.msra.mxu0 %v2477
    %2497 = vmatprep.subr.mxu0 0.0
    %2498 = vmatpush1.msra.mxu0 %v2478
    %2499 = vmatprep.subr.mxu0 0.0
    %2500 = vmatpush1.msra.mxu0 %v2479
    %2501 = vmatprep.subr.mxu0 0.0
    %2502 = vmatpush1.msra.mxu0 %v2480
    %2503 = vmatprep.subr.mxu0 0.0
    %2504 = vmatpush1.msra.mxu0 %v2481
    %2505 = vmatprep.subr.mxu0 0.0
    %2506 = vmatpush1.msra.mxu0 %v2482
    %2507 = vmatprep.subr.mxu0 0.0
    %2508 = vmatpush1.msra.mxu0 %v2483
    %2509 = vmatprep.subr.mxu0 0.0
    %2510 = vmatpush1.msra.mxu0 %v2484
    %2511 = vmatprep.subr.mxu0 0.0
    %2512 = vmatpush1.msra.mxu0 %v2485
    %2513 = vmatprep.subr.mxu0 0.0
    %2514 = vmatpush1.msra.mxu0 %v2486
    %2515 = vmatprep.subr.mxu0 0.0
    %2516 = vmatpush1.msra.mxu0 %v2487
    %2517 = vmatprep.subr.mxu0 0.0
    %2518 = vmatpush1.msra.mxu0 %v2488
    %2519 = vmatprep.subr.mxu0 0.0
    %2520 = vmatpush1.msra.mxu0 %v2489
    %2521 = vmatprep.subr.mxu0 0.0
    %2522 = vmatpush1.msra.mxu0 %v2490
    %2523 = vmatprep.subr.mxu0 0.0
    %2524 = vmatpush1.msra.mxu0 0.0
    %2525 = vmatprep.subr.mxu0 0.0
    %2526 = vmatpush1.msra.mxu0 0.0
    %2527 = vmatprep.subr.mxu0 0.0
    %2528 = vmatpush1.msra.mxu0 0.0
    %2529 = vmatprep.subr.mxu0 0.0
    %2530 = vmatpush1.msra.mxu0 0.0
    %2531 = vmatprep.subr.mxu0 0.0
    %2532 = vmatpush1.msra.mxu0 0.0
    %2533 = vmatprep.subr.mxu0 0.0
    %2534 = vmatpush1.msra.mxu0 0.0
    %2535 = vmatprep.subr.mxu0 0.0
    %2536 = vmatpush1.msra.mxu0 0.0
    %2537 = vmatprep.subr.mxu0 0.0
    %2538 = vmatpush1.msra.mxu0 0.0
    %2539 = vmatprep.subr.mxu0 0.0
    %2540 = vmatpush1.msra.mxu0 0.0
    %2541 = vmatprep.subr.mxu0 0.0
    %2542 = vmatpush1.msra.mxu0 0.0
    %2543 = vmatprep.subr.mxu0 0.0
    %2544 = vmatpush1.msra.mxu0 0.0
    %2545 = vmatprep.subr.mxu0 0.0
    %2546 = vmatpush1.msra.mxu0 0.0
    %2547 = vmatprep.subr.mxu0 0.0
    %2548 = vmatpush1.msra.mxu0 0.0
    %2549 = vmatprep.subr.mxu0 0.0
    %2550 = vmatpush1.msra.mxu0 0.0
    %2551 = vmatprep.subr.mxu0 0.0
    %2552 = vmatpush1.msra.mxu0 0.0
    %2553 = vmatprep.subr.mxu0 0.0
    %2554 = vmatpush1.msra.mxu0 0.0
    %2555 = vmatprep.mubr.f32.mxu0 0.0
    %2556 = vmatmul.mubr.f32.gmra.mrb[0].mxu0 %v2463
    %v2557 = vpop.f32.mrb[0].mxu0
    %v2558 = vadd.f32 0.0, %v2557
    %v2559 = vpop.f32.mrb[0].mxu0
    %2560 = vmatprep.mubr.f32.mxu0 0.0
    %2561 = vmatmul.mubr.f32.gmra.mrb[0].mxu0 %v2464
    %v2562 = vpop.f32.mrb[0].mxu0
    %v2563 = vadd.f32 0.0, %v2562
    %v2564 = vpop.f32.mrb[0].mxu0
    %2565 = vmatprep.mubr.f32.mxu0 0.0
    %2566 = vmatmul.mubr.f32.gmra.mrb[0].mxu0 %v2465
    %v2567 = vpop.f32.mrb[0].mxu0
    %v2568 = vadd.f32 0.0, %v2567
    %v2569 = vpop.f32.mrb[0].mxu0
    %2570 = vmatprep.mubr.f32.mxu0 0.0
    %2571 = vmatmul.mubr.f32.gmra.mrb[0].mxu0 %v2466
    %v2572 = vpop.f32.mrb[0].mxu0
    %v2573 = vadd.f32 0.0, %v2572
    %v2574 = vpop.f32.mrb[0].mxu0
    %2575 = vmatprep.mubr.f32.mxu0 0.0
    %2576 = vmatmul.mubr.f32.gmra.mrb[0].mxu0 %v2467
    %v2577 = vpop.f32.mrb[0].mxu0
    %v2578 = vadd.f32 0.0, %v2577
    %v2579 = vpop.f32.mrb[0].mxu0
    %2580 = vmatprep.mubr.f32.mxu0 0.0
    %2581 = vmatmul.mubr.f32.gmra.mrb[0].mxu0 %v2468
    %v2582 = vpop.f32.mrb[0].mxu0
    %v2583 = vadd.f32 0.0, %v2582
    %v2584 = vpop.f32.mrb[0].mxu0
    %2585 = vmatprep.mubr.f32.mxu0 0.0
    %2586 = vmatmul.mubr.f32.gmra.mrb[0].mxu0 %v2469
    %v2587 = vpop.f32.mrb[0].mxu0
    %v2588 = vadd.f32 0.0, %v2587
    %v2589 = vpop.f32.mrb[0].mxu0
    %2590 = vmatprep.mubr.f32.mxu0 0.0
    %2591 = vmatmul.mubr.f32.gmra.mrb[0].mxu0 %v2470
    %v2592 = vpop.f32.mrb[0].mxu0
    %v2593 = vadd.f32 0.0, %v2592
    %v2594 = vpop.f32.mrb[0].mxu0
    %2595 = vmatprep.mubr.f32.mxu0 0.0
    %2596 = vmatmul.mubr.f32.gmra.mrb[0].mxu0 %v2471
    %v2597 = vpop.f32.mrb[0].mxu0
    %v2598 = vadd.f32 0.0, %v2597
    %v2599 = vpop.f32.mrb[0].mxu0
    %2600 = vmatprep.mubr.f32.mxu0 0.0
    %2601 = vmatmul.mubr.f32.gmra.mrb[0].mxu0 %v2472
    %v2602 = vpop.f32.mrb[0].mxu0
    %v2603 = vadd.f32 0.0, %v2602
    %v2604 = vpop.f32.mrb[0].mxu0
    %2605 = vmatprep.mubr.f32.mxu0 0.0
    %2606 = vmatmul.mubr.f32.gmra.mrb[0].mxu0 %v2473
    %v2607 = vpop.f32.mrb[0].mxu0
    %v2608 = vadd.f32 0.0, %v2607
    %v2609 = vpop.f32.mrb[0].mxu0
    %2610 = vmatprep.mubr.f32.mxu0 0.0
    %2611 = vmatmul.mubr.f32.gmra.mrb[0].mxu0 %v2474
    %v2612 = vpop.f32.mrb[0].mxu0
    %v2613 = vadd.f32 0.0, %v2612
    %v2614 = vpop.f32.mrb[0].mxu0
    %2615 = vdwg.mxu0
    %v2616 = vadd.f32 %v1815, %v2558
    %v2617 = vadd.f32 %v1816, %v2563
    %v2618 = vadd.f32 %v1817, %v2568
    %v2619 = vadd.f32 %v1818, %v2573
    %v2620 = vadd.f32 %v1819, %v2578
    %v2621 = vadd.f32 %v1820, %v2583
    %v2622 = vadd.f32 %v1821, %v2588
    %v2623 = vadd.f32 %v1822, %v2593
    %v2624 = vadd.f32 %v1823, %v2598
    %v2625 = vadd.f32 %v1824, %v2603
    %v2626 = vadd.f32 %v1825, %v2608
    %v2627 = vadd.f32 %v1826, %v2613
    %v2628 = vld [vmem:[#allocation2 + $0x208] sm:$0x1]
    %v2629 = vlaneseq
    %v2630 = vshrl.u32 %v2629, 7
    %v2631 = vsub.s32 0, %v2630
    %v2632 = vrot.slane %v2628, %v2631
    %v2633 = vadd.f32 %v2616, %v2632
    %v2634 = vadd.f32 %v2617, %v2632
    %v2635 = vadd.f32 %v2618, %v2632
    %v2636 = vadd.f32 %v2619, %v2632
    %v2637 = vadd.f32 %v2620, %v2632
    %v2638 = vadd.f32 %v2621, %v2632
    %v2639 = vadd.f32 %v2622, %v2632
    %v2640 = vadd.f32 %v2623, %v2632
    %v2641 = vadd.f32 %v2624, %v2632
    %v2642 = vadd.f32 %v2625, %v2632
    %v2643 = vadd.f32 %v2626, %v2632
    %v2644 = vadd.f32 %v2627, %v2632
    %v2645 = vld [vmem:[#allocation2 + $0x210] sm:$0x1]
    %v2646 = vld [vmem:[#allocation2 + $0x211] sm:$0x1]
    %v2647 = vsel %vm1158, %v2633, 0.0
    %2648 = vadd.xlane.f32.xlu0 %v2647
    %v2649 = vpop.xlane.xlu0 %2648
    %v2650 = vsel %vm1158, %v2634, 0.0
    %2651 = vadd.xlane.f32.xlu0 %v2650
    %v2652 = vpop.xlane.xlu0 %2651
    %v2653 = vsel %vm1158, %v2635, 0.0
    %2654 = vadd.xlane.f32.xlu0 %v2653
    %v2655 = vpop.xlane.xlu0 %2654
    %v2656 = vsel %vm1158, %v2636, 0.0
    %2657 = vadd.xlane.f32.xlu0 %v2656
    %v2658 = vpop.xlane.xlu0 %2657
    %v2659 = vsel %vm1158, %v2637, 0.0
    %2660 = vadd.xlane.f32.xlu0 %v2659
    %v2661 = vpop.xlane.xlu0 %2660
    %v2662 = vsel %vm1158, %v2638, 0.0
    %2663 = vadd.xlane.f32.xlu0 %v2662
    %v2664 = vpop.xlane.xlu0 %2663
    %v2665 = vsel %vm1158, %v2639, 0.0
    %2666 = vadd.xlane.f32.xlu0 %v2665
    %v2667 = vpop.xlane.xlu0 %2666
    %v2668 = vsel %vm1158, %v2640, 0.0
    %2669 = vadd.xlane.f32.xlu0 %v2668
    %v2670 = vpop.xlane.xlu0 %2669
    %v2671 = vsel %vm1158, %v2641, 0.0
    %2672 = vadd.xlane.f32.xlu0 %v2671
    %v2673 = vpop.xlane.xlu0 %2672
    %v2674 = vsel %vm1158, %v2642, 0.0
    %2675 = vadd.xlane.f32.xlu0 %v2674
    %v2676 = vpop.xlane.xlu0 %2675
    %v2677 = vsel %vm1158, %v2643, 0.0
    %2678 = vadd.xlane.f32.xlu0 %v2677
    %v2679 = vpop.xlane.xlu0 %2678
    %v2680 = vsel %vm1158, %v2644, 0.0
    %2681 = vadd.xlane.f32.xlu0 %v2680
    %v2682 = vpop.xlane.xlu0 %2681
    %v2683 = vmul.f32 %v2649, %v1195
    %v2684 = vmul.f32 %v2652, %v1195
    %v2685 = vmul.f32 %v2655, %v1195
    %v2686 = vmul.f32 %v2658, %v1195
    %v2687 = vmul.f32 %v2661, %v1195
    %v2688 = vmul.f32 %v2664, %v1195
    %v2689 = vmul.f32 %v2667, %v1195
    %v2690 = vmul.f32 %v2670, %v1195
    %v2691 = vmul.f32 %v2673, %v1195
    %v2692 = vmul.f32 %v2676, %v1195
    %v2693 = vmul.f32 %v2679, %v1195
    %v2694 = vmul.f32 %v2682, %v1195
    %v2695 = vsub.f32 %v2633, %v2683
    %v2696 = vsub.f32 %v2634, %v2684
    %v2697 = vsub.f32 %v2635, %v2685
    %v2698 = vsub.f32 %v2636, %v2686
    %v2699 = vsub.f32 %v2637, %v2687
    %v2700 = vsub.f32 %v2638, %v2688
    %v2701 = vsub.f32 %v2639, %v2689
    %v2702 = vsub.f32 %v2640, %v2690
    %v2703 = vsub.f32 %v2641, %v2691
    %v2704 = vsub.f32 %v2642, %v2692
    %v2705 = vsub.f32 %v2643, %v2693
    %v2706 = vsub.f32 %v2644, %v2694
    %v2707 = vmul.f32 %v2695, %v2695
    %v2708 = vmul.f32 %v2696, %v2696
    %v2709 = vmul.f32 %v2697, %v2697
    %v2710 = vmul.f32 %v2698, %v2698
    %v2711 = vmul.f32 %v2699, %v2699
    %v2712 = vmul.f32 %v2700, %v2700
    %v2713 = vmul.f32 %v2701, %v2701
    %v2714 = vmul.f32 %v2702, %v2702
    %v2715 = vmul.f32 %v2703, %v2703
    %v2716 = vmul.f32 %v2704, %v2704
    %v2717 = vmul.f32 %v2705, %v2705
    %v2718 = vmul.f32 %v2706, %v2706
    %v2719 = vsel %vm1158, %v2707, 0.0
    %2720 = vadd.xlane.f32.xlu0 %v2719
    %v2721 = vpop.xlane.xlu0 %2720
    %v2722 = vsel %vm1158, %v2708, 0.0
    %2723 = vadd.xlane.f32.xlu0 %v2722
    %v2724 = vpop.xlane.xlu0 %2723
    %v2725 = vsel %vm1158, %v2709, 0.0
    %2726 = vadd.xlane.f32.xlu0 %v2725
    %v2727 = vpop.xlane.xlu0 %2726
    %v2728 = vsel %vm1158, %v2710, 0.0
    %2729 = vadd.xlane.f32.xlu0 %v2728
    %v2730 = vpop.xlane.xlu0 %2729
    %v2731 = vsel %vm1158, %v2711, 0.0
    %2732 = vadd.xlane.f32.xlu0 %v2731
    %v2733 = vpop.xlane.xlu0 %2732
    %v2734 = vsel %vm1158, %v2712, 0.0
    %2735 = vadd.xlane.f32.xlu0 %v2734
    %v2736 = vpop.xlane.xlu0 %2735
    %v2737 = vsel %vm1158, %v2713, 0.0
    %2738 = vadd.xlane.f32.xlu0 %v2737
    %v2739 = vpop.xlane.xlu0 %2738
    %v2740 = vsel %vm1158, %v2714, 0.0
    %2741 = vadd.xlane.f32.xlu0 %v2740
    %v2742 = vpop.xlane.xlu0 %2741
    %v2743 = vsel %vm1158, %v2715, 0.0
    %2744 = vadd.xlane.f32.xlu0 %v2743
    %v2745 = vpop.xlane.xlu0 %2744
    %v2746 = vsel %vm1158, %v2716, 0.0
    %2747 = vadd.xlane.f32.xlu0 %v2746
    %v2748 = vpop.xlane.xlu0 %2747
    %v2749 = vsel %vm1158, %v2717, 0.0
    %2750 = vadd.xlane.f32.xlu0 %v2749
    %v2751 = vpop.xlane.xlu0 %2750
    %v2752 = vsel %vm1158, %v2718, 0.0
    %2753 = vadd.xlane.f32.xlu0 %v2752
    %v2754 = vpop.xlane.xlu0 %2753
    %v2755 = vmul.f32 %v2721, %v1195
    %v2756 = vmul.f32 %v2724, %v1195
    %v2757 = vmul.f32 %v2727, %v1195
    %v2758 = vmul.f32 %v2730, %v1195
    %v2759 = vmul.f32 %v2733, %v1195
    %v2760 = vmul.f32 %v2736, %v1195
    %v2761 = vmul.f32 %v2739, %v1195
    %v2762 = vmul.f32 %v2742, %v1195
    %v2763 = vmul.f32 %v2745, %v1195
    %v2764 = vmul.f32 %v2748, %v1195
    %v2765 = vmul.f32 %v2751, %v1195
    %v2766 = vmul.f32 %v2754, %v1195
    %v2767 = vadd.f32 %v2755, 1e-05
    %v2768 = vadd.f32 %v2756, 1e-05
    %v2769 = vadd.f32 %v2757, 1e-05
    %v2770 = vadd.f32 %v2758, 1e-05
    %v2771 = vadd.f32 %v2759, 1e-05
    %v2772 = vadd.f32 %v2760, 1e-05
    %v2773 = vadd.f32 %v2761, 1e-05
    %v2774 = vadd.f32 %v2762, 1e-05
    %v2775 = vadd.f32 %v2763, 1e-05
    %v2776 = vadd.f32 %v2764, 1e-05
    %v2777 = vadd.f32 %v2765, 1e-05
    %v2778 = vadd.f32 %v2766, 1e-05
    %v2779 = vrsqrt.pop %v2767
    %v2780 = vrsqrt.pop %v2768
    %v2781 = vrsqrt.pop %v2769
    %v2782 = vrsqrt.pop %v2770
    %v2783 = vrsqrt.pop %v2771
    %v2784 = vrsqrt.pop %v2772
    %v2785 = vrsqrt.pop %v2773
    %v2786 = vrsqrt.pop %v2774
    %v2787 = vrsqrt.pop %v2775
    %v2788 = vrsqrt.pop %v2776
    %v2789 = vrsqrt.pop %v2777
    %v2790 = vrsqrt.pop %v2778
    %v2791 = vmul.f32 %v2695, %v2779
    %v2792 = vmul.f32 %v2696, %v2780
    %v2793 = vmul.f32 %v2697, %v2781
    %v2794 = vmul.f32 %v2698, %v2782
    %v2795 = vmul.f32 %v2699, %v2783
    %v2796 = vmul.f32 %v2700, %v2784
    %v2797 = vmul.f32 %v2701, %v2785
    %v2798 = vmul.f32 %v2702, %v2786
    %v2799 = vmul.f32 %v2703, %v2787
    %v2800 = vmul.f32 %v2704, %v2788
    %v2801 = vmul.f32 %v2705, %v2789
    %v2802 = vmul.f32 %v2706, %v2790
    %v2803 = vlaneseq
    %v2804 = vshrl.u32 %v2803, 7
    %v2805 = vsub.s32 0, %v2804
    %v2806 = vrot.slane %v2645, %v2805
    %v2807 = vmul.f32 %v2791, %v2806
    %v2808 = vmul.f32 %v2792, %v2806
    %v2809 = vmul.f32 %v2793, %v2806
    %v2810 = vmul.f32 %v2794, %v2806
    %v2811 = vmul.f32 %v2795, %v2806
    %v2812 = vmul.f32 %v2796, %v2806
    %v2813 = vmul.f32 %v2797, %v2806
    %v2814 = vmul.f32 %v2798, %v2806
    %v2815 = vmul.f32 %v2799, %v2806
    %v2816 = vmul.f32 %v2800, %v2806
    %v2817 = vmul.f32 %v2801, %v2806
    %v2818 = vmul.f32 %v2802, %v2806
    %v2819 = vlaneseq
    %v2820 = vshrl.u32 %v2819, 7
    %v2821 = vsub.s32 0, %v2820
    %v2822 = vrot.slane %v2646, %v2821
    %v2823 = vadd.f32 %v2807, %v2822
    %v2824 = vadd.f32 %v2808, %v2822
    %v2825 = vadd.f32 %v2809, %v2822
    %v2826 = vadd.f32 %v2810, %v2822
    %v2827 = vadd.f32 %v2811, %v2822
    %v2828 = vadd.f32 %v2812, %v2822
    %v2829 = vadd.f32 %v2813, %v2822
    %v2830 = vadd.f32 %v2814, %v2822
    %v2831 = vadd.f32 %v2815, %v2822
    %v2832 = vadd.f32 %v2816, %v2822
    %v2833 = vadd.f32 %v2817, %v2822
    %v2834 = vadd.f32 %v2818, %v2822
    %v2835 = vld [vmem:[#allocation2 + $0x218] sm:$0xff]
    %v2836 = vld [vmem:[#allocation2 + $0x220] sm:$0xff]
    %v2837 = vld [vmem:[#allocation2 + $0x228] sm:$0xff]
    %v2838 = vld [vmem:[#allocation2 + $0x230] sm:$0xff]
    %v2839 = vld [vmem:[#allocation2 + $0x238] sm:$0xff]
    %v2840 = vld [vmem:[#allocation2 + $0x240] sm:$0xff]
    %v2841 = vld [vmem:[#allocation2 + $0x248] sm:$0xff]
    %v2842 = vld [vmem:[#allocation2 + $0x250] sm:$0xff]
    %v2843 = vld [vmem:[#allocation2 + $0x258] sm:$0xff]
    %v2844 = vld [vmem:[#allocation2 + $0x260] sm:$0xff]
    %v2845 = vld [vmem:[#allocation2 + $0x268] sm:$0xff]
    %v2846 = vld [vmem:[#allocation2 + $0x270] sm:$0xff]
    %v2848 = vsel %vm1360, %v2835, 0
    %v2851 = vsel %vm1360, %v2836, 0
    %v2854 = vsel %vm1360, %v2837, 0
    %v2857 = vsel %vm1360, %v2838, 0
    %v2860 = vsel %vm1360, %v2839, 0
    %v2863 = vsel %vm1360, %v2840, 0
    %2865 = vmatprep.subr.mxu0 0.0
    %2866 = vmatpush1.msra.mxu0 %v2823
    %2867 = vmatprep.subr.mxu0 0.0
    %2868 = vmatpush1.msra.mxu0 %v2824
    %2869 = vmatprep.subr.mxu0 0.0
    %2870 = vmatpush1.msra.mxu0 %v2825
    %2871 = vmatprep.subr.mxu0 0.0
    %2872 = vmatpush1.msra.mxu0 %v2826
    %2873 = vmatprep.subr.mxu0 0.0
    %2874 = vmatpush1.msra.mxu0 %v2827
    %2875 = vmatprep.subr.mxu0 0.0
    %2876 = vmatpush1.msra.mxu0 %v2828
    %2877 = vmatprep.subr.mxu0 0.0
    %2878 = vmatpush1.msra.mxu0 %v2829
    %2879 = vmatprep.subr.mxu0 0.0
    %2880 = vmatpush1.msra.mxu0 %v2830
    %2881 = vmatprep.subr.mxu0 0.0
    %2882 = vmatpush1.msra.mxu0 %v2831
    %2883 = vmatprep.subr.mxu0 0.0
    %2884 = vmatpush1.msra.mxu0 %v2832
    %2885 = vmatprep.subr.mxu0 0.0
    %2886 = vmatpush1.msra.mxu0 %v2833
    %2887 = vmatprep.subr.mxu0 0.0
    %2888 = vmatpush1.msra.mxu0 %v2834
    %2889 = vmatprep.subr.mxu0 0.0
    %2890 = vmatpush1.msra.mxu0 0.0
    %2891 = vmatprep.subr.mxu0 0.0
    %2892 = vmatpush1.msra.mxu0 0.0
    %2893 = vmatprep.subr.mxu0 0.0
    %2894 = vmatpush1.msra.mxu0 0.0
    %2895 = vmatprep.subr.mxu0 0.0
    %2896 = vmatpush1.msra.mxu0 0.0
    %2897 = vmatprep.subr.mxu0 0.0
    %2898 = vmatpush1.msra.mxu0 0.0
    %2899 = vmatprep.subr.mxu0 0.0
    %2900 = vmatpush1.msra.mxu0 0.0
    %2901 = vmatprep.subr.mxu0 0.0
    %2902 = vmatpush1.msra.mxu0 0.0
    %2903 = vmatprep.subr.mxu0 0.0
    %2904 = vmatpush1.msra.mxu0 0.0
    %2905 = vmatprep.subr.mxu0 0.0
    %2906 = vmatpush1.msra.mxu0 0.0
    %2907 = vmatprep.subr.mxu0 0.0
    %2908 = vmatpush1.msra.mxu0 0.0
    %2909 = vmatprep.subr.mxu0 0.0
    %2910 = vmatpush1.msra.mxu0 0.0
    %2911 = vmatprep.subr.mxu0 0.0
    %2912 = vmatpush1.msra.mxu0 0.0
    %2913 = vmatprep.subr.mxu0 0.0
    %2914 = vmatpush1.msra.mxu0 0.0
    %2915 = vmatprep.subr.mxu0 0.0
    %2916 = vmatpush1.msra.mxu0 0.0
    %2917 = vmatprep.subr.mxu0 0.0
    %2918 = vmatpush1.msra.mxu0 0.0
    %2919 = vmatprep.subr.mxu0 0.0
    %2920 = vmatpush1.msra.mxu0 0.0
    %2921 = vmatprep.subr.mxu0 0.0
    %2922 = vmatpush1.msra.mxu0 0.0
    %2923 = vmatprep.subr.mxu0 0.0
    %2924 = vmatpush1.msra.mxu0 0.0
    %2925 = vmatprep.subr.mxu0 0.0
    %2926 = vmatpush1.msra.mxu0 0.0
    %2927 = vmatprep.subr.mxu0 0.0
    %2928 = vmatpush1.msra.mxu0 0.0
    %2929 = vmatprep.mubr.f32.mxu0 0.0
    %2930 = vmatmul.mubr.f32.gmra.mrb[0].mxu0 %v2848
    %v2931 = vpop.f32.mrb[0].mxu0
    %v2932 = vadd.f32 %v2841, %v2931
    %v2933 = vpop.f32.mrb[0].mxu0
    %2934 = vmatprep.mubr.f32.mxu0 0.0
    %2935 = vmatmul.mubr.f32.gmra.mrb[0].mxu0 %v2851
    %v2936 = vpop.f32.mrb[0].mxu0
    %v2937 = vadd.f32 %v2842, %v2936
    %v2938 = vpop.f32.mrb[0].mxu0
    %2939 = vmatprep.mubr.f32.mxu0 0.0
    %2940 = vmatmul.mubr.f32.gmra.mrb[0].mxu0 %v2854
    %v2941 = vpop.f32.mrb[0].mxu0
    %v2942 = vadd.f32 %v2843, %v2941
    %v2943 = vpop.f32.mrb[0].mxu0
    %2944 = vmatprep.mubr.f32.mxu0 0.0
    %2945 = vmatmul.mubr.f32.gmra.mrb[0].mxu0 %v2857
    %v2946 = vpop.f32.mrb[0].mxu0
    %v2947 = vadd.f32 %v2844, %v2946
    %v2948 = vpop.f32.mrb[0].mxu0
    %2949 = vmatprep.mubr.f32.mxu0 0.0
    %2950 = vmatmul.mubr.f32.gmra.mrb[0].mxu0 %v2860
    %v2951 = vpop.f32.mrb[0].mxu0
    %v2952 = vadd.f32 %v2845, %v2951
    %v2953 = vpop.f32.mrb[0].mxu0
    %2954 = vmatprep.mubr.f32.mxu0 0.0
    %2955 = vmatmul.mubr.f32.gmra.mrb[0].mxu0 %v2863
    %v2956 = vpop.f32.mrb[0].mxu0
    %v2957 = vadd.f32 %v2846, %v2956
    %v2958 = vpop.f32.mrb[0].mxu0
    %2959 = vdwg.mxu0
    %v2960 = vand.u32 2147483647, %v2932
    %v2961 = vand.u32 2147483647, %v2937
    %v2962 = vand.u32 2147483647, %v2942
    %v2963 = vand.u32 2147483647, %v2947
    %v2964 = vand.u32 2147483647, %v2952
    %v2965 = vand.u32 2147483647, %v2957
    %v2966 = vmul.f32 %v2960, 0.70710677
    %v2967 = vmul.f32 %v2961, 0.70710677
    %v2968 = vmul.f32 %v2962, 0.70710677
    %v2969 = vmul.f32 %v2963, 0.70710677
    %v2970 = vmul.f32 %v2964, 0.70710677
    %v2971 = vmul.f32 %v2965, 0.70710677
    %v2972 = vmul.f32 %v2966, %v2966
    %v2973 = vmul.f32 %v2967, %v2967
    %v2974 = vmul.f32 %v2968, %v2968
    %v2975 = vmul.f32 %v2969, %v2969
    %v2976 = vmul.f32 %v2970, %v2970
    %v2977 = vmul.f32 %v2971, %v2971
    %v2978 = vsub.f32 0.0, %v2972
    %v2979 = vsub.f32 0.0, %v2973
    %v2980 = vsub.f32 0.0, %v2974
    %v2981 = vsub.f32 0.0, %v2975
    %v2982 = vsub.f32 0.0, %v2976
    %v2983 = vsub.f32 0.0, %v2977
    %v2984 = vmul.f32 %v2978, 1.442695
    %v2985 = vpow.pop %v2984
    %v2986 = vmul.f32 %v2979, 1.442695
    %v2987 = vpow.pop %v2986
    %v2988 = vmul.f32 %v2980, 1.442695
    %v2989 = vpow.pop %v2988
    %v2990 = vmul.f32 %v2981, 1.442695
    %v2991 = vpow.pop %v2990
    %v2992 = vmul.f32 %v2982, 1.442695
    %v2993 = vpow.pop %v2992
    %v2994 = vmul.f32 %v2983, 1.442695
    %v2995 = vpow.pop %v2994
    %v2996 = vmul.f32 %v2966, 0.3275911
    %v2997 = vmul.f32 %v2967, 0.3275911
    %v2998 = vmul.f32 %v2968, 0.3275911
    %v2999 = vmul.f32 %v2969, 0.3275911
    %v3000 = vmul.f32 %v2970, 0.3275911
    %v3001 = vmul.f32 %v2971, 0.3275911
    %v3002 = vadd.f32 %v2996, 1.0
    %v3003 = vadd.f32 %v2997, 1.0
    %v3004 = vadd.f32 %v2998, 1.0
    %v3005 = vadd.f32 %v2999, 1.0
    %v3006 = vadd.f32 %v3000, 1.0
    %v3007 = vadd.f32 %v3001, 1.0
    %v3008 = vrcp.pop %v3002
    %v3009 = vrcp.pop %v3003
    %v3010 = vrcp.pop %v3004
    %v3011 = vrcp.pop %v3005
    %v3012 = vrcp.pop %v3006
    %v3013 = vrcp.pop %v3007
    %v3014 = vmul.f32 %v3008, 1.0614054
    %v3015 = vmul.f32 %v3009, 1.0614054
    %v3016 = vmul.f32 %v3010, 1.0614054
    %v3017 = vmul.f32 %v3011, 1.0614054
    %v3018 = vmul.f32 %v3012, 1.0614054
    %v3019 = vmul.f32 %v3013, 1.0614054
    %v3020 = vadd.f32 %v3014, -1.4531521
    %v3021 = vadd.f32 %v3015, -1.4531521
    %v3022 = vadd.f32 %v3016, -1.4531521
    %v3023 = vadd.f32 %v3017, -1.4531521
    %v3024 = vadd.f32 %v3018, -1.4531521
    %v3025 = vadd.f32 %v3019, -1.4531521
    %v3026 = vmul.f32 %v3020, %v3008
    %v3027 = vmul.f32 %v3021, %v3009
    %v3028 = vmul.f32 %v3022, %v3010
    %v3029 = vmul.f32 %v3023, %v3011
    %v3030 = vmul.f32 %v3024, %v3012
    %v3031 = vmul.f32 %v3025, %v3013
    %v3032 = vadd.f32 %v3026, 1.4214138
    %v3033 = vadd.f32 %v3027, 1.4214138
    %v3034 = vadd.f32 %v3028, 1.4214138
    %v3035 = vadd.f32 %v3029, 1.4214138
    %v3036 = vadd.f32 %v3030, 1.4214138
    %v3037 = vadd.f32 %v3031, 1.4214138
    %v3038 = vmul.f32 %v3032, %v3008
    %v3039 = vmul.f32 %v3033, %v3009
    %v3040 = vmul.f32 %v3034, %v3010
    %v3041 = vmul.f32 %v3035, %v3011
    %v3042 = vmul.f32 %v3036, %v3012
    %v3043 = vmul.f32 %v3037, %v3013
    %v3044 = vadd.f32 %v3038, -0.28449672
    %v3045 = vadd.f32 %v3039, -0.28449672
    %v3046 = vadd.f32 %v3040, -0.28449672
    %v3047 = vadd.f32 %v3041, -0.28449672
    %v3048 = vadd.f32 %v3042, -0.28449672
    %v3049 = vadd.f32 %v3043, -0.28449672
    %v3050 = vmul.f32 %v3044, %v3008
    %v3051 = vmul.f32 %v3045, %v3009
    %v3052 = vmul.f32 %v3046, %v3010
    %v3053 = vmul.f32 %v3047, %v3011
    %v3054 = vmul.f32 %v3048, %v3012
    %v3055 = vmul.f32 %v3049, %v3013
    %v3056 = vadd.f32 %v3050, 0.2548296
    %v3057 = vadd.f32 %v3051, 0.2548296
    %v3058 = vadd.f32 %v3052, 0.2548296
    %v3059 = vadd.f32 %v3053, 0.2548296
    %v3060 = vadd.f32 %v3054, 0.2548296
    %v3061 = vadd.f32 %v3055, 0.2548296
    %v3062 = vmul.f32 %v3056, %v3008
    %v3063 = vmul.f32 %v3057, %v3009
    %v3064 = vmul.f32 %v3058, %v3010
    %v3065 = vmul.f32 %v3059, %v3011
    %v3066 = vmul.f32 %v3060, %v3012
    %v3067 = vmul.f32 %v3061, %v3013
    %v3068 = vadd.f32 %v2932, %v2960
    %v3069 = vadd.f32 %v2937, %v2961
    %v3070 = vadd.f32 %v2942, %v2962
    %v3071 = vadd.f32 %v2947, %v2963
    %v3072 = vadd.f32 %v2952, %v2964
    %v3073 = vadd.f32 %v2957, %v2965
    %v3074 = vmul.f32 %v3068, 0.5
    %v3075 = vmul.f32 %v3069, 0.5
    %v3076 = vmul.f32 %v3070, 0.5
    %v3077 = vmul.f32 %v3071, 0.5
    %v3078 = vmul.f32 %v3072, 0.5
    %v3079 = vmul.f32 %v3073, 0.5
    %v3080 = vmul.f32 %v2960, 0.5
    %v3081 = vmul.f32 %v2961, 0.5
    %v3082 = vmul.f32 %v2962, 0.5
    %v3083 = vmul.f32 %v2963, 0.5
    %v3084 = vmul.f32 %v2964, 0.5
    %v3085 = vmul.f32 %v2965, 0.5
    %v3086 = vmul.f32 %v3062, %v2985
    %v3087 = vmul.f32 %v3063, %v2987
    %v3088 = vmul.f32 %v3064, %v2989
    %v3089 = vmul.f32 %v3065, %v2991
    %v3090 = vmul.f32 %v3066, %v2993
    %v3091 = vmul.f32 %v3067, %v2995
    %v3092 = vmul.f32 %v3080, %v3086
    %v3093 = vmul.f32 %v3081, %v3087
    %v3094 = vmul.f32 %v3082, %v3088
    %v3095 = vmul.f32 %v3083, %v3089
    %v3096 = vmul.f32 %v3084, %v3090
    %v3097 = vmul.f32 %v3085, %v3091
    %v3098 = vsub.f32 %v3074, %v3092
    %v3099 = vsub.f32 %v3075, %v3093
    %v3100 = vsub.f32 %v3076, %v3094
    %v3101 = vsub.f32 %v3077, %v3095
    %v3102 = vsub.f32 %v3078, %v3096
    %v3103 = vsub.f32 %v3079, %v3097
    %v3104 = vld [vmem:[#allocation2 + $0x278] sm:$0xff]
    %v3105 = vld [vmem:[#allocation2 + $0x280] sm:$0xff]
    %v3106 = vld [vmem:[#allocation2 + $0x288] sm:$0xff]
    %v3107 = vld [vmem:[#allocation2 + $0x290] sm:$0xff]
    %v3108 = vld [vmem:[#allocation2 + $0x298] sm:$0xff]
    %v3109 = vld [vmem:[#allocation2 + $0x2a0] sm:$0xff]
    %v3110 = vld [vmem:[#allocation2 + $0x2a8] sm:$0xff]
    %v3111 = vld [vmem:[#allocation2 + $0x2b0] sm:$0xff]
    %v3112 = vld [vmem:[#allocation2 + $0x2b8] sm:$0xff]
    %v3113 = vld [vmem:[#allocation2 + $0x2c0] sm:$0xff]
    %v3114 = vld [vmem:[#allocation2 + $0x2c8] sm:$0xff]
    %v3115 = vld [vmem:[#allocation2 + $0x2d0] sm:$0xff]
    %v3117 = vsel %vm994, %v3104, 0
    %v3120 = vsel %vm994, %v3105, 0
    %v3123 = vsel %vm994, %v3106, 0
    %v3126 = vsel %vm994, %v3107, 0
    %v3129 = vsel %vm994, %v3108, 0
    %v3132 = vsel %vm994, %v3109, 0
    %v3135 = vsel %vm994, %v3110, 0
    %v3138 = vsel %vm994, %v3111, 0
    %v3141 = vsel %vm994, %v3112, 0
    %v3144 = vsel %vm994, %v3113, 0
    %v3147 = vsel %vm994, %v3114, 0
    %v3150 = vsel %vm994, %v3115, 0
    %3152 = vmatprep.subr.mxu0 0.0
    %3153 = vmatpush1.msra.mxu0 %v3098
    %3154 = vmatprep.subr.mxu0 0.0
    %3155 = vmatpush1.msra.mxu0 %v3099
    %3156 = vmatprep.subr.mxu0 0.0
    %3157 = vmatpush1.msra.mxu0 %v3100
    %3158 = vmatprep.subr.mxu0 0.0
    %3159 = vmatpush1.msra.mxu0 %v3101
    %3160 = vmatprep.subr.mxu0 0.0
    %3161 = vmatpush1.msra.mxu0 %v3102
    %3162 = vmatprep.subr.mxu0 0.0
    %3163 = vmatpush1.msra.mxu0 %v3103
    %3164 = vmatprep.subr.mxu0 0.0
    %3165 = vmatpush1.msra.mxu0 0.0
    %3166 = vmatprep.subr.mxu0 0.0
    %3167 = vmatpush1.msra.mxu0 0.0
    %3168 = vmatprep.subr.mxu0 0.0
    %3169 = vmatpush1.msra.mxu0 0.0
    %3170 = vmatprep.subr.mxu0 0.0
    %3171 = vmatpush1.msra.mxu0 0.0
    %3172 = vmatprep.subr.mxu0 0.0
    %3173 = vmatpush1.msra.mxu0 0.0
    %3174 = vmatprep.subr.mxu0 0.0
    %3175 = vmatpush1.msra.mxu0 0.0
    %3176 = vmatprep.subr.mxu0 0.0
    %3177 = vmatpush1.msra.mxu0 0.0
    %3178 = vmatprep.subr.mxu0 0.0
    %3179 = vmatpush1.msra.mxu0 0.0
    %3180 = vmatprep.subr.mxu0 0.0
    %3181 = vmatpush1.msra.mxu0 0.0
    %3182 = vmatprep.subr.mxu0 0.0
    %3183 = vmatpush1.msra.mxu0 0.0
    %3184 = vmatprep.subr.mxu0 0.0
    %3185 = vmatpush1.msra.mxu0 0.0
    %3186 = vmatprep.subr.mxu0 0.0
    %3187 = vmatpush1.msra.mxu0 0.0
    %3188 = vmatprep.subr.mxu0 0.0
    %3189 = vmatpush1.msra.mxu0 0.0
    %3190 = vmatprep.subr.mxu0 0.0
    %3191 = vmatpush1.msra.mxu0 0.0
    %3192 = vmatprep.subr.mxu0 0.0
    %3193 = vmatpush1.msra.mxu0 0.0
    %3194 = vmatprep.subr.mxu0 0.0
    %3195 = vmatpush1.msra.mxu0 0.0
    %3196 = vmatprep.subr.mxu0 0.0
    %3197 = vmatpush1.msra.mxu0 0.0
    %3198 = vmatprep.subr.mxu0 0.0
    %3199 = vmatpush1.msra.mxu0 0.0
    %3200 = vmatprep.subr.mxu0 0.0
    %3201 = vmatpush1.msra.mxu0 0.0
    %3202 = vmatprep.subr.mxu0 0.0
    %3203 = vmatpush1.msra.mxu0 0.0
    %3204 = vmatprep.subr.mxu0 0.0
    %3205 = vmatpush1.msra.mxu0 0.0
    %3206 = vmatprep.subr.mxu0 0.0
    %3207 = vmatpush1.msra.mxu0 0.0
    %3208 = vmatprep.subr.mxu0 0.0
    %3209 = vmatpush1.msra.mxu0 0.0
    %3210 = vmatprep.subr.mxu0 0.0
    %3211 = vmatpush1.msra.mxu0 0.0
    %3212 = vmatprep.subr.mxu0 0.0
    %3213 = vmatpush1.msra.mxu0 0.0
    %3214 = vmatprep.subr.mxu0 0.0
    %3215 = vmatpush1.msra.mxu0 0.0
    %3216 = vmatprep.mubr.f32.mxu0 0.0
    %3217 = vmatmul.mubr.f32.gmra.mrb[0].mxu0 %v3117
    %v3218 = vpop.f32.mrb[0].mxu0
    %v3219 = vadd.f32 0.0, %v3218
    %v3220 = vpop.f32.mrb[0].mxu0
    %3221 = vmatprep.mubr.f32.mxu0 0.0
    %3222 = vmatmul.mubr.f32.gmra.mrb[0].mxu0 %v3120
    %v3223 = vpop.f32.mrb[0].mxu0
    %v3224 = vadd.f32 0.0, %v3223
    %v3225 = vpop.f32.mrb[0].mxu0
    %3226 = vmatprep.mubr.f32.mxu0 0.0
    %3227 = vmatmul.mubr.f32.gmra.mrb[0].mxu0 %v3123
    %v3228 = vpop.f32.mrb[0].mxu0
    %v3229 = vadd.f32 0.0, %v3228
    %v3230 = vpop.f32.mrb[0].mxu0
    %3231 = vmatprep.mubr.f32.mxu0 0.0
    %3232 = vmatmul.mubr.f32.gmra.mrb[0].mxu0 %v3126
    %v3233 = vpop.f32.mrb[0].mxu0
    %v3234 = vadd.f32 0.0, %v3233
    %v3235 = vpop.f32.mrb[0].mxu0
    %3236 = vmatprep.mubr.f32.mxu0 0.0
    %3237 = vmatmul.mubr.f32.gmra.mrb[0].mxu0 %v3129
    %v3238 = vpop.f32.mrb[0].mxu0
    %v3239 = vadd.f32 0.0, %v3238
    %v3240 = vpop.f32.mrb[0].mxu0
    %3241 = vmatprep.mubr.f32.mxu0 0.0
    %3242 = vmatmul.mubr.f32.gmra.mrb[0].mxu0 %v3132
    %v3243 = vpop.f32.mrb[0].mxu0
    %v3244 = vadd.f32 0.0, %v3243
    %v3245 = vpop.f32.mrb[0].mxu0
    %3246 = vmatprep.mubr.f32.mxu0 0.0
    %3247 = vmatmul.mubr.f32.gmra.mrb[0].mxu0 %v3135
    %v3248 = vpop.f32.mrb[0].mxu0
    %v3249 = vadd.f32 0.0, %v3248
    %v3250 = vpop.f32.mrb[0].mxu0
    %3251 = vmatprep.mubr.f32.mxu0 0.0
    %3252 = vmatmul.mubr.f32.gmra.mrb[0].mxu0 %v3138
    %v3253 = vpop.f32.mrb[0].mxu0
    %v3254 = vadd.f32 0.0, %v3253
    %v3255 = vpop.f32.mrb[0].mxu0
    %3256 = vmatprep.mubr.f32.mxu0 0.0
    %3257 = vmatmul.mubr.f32.gmra.mrb[0].mxu0 %v3141
    %v3258 = vpop.f32.mrb[0].mxu0
    %v3259 = vadd.f32 0.0, %v3258
    %v3260 = vpop.f32.mrb[0].mxu0
    %3261 = vmatprep.mubr.f32.mxu0 0.0
    %3262 = vmatmul.mubr.f32.gmra.mrb[0].mxu0 %v3144
    %v3263 = vpop.f32.mrb[0].mxu0
    %v3264 = vadd.f32 0.0, %v3263
    %v3265 = vpop.f32.mrb[0].mxu0
    %3266 = vmatprep.mubr.f32.mxu0 0.0
    %3267 = vmatmul.mubr.f32.gmra.mrb[0].mxu0 %v3147
    %v3268 = vpop.f32.mrb[0].mxu0
    %v3269 = vadd.f32 0.0, %v3268
    %v3270 = vpop.f32.mrb[0].mxu0
    %3271 = vmatprep.mubr.f32.mxu0 0.0
    %3272 = vmatmul.mubr.f32.gmra.mrb[0].mxu0 %v3150
    %v3273 = vpop.f32.mrb[0].mxu0
    %v3274 = vadd.f32 0.0, %v3273
    %v3275 = vpop.f32.mrb[0].mxu0
    %3276 = vdwg.mxu0
    %v3277 = vadd.f32 %v2633, %v3219
    %v3278 = vadd.f32 %v2634, %v3224
    %v3279 = vadd.f32 %v2635, %v3229
    %v3280 = vadd.f32 %v2636, %v3234
    %v3281 = vadd.f32 %v2637, %v3239
    %v3282 = vadd.f32 %v2638, %v3244
    %v3283 = vadd.f32 %v2639, %v3249
    %v3284 = vadd.f32 %v2640, %v3254
    %v3285 = vadd.f32 %v2641, %v3259
    %v3286 = vadd.f32 %v2642, %v3264
    %v3287 = vadd.f32 %v2643, %v3269
    %v3288 = vadd.f32 %v2644, %v3274
    %v3289 = vld [vmem:[#allocation2 + $0x2d8] sm:$0xff]
    %v3290 = vld [vmem:[#allocation2 + $0x2e0] sm:$0xff]
    %v3291 = vld [vmem:[#allocation2 + $0x2e8] sm:$0xff]
    %v3292 = vld [vmem:[#allocation2 + $0x2f0] sm:$0xff]
    %v3293 = vld [vmem:[#allocation2 + $0x2f8] sm:$0xff]
    %v3294 = vld [vmem:[#allocation2 + $0x300] sm:$0xff]
    %v3295 = vld [vmem:[#allocation2 + $0x308] sm:$0xff]
    %v3296 = vld [vmem:[#allocation2 + $0x310] sm:$0xff]
    %v3297 = vld [vmem:[#allocation2 + $0x318] sm:$0xff]
    %v3298 = vld [vmem:[#allocation2 + $0x320] sm:$0xff]
    %v3299 = vld [vmem:[#allocation2 + $0x328] sm:$0xff]
    %v3300 = vld [vmem:[#allocation2 + $0x330] sm:$0xff]
    %v3301 = vadd.f32 %v3277, %v3289
    %v3302 = vadd.f32 %v3278, %v3290
    %v3303 = vadd.f32 %v3279, %v3291
    %v3304 = vadd.f32 %v3280, %v3292
    %v3305 = vadd.f32 %v3281, %v3293
    %v3306 = vadd.f32 %v3282, %v3294
    %v3307 = vadd.f32 %v3283, %v3295
    %v3308 = vadd.f32 %v3284, %v3296
    %v3309 = vadd.f32 %v3285, %v3297
    %v3310 = vadd.f32 %v3286, %v3298
    %v3311 = vadd.f32 %v3287, %v3299
    %v3312 = vadd.f32 %v3288, %v3300
    %v3313 = vld [vmem:[#allocation2 + $0x338] sm:$0x1]
    %v3314 = vld [vmem:[#allocation2 + $0x339] sm:$0x1]
    %v3315 = vsel %vm1158, %v3301, 0.0
    %3316 = vadd.xlane.f32.xlu0 %v3315
    %v3317 = vpop.xlane.xlu0 %3316
    %v3318 = vsel %vm1158, %v3302, 0.0
    %3319 = vadd.xlane.f32.xlu0 %v3318
    %v3320 = vpop.xlane.xlu0 %3319
    %v3321 = vsel %vm1158, %v3303, 0.0
    %3322 = vadd.xlane.f32.xlu0 %v3321
    %v3323 = vpop.xlane.xlu0 %3322
    %v3324 = vsel %vm1158, %v3304, 0.0
    %3325 = vadd.xlane.f32.xlu0 %v3324
    %v3326 = vpop.xlane.xlu0 %3325
    %v3327 = vsel %vm1158, %v3305, 0.0
    %3328 = vadd.xlane.f32.xlu0 %v3327
    %v3329 = vpop.xlane.xlu0 %3328
    %v3330 = vsel %vm1158, %v3306, 0.0
    %3331 = vadd.xlane.f32.xlu0 %v3330
    %v3332 = vpop.xlane.xlu0 %3331
    %v3333 = vsel %vm1158, %v3307, 0.0
    %3334 = vadd.xlane.f32.xlu0 %v3333
    %v3335 = vpop.xlane.xlu0 %3334
    %v3336 = vsel %vm1158, %v3308, 0.0
    %3337 = vadd.xlane.f32.xlu0 %v3336
    %v3338 = vpop.xlane.xlu0 %3337
    %v3339 = vsel %vm1158, %v3309, 0.0
    %3340 = vadd.xlane.f32.xlu0 %v3339
    %v3341 = vpop.xlane.xlu0 %3340
    %v3342 = vsel %vm1158, %v3310, 0.0
    %3343 = vadd.xlane.f32.xlu0 %v3342
    %v3344 = vpop.xlane.xlu0 %3343
    %v3345 = vsel %vm1158, %v3311, 0.0
    %3346 = vadd.xlane.f32.xlu0 %v3345
    %v3347 = vpop.xlane.xlu0 %3346
    %v3348 = vsel %vm1158, %v3312, 0.0
    %3349 = vadd.xlane.f32.xlu0 %v3348
    %v3350 = vpop.xlane.xlu0 %3349
    %v3351 = vmul.f32 %v3317, %v1195
    %v3352 = vmul.f32 %v3320, %v1195
    %v3353 = vmul.f32 %v3323, %v1195
    %v3354 = vmul.f32 %v3326, %v1195
    %v3355 = vmul.f32 %v3329, %v1195
    %v3356 = vmul.f32 %v3332, %v1195
    %v3357 = vmul.f32 %v3335, %v1195
    %v3358 = vmul.f32 %v3338, %v1195
    %v3359 = vmul.f32 %v3341, %v1195
    %v3360 = vmul.f32 %v3344, %v1195
    %v3361 = vmul.f32 %v3347, %v1195
    %v3362 = vmul.f32 %v3350, %v1195
    %v3363 = vsub.f32 %v3301, %v3351
    %v3364 = vsub.f32 %v3302, %v3352
    %v3365 = vsub.f32 %v3303, %v3353
    %v3366 = vsub.f32 %v3304, %v3354
    %v3367 = vsub.f32 %v3305, %v3355
    %v3368 = vsub.f32 %v3306, %v3356
    %v3369 = vsub.f32 %v3307, %v3357
    %v3370 = vsub.f32 %v3308, %v3358
    %v3371 = vsub.f32 %v3309, %v3359
    %v3372 = vsub.f32 %v3310, %v3360
    %v3373 = vsub.f32 %v3311, %v3361
    %v3374 = vsub.f32 %v3312, %v3362
    %v3375 = vmul.f32 %v3363, %v3363
    %v3376 = vmul.f32 %v3364, %v3364
    %v3377 = vmul.f32 %v3365, %v3365
    %v3378 = vmul.f32 %v3366, %v3366
    %v3379 = vmul.f32 %v3367, %v3367
    %v3380 = vmul.f32 %v3368, %v3368
    %v3381 = vmul.f32 %v3369, %v3369
    %v3382 = vmul.f32 %v3370, %v3370
    %v3383 = vmul.f32 %v3371, %v3371
    %v3384 = vmul.f32 %v3372, %v3372
    %v3385 = vmul.f32 %v3373, %v3373
    %v3386 = vmul.f32 %v3374, %v3374
    %v3387 = vsel %vm1158, %v3375, 0.0
    %3388 = vadd.xlane.f32.xlu0 %v3387
    %v3389 = vpop.xlane.xlu0 %3388
    %v3390 = vsel %vm1158, %v3376, 0.0
    %3391 = vadd.xlane.f32.xlu0 %v3390
    %v3392 = vpop.xlane.xlu0 %3391
    %v3393 = vsel %vm1158, %v3377, 0.0
    %3394 = vadd.xlane.f32.xlu0 %v3393
    %v3395 = vpop.xlane.xlu0 %3394
    %v3396 = vsel %vm1158, %v3378, 0.0
    %3397 = vadd.xlane.f32.xlu0 %v3396
    %v3398 = vpop.xlane.xlu0 %3397
    %v3399 = vsel %vm1158, %v3379, 0.0
    %3400 = vadd.xlane.f32.xlu0 %v3399
    %v3401 = vpop.xlane.xlu0 %3400
    %v3402 = vsel %vm1158, %v3380, 0.0
    %3403 = vadd.xlane.f32.xlu0 %v3402
    %v3404 = vpop.xlane.xlu0 %3403
    %v3405 = vsel %vm1158, %v3381, 0.0
    %3406 = vadd.xlane.f32.xlu0 %v3405
    %v3407 = vpop.xlane.xlu0 %3406
    %v3408 = vsel %vm1158, %v3382, 0.0
    %3409 = vadd.xlane.f32.xlu0 %v3408
    %v3410 = vpop.xlane.xlu0 %3409
    %v3411 = vsel %vm1158, %v3383, 0.0
    %3412 = vadd.xlane.f32.xlu0 %v3411
    %v3413 = vpop.xlane.xlu0 %3412
    %v3414 = vsel %vm1158, %v3384, 0.0
    %3415 = vadd.xlane.f32.xlu0 %v3414
    %v3416 = vpop.xlane.xlu0 %3415
    %v3417 = vsel %vm1158, %v3385, 0.0
    %3418 = vadd.xlane.f32.xlu0 %v3417
    %v3419 = vpop.xlane.xlu0 %3418
    %v3420 = vsel %vm1158, %v3386, 0.0
    %3421 = vadd.xlane.f32.xlu0 %v3420
    %v3422 = vpop.xlane.xlu0 %3421
    %v3423 = vmul.f32 %v3389, %v1195
    %v3424 = vmul.f32 %v3392, %v1195
    %v3425 = vmul.f32 %v3395, %v1195
    %v3426 = vmul.f32 %v3398, %v1195
    %v3427 = vmul.f32 %v3401, %v1195
    %v3428 = vmul.f32 %v3404, %v1195
    %v3429 = vmul.f32 %v3407, %v1195
    %v3430 = vmul.f32 %v3410, %v1195
    %v3431 = vmul.f32 %v3413, %v1195
    %v3432 = vmul.f32 %v3416, %v1195
    %v3433 = vmul.f32 %v3419, %v1195
    %v3434 = vmul.f32 %v3422, %v1195
    %v3435 = vadd.f32 %v3423, 1e-05
    %v3436 = vadd.f32 %v3424, 1e-05
    %v3437 = vadd.f32 %v3425, 1e-05
    %v3438 = vadd.f32 %v3426, 1e-05
    %v3439 = vadd.f32 %v3427, 1e-05
    %v3440 = vadd.f32 %v3428, 1e-05
    %v3441 = vadd.f32 %v3429, 1e-05
    %v3442 = vadd.f32 %v3430, 1e-05
    %v3443 = vadd.f32 %v3431, 1e-05
    %v3444 = vadd.f32 %v3432, 1e-05
    %v3445 = vadd.f32 %v3433, 1e-05
    %v3446 = vadd.f32 %v3434, 1e-05
    %v3447 = vrsqrt.pop %v3435
    %v3448 = vrsqrt.pop %v3436
    %v3449 = vrsqrt.pop %v3437
    %v3450 = vrsqrt.pop %v3438
    %v3451 = vrsqrt.pop %v3439
    %v3452 = vrsqrt.pop %v3440
    %v3453 = vrsqrt.pop %v3441
    %v3454 = vrsqrt.pop %v3442
    %v3455 = vrsqrt.pop %v3443
    %v3456 = vrsqrt.pop %v3444
    %v3457 = vrsqrt.pop %v3445
    %v3458 = vrsqrt.pop %v3446
    %v3459 = vmul.f32 %v3363, %v3447
    %v3460 = vmul.f32 %v3364, %v3448
    %v3461 = vmul.f32 %v3365, %v3449
    %v3462 = vmul.f32 %v3366, %v3450
    %v3463 = vmul.f32 %v3367, %v3451
    %v3464 = vmul.f32 %v3368, %v3452
    %v3465 = vmul.f32 %v3369, %v3453
    %v3466 = vmul.f32 %v3370, %v3454
    %v3467 = vmul.f32 %v3371, %v3455
    %v3468 = vmul.f32 %v3372, %v3456
    %v3469 = vmul.f32 %v3373, %v3457
    %v3470 = vmul.f32 %v3374, %v3458
    %v3471 = vlaneseq
    %v3472 = vshrl.u32 %v3471, 7
    %v3473 = vsub.s32 0, %v3472
    %v3474 = vrot.slane %v3313, %v3473
    %v3475 = vmul.f32 %v3459, %v3474
    %v3476 = vmul.f32 %v3460, %v3474
    %v3477 = vmul.f32 %v3461, %v3474
    %v3478 = vmul.f32 %v3462, %v3474
    %v3479 = vmul.f32 %v3463, %v3474
    %v3480 = vmul.f32 %v3464, %v3474
    %v3481 = vmul.f32 %v3465, %v3474
    %v3482 = vmul.f32 %v3466, %v3474
    %v3483 = vmul.f32 %v3467, %v3474
    %v3484 = vmul.f32 %v3468, %v3474
    %v3485 = vmul.f32 %v3469, %v3474
    %v3486 = vmul.f32 %v3470, %v3474
    %v3487 = vlaneseq
    %v3488 = vshrl.u32 %v3487, 7
    %v3489 = vsub.s32 0, %v3488
    %v3490 = vrot.slane %v3314, %v3489
    %v3491 = vadd.f32 %v3475, %v3490
    %v3492 = vadd.f32 %v3476, %v3490
    %v3493 = vadd.f32 %v3477, %v3490
    %v3494 = vadd.f32 %v3478, %v3490
    %v3495 = vadd.f32 %v3479, %v3490
    %v3496 = vadd.f32 %v3480, %v3490
    %v3497 = vadd.f32 %v3481, %v3490
    %v3498 = vadd.f32 %v3482, %v3490
    %v3499 = vadd.f32 %v3483, %v3490
    %v3500 = vadd.f32 %v3484, %v3490
    %v3501 = vadd.f32 %v3485, %v3490
    %v3502 = vadd.f32 %v3486, %v3490
    %v3503 = vld [vmem:[#allocation2 + $0x340] sm:$0xff]
    %v3504 = vld [vmem:[#allocation2 + $0x348] sm:$0xff]
    %v3505 = vld [vmem:[#allocation2 + $0x350] sm:$0xff]
    %v3506 = vld [vmem:[#allocation2 + $0x358] sm:$0xff]
    %v3507 = vld [vmem:[#allocation2 + $0x360] sm:$0x1]
    %v3508 = vlaneseq
    %v3509 = vshrl.u32 %v3508, 7
    %v3510 = vsub.s32 0, %v3509
    %v3511 = vrot.slane %v3507, %v3510
    %v3513 = vsel %vm1158, %v3491, 0
    %v3516 = vsel %vm1158, %v3492, 0
    %v3519 = vsel %vm1158, %v3493, 0
    %v3522 = vsel %vm1158, %v3494, 0
    %v3525 = vsel %vm1158, %v3495, 0
    %v3528 = vsel %vm1158, %v3496, 0
    %v3531 = vsel %vm1158, %v3497, 0
    %v3534 = vsel %vm1158, %v3498, 0
    %v3537 = vsel %vm1158, %v3499, 0
    %v3540 = vsel %vm1158, %v3500, 0
    %v3543 = vsel %vm1158, %v3501, 0
    %v3546 = vsel %vm1158, %v3502, 0
    %3548 = vmatprep.subr.mxu0 0.0
    %3549 = vmatpush1.msra.mxu0 %v3503
    %3550 = vmatprep.subr.mxu0 0.0
    %3551 = vmatpush1.msra.mxu0 %v3504
    %3552 = vmatprep.subr.mxu0 0.0
    %3553 = vmatpush1.msra.mxu0 %v3505
    %3554 = vmatprep.subr.mxu0 0.0
    %3555 = vmatpush1.msra.mxu0 %v3506
    %3556 = vmatprep.subr.mxu0 0.0
    %3557 = vmatpush1.msra.mxu0 0.0
    %3558 = vmatprep.subr.mxu0 0.0
    %3559 = vmatpush1.msra.mxu0 0.0
    %3560 = vmatprep.subr.mxu0 0.0
    %3561 = vmatpush1.msra.mxu0 0.0
    %3562 = vmatprep.subr.mxu0 0.0
    %3563 = vmatpush1.msra.mxu0 0.0
    %3564 = vmatprep.subr.mxu0 0.0
    %3565 = vmatpush1.msra.mxu0 0.0
    %3566 = vmatprep.subr.mxu0 0.0
    %3567 = vmatpush1.msra.mxu0 0.0
    %3568 = vmatprep.subr.mxu0 0.0
    %3569 = vmatpush1.msra.mxu0 0.0
    %3570 = vmatprep.subr.mxu0 0.0
    %3571 = vmatpush1.msra.mxu0 0.0
    %3572 = vmatprep.subr.mxu0 0.0
    %3573 = vmatpush1.msra.mxu0 0.0
    %3574 = vmatprep.subr.mxu0 0.0
    %3575 = vmatpush1.msra.mxu0 0.0
    %3576 = vmatprep.subr.mxu0 0.0
    %3577 = vmatpush1.msra.mxu0 0.0
    %3578 = vmatprep.subr.mxu0 0.0
    %3579 = vmatpush1.msra.mxu0 0.0
    %3580 = vmatprep.subr.mxu0 0.0
    %3581 = vmatpush1.msra.mxu0 0.0
    %3582 = vmatprep.subr.mxu0 0.0
    %3583 = vmatpush1.msra.mxu0 0.0
    %3584 = vmatprep.subr.mxu0 0.0
    %3585 = vmatpush1.msra.mxu0 0.0
    %3586 = vmatprep.subr.mxu0 0.0
    %3587 = vmatpush1.msra.mxu0 0.0
    %3588 = vmatprep.subr.mxu0 0.0
    %3589 = vmatpush1.msra.mxu0 0.0
    %3590 = vmatprep.subr.mxu0 0.0
    %3591 = vmatpush1.msra.mxu0 0.0
    %3592 = vmatprep.subr.mxu0 0.0
    %3593 = vmatpush1.msra.mxu0 0.0
    %3594 = vmatprep.subr.mxu0 0.0
    %3595 = vmatpush1.msra.mxu0 0.0
    %3596 = vmatprep.subr.mxu0 0.0
    %3597 = vmatpush1.msra.mxu0 0.0
    %3598 = vmatprep.subr.mxu0 0.0
    %3599 = vmatpush1.msra.mxu0 0.0
    %3600 = vmatprep.subr.mxu0 0.0
    %3601 = vmatpush1.msra.mxu0 0.0
    %3602 = vmatprep.subr.mxu0 0.0
    %3603 = vmatpush1.msra.mxu0 0.0
    %3604 = vmatprep.subr.mxu0 0.0
    %3605 = vmatpush1.msra.mxu0 0.0
    %3606 = vmatprep.subr.mxu0 0.0
    %3607 = vmatpush1.msra.mxu0 0.0
    %3608 = vmatprep.subr.mxu0 0.0
    %3609 = vmatpush1.msra.mxu0 0.0
    %3610 = vmatprep.subr.mxu0 0.0
    %3611 = vmatpush1.msra.mxu0 0.0
    %3612 = vmatprep.mubr.f32.mxu0 0.0
    %3613 = vmatmul.mubr.f32.gmra.mrb[0].mxu0 %v3513
    %v3614 = vpop.f32.mrb[0].mxu0
    %v3615 = vadd.f32 %v3511, %v3614
    %v3616 = vpop.f32.mrb[0].mxu0
    %3617 = vmatprep.mubr.f32.mxu0 0.0
    %3618 = vmatmul.mubr.f32.gmra.mrb[0].mxu0 %v3516
    %v3619 = vpop.f32.mrb[0].mxu0
    %v3620 = vadd.f32 %v3511, %v3619
    %v3621 = vpop.f32.mrb[0].mxu0
    %3622 = vmatprep.mubr.f32.mxu0 0.0
    %3623 = vmatmul.mubr.f32.gmra.mrb[0].mxu0 %v3519
    %v3624 = vpop.f32.mrb[0].mxu0
    %v3625 = vadd.f32 %v3511, %v3624
    %v3626 = vpop.f32.mrb[0].mxu0
    %3627 = vmatprep.mubr.f32.mxu0 0.0
    %3628 = vmatmul.mubr.f32.gmra.mrb[0].mxu0 %v3522
    %v3629 = vpop.f32.mrb[0].mxu0
    %v3630 = vadd.f32 %v3511, %v3629
    %v3631 = vpop.f32.mrb[0].mxu0
    %3632 = vmatprep.mubr.f32.mxu0 0.0
    %3633 = vmatmul.mubr.f32.gmra.mrb[0].mxu0 %v3525
    %v3634 = vpop.f32.mrb[0].mxu0
    %v3635 = vadd.f32 %v3511, %v3634
    %v3636 = vpop.f32.mrb[0].mxu0
    %3637 = vmatprep.mubr.f32.mxu0 0.0
    %3638 = vmatmul.mubr.f32.gmra.mrb[0].mxu0 %v3528
    %v3639 = vpop.f32.mrb[0].mxu0
    %v3640 = vadd.f32 %v3511, %v3639
    %v3641 = vpop.f32.mrb[0].mxu0
    %3642 = vmatprep.mubr.f32.mxu0 0.0
    %3643 = vmatmul.mubr.f32.gmra.mrb[0].mxu0 %v3531
    %v3644 = vpop.f32.mrb[0].mxu0
    %v3645 = vadd.f32 %v3511, %v3644
    %v3646 = vpop.f32.mrb[0].mxu0
    %3647 = vmatprep.mubr.f32.mxu0 0.0
    %3648 = vmatmul.mubr.f32.gmra.mrb[0].mxu0 %v3534
    %v3649 = vpop.f32.mrb[0].mxu0
    %v3650 = vadd.f32 %v3511, %v3649
    %v3651 = vpop.f32.mrb[0].mxu0
    %3652 = vmatprep.mubr.f32.mxu0 0.0
    %3653 = vmatmul.mubr.f32.gmra.mrb[0].mxu0 %v3537
    %v3654 = vpop.f32.mrb[0].mxu0
    %v3655 = vadd.f32 %v3511, %v3654
    %v3656 = vpop.f32.mrb[0].mxu0
    %3657 = vmatprep.mubr.f32.mxu0 0.0
    %3658 = vmatmul.mubr.f32.gmra.mrb[0].mxu0 %v3540
    %v3659 = vpop.f32.mrb[0].mxu0
    %v3660 = vadd.f32 %v3511, %v3659
    %v3661 = vpop.f32.mrb[0].mxu0
    %3662 = vmatprep.mubr.f32.mxu0 0.0
    %3663 = vmatmul.mubr.f32.gmra.mrb[0].mxu0 %v3543
    %v3664 = vpop.f32.mrb[0].mxu0
    %v3665 = vadd.f32 %v3511, %v3664
    %v3666 = vpop.f32.mrb[0].mxu0
    %3667 = vmatprep.mubr.f32.mxu0 0.0
    %3668 = vmatmul.mubr.f32.gmra.mrb[0].mxu0 %v3546
    %v3669 = vpop.f32.mrb[0].mxu0
    %v3670 = vadd.f32 %v3511, %v3669
    %v3671 = vpop.f32.mrb[0].mxu0
    %3672 = vdwg.mxu0
    %v3673 = vand.u32 2147483647, %v3615
    %v3674 = vand.u32 2147483647, %v3620
    %v3675 = vand.u32 2147483647, %v3625
    %v3676 = vand.u32 2147483647, %v3630
    %v3677 = vand.u32 2147483647, %v3635
    %v3678 = vand.u32 2147483647, %v3640
    %v3679 = vand.u32 2147483647, %v3645
    %v3680 = vand.u32 2147483647, %v3650
    %v3681 = vand.u32 2147483647, %v3655
    %v3682 = vand.u32 2147483647, %v3660
    %v3683 = vand.u32 2147483647, %v3665
    %v3684 = vand.u32 2147483647, %v3670
    %v3685 = vmul.f32 %v3673, 0.70710677
    %v3686 = vmul.f32 %v3674, 0.70710677
    %v3687 = vmul.f32 %v3675, 0.70710677
    %v3688 = vmul.f32 %v3676, 0.70710677
    %v3689 = vmul.f32 %v3677, 0.70710677
    %v3690 = vmul.f32 %v3678, 0.70710677
    %v3691 = vmul.f32 %v3679, 0.70710677
    %v3692 = vmul.f32 %v3680, 0.70710677
    %v3693 = vmul.f32 %v3681, 0.70710677
    %v3694 = vmul.f32 %v3682, 0.70710677
    %v3695 = vmul.f32 %v3683, 0.70710677
    %v3696 = vmul.f32 %v3684, 0.70710677
    %v3697 = vmul.f32 %v3685, %v3685
    %v3698 = vmul.f32 %v3686, %v3686
    %v3699 = vmul.f32 %v3687, %v3687
    %v3700 = vmul.f32 %v3688, %v3688
    %v3701 = vmul.f32 %v3689, %v3689
    %v3702 = vmul.f32 %v3690, %v3690
    %v3703 = vmul.f32 %v3691, %v3691
    %v3704 = vmul.f32 %v3692, %v3692
    %v3705 = vmul.f32 %v3693, %v3693
    %v3706 = vmul.f32 %v3694, %v3694
    %v3707 = vmul.f32 %v3695, %v3695
    %v3708 = vmul.f32 %v3696, %v3696
    %v3709 = vsub.f32 0.0, %v3697
    %v3710 = vsub.f32 0.0, %v3698
    %v3711 = vsub.f32 0.0, %v3699
    %v3712 = vsub.f32 0.0, %v3700
    %v3713 = vsub.f32 0.0, %v3701
    %v3714 = vsub.f32 0.0, %v3702
    %v3715 = vsub.f32 0.0, %v3703
    %v3716 = vsub.f32 0.0, %v3704
    %v3717 = vsub.f32 0.0, %v3705
    %v3718 = vsub.f32 0.0, %v3706
    %v3719 = vsub.f32 0.0, %v3707
    %v3720 = vsub.f32 0.0, %v3708
    %v3721 = vmul.f32 %v3709, 1.442695
    %v3722 = vpow.pop %v3721
    %v3723 = vmul.f32 %v3710, 1.442695
    %v3724 = vpow.pop %v3723
    %v3725 = vmul.f32 %v3711, 1.442695
    %v3726 = vpow.pop %v3725
    %v3727 = vmul.f32 %v3712, 1.442695
    %v3728 = vpow.pop %v3727
    %v3729 = vmul.f32 %v3713, 1.442695
    %v3730 = vpow.pop %v3729
    %v3731 = vmul.f32 %v3714, 1.442695
    %v3732 = vpow.pop %v3731
    %v3733 = vmul.f32 %v3715, 1.442695
    %v3734 = vpow.pop %v3733
    %v3735 = vmul.f32 %v3716, 1.442695
    %v3736 = vpow.pop %v3735
    %v3737 = vmul.f32 %v3717, 1.442695
    %v3738 = vpow.pop %v3737
    %v3739 = vmul.f32 %v3718, 1.442695
    %v3740 = vpow.pop %v3739
    %v3741 = vmul.f32 %v3719, 1.442695
    %v3742 = vpow.pop %v3741
    %v3743 = vmul.f32 %v3720, 1.442695
    %v3744 = vpow.pop %v3743
    %v3745 = vmul.f32 %v3685, 0.3275911
    %v3746 = vmul.f32 %v3686, 0.3275911
    %v3747 = vmul.f32 %v3687, 0.3275911
    %v3748 = vmul.f32 %v3688, 0.3275911
    %v3749 = vmul.f32 %v3689, 0.3275911
    %v3750 = vmul.f32 %v3690, 0.3275911
    %v3751 = vmul.f32 %v3691, 0.3275911
    %v3752 = vmul.f32 %v3692, 0.3275911
    %v3753 = vmul.f32 %v3693, 0.3275911
    %v3754 = vmul.f32 %v3694, 0.3275911
    %v3755 = vmul.f32 %v3695, 0.3275911
    %v3756 = vmul.f32 %v3696, 0.3275911
    %v3757 = vadd.f32 %v3745, 1.0
    %v3758 = vadd.f32 %v3746, 1.0
    %v3759 = vadd.f32 %v3747, 1.0
    %v3760 = vadd.f32 %v3748, 1.0
    %v3761 = vadd.f32 %v3749, 1.0
    %v3762 = vadd.f32 %v3750, 1.0
    %v3763 = vadd.f32 %v3751, 1.0
    %v3764 = vadd.f32 %v3752, 1.0
    %v3765 = vadd.f32 %v3753, 1.0
    %v3766 = vadd.f32 %v3754, 1.0
    %v3767 = vadd.f32 %v3755, 1.0
    %v3768 = vadd.f32 %v3756, 1.0
    %v3769 = vrcp.pop %v3757
    %v3770 = vrcp.pop %v3758
    %v3771 = vrcp.pop %v3759
    %v3772 = vrcp.pop %v3760
    %v3773 = vrcp.pop %v3761
    %v3774 = vrcp.pop %v3762
    %v3775 = vrcp.pop %v3763
    %v3776 = vrcp.pop %v3764
    %v3777 = vrcp.pop %v3765
    %v3778 = vrcp.pop %v3766
    %v3779 = vrcp.pop %v3767
    %v3780 = vrcp.pop %v3768
    %v3781 = vmul.f32 %v3769, 1.0614054
    %v3782 = vmul.f32 %v3770, 1.0614054
    %v3783 = vmul.f32 %v3771, 1.0614054
    %v3784 = vmul.f32 %v3772, 1.0614054
    %v3785 = vmul.f32 %v3773, 1.0614054
    %v3786 = vmul.f32 %v3774, 1.0614054
    %v3787 = vmul.f32 %v3775, 1.0614054
    %v3788 = vmul.f32 %v3776, 1.0614054
    %v3789 = vmul.f32 %v3777, 1.0614054
    %v3790 = vmul.f32 %v3778, 1.0614054
    %v3791 = vmul.f32 %v3779, 1.0614054
    %v3792 = vmul.f32 %v3780, 1.0614054
    %v3793 = vadd.f32 %v3781, -1.4531521
    %v3794 = vadd.f32 %v3782, -1.4531521
    %v3795 = vadd.f32 %v3783, -1.4531521
    %v3796 = vadd.f32 %v3784, -1.4531521
    %v3797 = vadd.f32 %v3785, -1.4531521
    %v3798 = vadd.f32 %v3786, -1.4531521
    %v3799 = vadd.f32 %v3787, -1.4531521
    %v3800 = vadd.f32 %v3788, -1.4531521
    %v3801 = vadd.f32 %v3789, -1.4531521
    %v3802 = vadd.f32 %v3790, -1.4531521
    %v3803 = vadd.f32 %v3791, -1.4531521
    %v3804 = vadd.f32 %v3792, -1.4531521
    %v3805 = vmul.f32 %v3793, %v3769
    %v3806 = vmul.f32 %v3794, %v3770
    %v3807 = vmul.f32 %v3795, %v3771
    %v3808 = vmul.f32 %v3796, %v3772
    %v3809 = vmul.f32 %v3797, %v3773
    %v3810 = vmul.f32 %v3798, %v3774
    %v3811 = vmul.f32 %v3799, %v3775
    %v3812 = vmul.f32 %v3800, %v3776
    %v3813 = vmul.f32 %v3801, %v3777
    %v3814 = vmul.f32 %v3802, %v3778
    %v3815 = vmul.f32 %v3803, %v3779
    %v3816 = vmul.f32 %v3804, %v3780
    %v3817 = vadd.f32 %v3805, 1.4214138
    %v3818 = vadd.f32 %v3806, 1.4214138
    %v3819 = vadd.f32 %v3807, 1.4214138
    %v3820 = vadd.f32 %v3808, 1.4214138
    %v3821 = vadd.f32 %v3809, 1.4214138
    %v3822 = vadd.f32 %v3810, 1.4214138
    %v3823 = vadd.f32 %v3811, 1.4214138
    %v3824 = vadd.f32 %v3812, 1.4214138
    %v3825 = vadd.f32 %v3813, 1.4214138
    %v3826 = vadd.f32 %v3814, 1.4214138
    %v3827 = vadd.f32 %v3815, 1.4214138
    %v3828 = vadd.f32 %v3816, 1.4214138
    %v3829 = vmul.f32 %v3817, %v3769
    %v3830 = vmul.f32 %v3818, %v3770
    %v3831 = vmul.f32 %v3819, %v3771
    %v3832 = vmul.f32 %v3820, %v3772
    %v3833 = vmul.f32 %v3821, %v3773
    %v3834 = vmul.f32 %v3822, %v3774
    %v3835 = vmul.f32 %v3823, %v3775
    %v3836 = vmul.f32 %v3824, %v3776
    %v3837 = vmul.f32 %v3825, %v3777
    %v3838 = vmul.f32 %v3826, %v3778
    %v3839 = vmul.f32 %v3827, %v3779
    %v3840 = vmul.f32 %v3828, %v3780
    %v3841 = vadd.f32 %v3829, -0.28449672
    %v3842 = vadd.f32 %v3830, -0.28449672
    %v3843 = vadd.f32 %v3831, -0.28449672
    %v3844 = vadd.f32 %v3832, -0.28449672
    %v3845 = vadd.f32 %v3833, -0.28449672
    %v3846 = vadd.f32 %v3834, -0.28449672
    %v3847 = vadd.f32 %v3835, -0.28449672
    %v3848 = vadd.f32 %v3836, -0.28449672
    %v3849 = vadd.f32 %v3837, -0.28449672
    %v3850 = vadd.f32 %v3838, -0.28449672
    %v3851 = vadd.f32 %v3839, -0.28449672
    %v3852 = vadd.f32 %v3840, -0.28449672
    %v3853 = vmul.f32 %v3841, %v3769
    %v3854 = vmul.f32 %v3842, %v3770
    %v3855 = vmul.f32 %v3843, %v3771
    %v3856 = vmul.f32 %v3844, %v3772
    %v3857 = vmul.f32 %v3845, %v3773
    %v3858 = vmul.f32 %v3846, %v3774
    %v3859 = vmul.f32 %v3847, %v3775
    %v3860 = vmul.f32 %v3848, %v3776
    %v3861 = vmul.f32 %v3849, %v3777
    %v3862 = vmul.f32 %v3850, %v3778
    %v3863 = vmul.f32 %v3851, %v3779
    %v3864 = vmul.f32 %v3852, %v3780
    %v3865 = vadd.f32 %v3853, 0.2548296
    %v3866 = vadd.f32 %v3854, 0.2548296
    %v3867 = vadd.f32 %v3855, 0.2548296
    %v3868 = vadd.f32 %v3856, 0.2548296
    %v3869 = vadd.f32 %v3857, 0.2548296
    %v3870 = vadd.f32 %v3858, 0.2548296
    %v3871 = vadd.f32 %v3859, 0.2548296
    %v3872 = vadd.f32 %v3860, 0.2548296
    %v3873 = vadd.f32 %v3861, 0.2548296
    %v3874 = vadd.f32 %v3862, 0.2548296
    %v3875 = vadd.f32 %v3863, 0.2548296
    %v3876 = vadd.f32 %v3864, 0.2548296
    %v3877 = vmul.f32 %v3865, %v3769
    %v3878 = vmul.f32 %v3866, %v3770
    %v3879 = vmul.f32 %v3867, %v3771
    %v3880 = vmul.f32 %v3868, %v3772
    %v3881 = vmul.f32 %v3869, %v3773
    %v3882 = vmul.f32 %v3870, %v3774
    %v3883 = vmul.f32 %v3871, %v3775
    %v3884 = vmul.f32 %v3872, %v3776
    %v3885 = vmul.f32 %v3873, %v3777
    %v3886 = vmul.f32 %v3874, %v3778
    %v3887 = vmul.f32 %v3875, %v3779
    %v3888 = vmul.f32 %v3876, %v3780
    %v3889 = vadd.f32 %v3615, %v3673
    %v3890 = vadd.f32 %v3620, %v3674
    %v3891 = vadd.f32 %v3625, %v3675
    %v3892 = vadd.f32 %v3630, %v3676
    %v3893 = vadd.f32 %v3635, %v3677
    %v3894 = vadd.f32 %v3640, %v3678
    %v3895 = vadd.f32 %v3645, %v3679
    %v3896 = vadd.f32 %v3650, %v3680
    %v3897 = vadd.f32 %v3655, %v3681
    %v3898 = vadd.f32 %v3660, %v3682
    %v3899 = vadd.f32 %v3665, %v3683
    %v3900 = vadd.f32 %v3670, %v3684
    %v3901 = vmul.f32 %v3889, 0.5
    %v3902 = vmul.f32 %v3890, 0.5
    %v3903 = vmul.f32 %v3891, 0.5
    %v3904 = vmul.f32 %v3892, 0.5
    %v3905 = vmul.f32 %v3893, 0.5
    %v3906 = vmul.f32 %v3894, 0.5
    %v3907 = vmul.f32 %v3895, 0.5
    %v3908 = vmul.f32 %v3896, 0.5
    %v3909 = vmul.f32 %v3897, 0.5
    %v3910 = vmul.f32 %v3898, 0.5
    %v3911 = vmul.f32 %v3899, 0.5
    %v3912 = vmul.f32 %v3900, 0.5
    %v3913 = vmul.f32 %v3673, 0.5
    %v3914 = vmul.f32 %v3674, 0.5
    %v3915 = vmul.f32 %v3675, 0.5
    %v3916 = vmul.f32 %v3676, 0.5
    %v3917 = vmul.f32 %v3677, 0.5
    %v3918 = vmul.f32 %v3678, 0.5
    %v3919 = vmul.f32 %v3679, 0.5
    %v3920 = vmul.f32 %v3680, 0.5
    %v3921 = vmul.f32 %v3681, 0.5
    %v3922 = vmul.f32 %v3682, 0.5
    %v3923 = vmul.f32 %v3683, 0.5
    %v3924 = vmul.f32 %v3684, 0.5
    %v3925 = vmul.f32 %v3877, %v3722
    %v3926 = vmul.f32 %v3878, %v3724
    %v3927 = vmul.f32 %v3879, %v3726
    %v3928 = vmul.f32 %v3880, %v3728
    %v3929 = vmul.f32 %v3881, %v3730
    %v3930 = vmul.f32 %v3882, %v3732
    %v3931 = vmul.f32 %v3883, %v3734
    %v3932 = vmul.f32 %v3884, %v3736
    %v3933 = vmul.f32 %v3885, %v3738
    %v3934 = vmul.f32 %v3886, %v3740
    %v3935 = vmul.f32 %v3887, %v3742
    %v3936 = vmul.f32 %v3888, %v3744
    %v3937 = vmul.f32 %v3913, %v3925
    %v3938 = vmul.f32 %v3914, %v3926
    %v3939 = vmul.f32 %v3915, %v3927
    %v3940 = vmul.f32 %v3916, %v3928
    %v3941 = vmul.f32 %v3917, %v3929
    %v3942 = vmul.f32 %v3918, %v3930
    %v3943 = vmul.f32 %v3919, %v3931
    %v3944 = vmul.f32 %v3920, %v3932
    %v3945 = vmul.f32 %v3921, %v3933
    %v3946 = vmul.f32 %v3922, %v3934
    %v3947 = vmul.f32 %v3923, %v3935
    %v3948 = vmul.f32 %v3924, %v3936
    %v3949 = vsub.f32 %v3901, %v3937
    %v3950 = vsub.f32 %v3902, %v3938
    %v3951 = vsub.f32 %v3903, %v3939
    %v3952 = vsub.f32 %v3904, %v3940
    %v3953 = vsub.f32 %v3905, %v3941
    %v3954 = vsub.f32 %v3906, %v3942
    %v3955 = vsub.f32 %v3907, %v3943
    %v3956 = vsub.f32 %v3908, %v3944
    %v3957 = vsub.f32 %v3909, %v3945
    %v3958 = vsub.f32 %v3910, %v3946
    %v3959 = vsub.f32 %v3911, %v3947
    %v3960 = vsub.f32 %v3912, %v3948
    %v3961 = vld [vmem:[#allocation2 + $0x368] sm:$0xff]
    %v3962 = vld [vmem:[#allocation2 + $0x370] sm:$0xff]
    %v3963 = vld [vmem:[#allocation2 + $0x378] sm:$0xff]
    %v3964 = vld [vmem:[#allocation2 + $0x380] sm:$0xff]
    %v3965 = vld [vmem:[#allocation2 + $0x388] sm:$0xff]
    %v3966 = vld [vmem:[#allocation2 + $0x390] sm:$0xff]
    %v3967 = vld [vmem:[#allocation2 + $0x398] sm:$0xff]
    %v3968 = vld [vmem:[#allocation2 + $0x3a0] sm:$0xff]
    %v3969 = vld [vmem:[#allocation2 + $0x3a8] sm:$0xff]
    %v3970 = vld [vmem:[#allocation2 + $0x3b0] sm:$0xff]
    %v3971 = vld [vmem:[#allocation2 + $0x3b8] sm:$0xff]
    %v3972 = vld [vmem:[#allocation2 + $0x3c0] sm:$0xff]
    %v3973 = vld [vmem:[#allocation2 + $0x3c8] sm:$0xff]
    %v3974 = vld [vmem:[#allocation2 + $0x3d0] sm:$0xff]
    %v3975 = vld [vmem:[#allocation2 + $0x3d8] sm:$0xff]
    %v3976 = vld [vmem:[#allocation2 + $0x3e0] sm:$0xff]
    %3977 = vmatprep.subr.mxu0 0.0
    %3978 = vmatpush1.msra.mxu0 %v3961
    %3979 = vmatprep.subr.mxu0 0.0
    %3980 = vmatpush1.msra.mxu0 %v3962
    %3981 = vmatprep.subr.mxu0 0.0
    %3982 = vmatpush1.msra.mxu0 %v3963
    %3983 = vmatprep.subr.mxu0 0.0
    %3984 = vmatpush1.msra.mxu0 %v3964
    %3985 = vmatprep.subr.mxu0 0.0
    %3986 = vmatpush1.msra.mxu0 %v3965
    %3987 = vmatprep.subr.mxu0 0.0
    %3988 = vmatpush1.msra.mxu0 %v3966
    %3989 = vmatprep.subr.mxu0 0.0
    %3990 = vmatpush1.msra.mxu0 %v3967
    %3991 = vmatprep.subr.mxu0 0.0
    %3992 = vmatpush1.msra.mxu0 %v3968
    %3993 = vmatprep.subr.mxu0 0.0
    %3994 = vmatpush1.msra.mxu0 %v3969
    %3995 = vmatprep.subr.mxu0 0.0
    %3996 = vmatpush1.msra.mxu0 %v3970
    %3997 = vmatprep.subr.mxu0 0.0
    %3998 = vmatpush1.msra.mxu0 %v3971
    %3999 = vmatprep.subr.mxu0 0.0
    %4000 = vmatpush1.msra.mxu0 %v3972
    %4001 = vmatprep.subr.mxu0 0.0
    %4002 = vmatpush1.msra.mxu0 %v3973
    %4003 = vmatprep.subr.mxu0 0.0
    %4004 = vmatpush1.msra.mxu0 %v3974
    %4005 = vmatprep.subr.mxu0 0.0
    %4006 = vmatpush1.msra.mxu0 %v3975
    %4007 = vmatprep.subr.mxu0 0.0
    %4008 = vmatpush1.msra.mxu0 %v3976
    %4009 = vmatprep.subr.mxu0 0.0
    %4010 = vmatpush1.msra.mxu0 0.0
    %4011 = vmatprep.subr.mxu0 0.0
    %4012 = vmatpush1.msra.mxu0 0.0
    %4013 = vmatprep.subr.mxu0 0.0
    %4014 = vmatpush1.msra.mxu0 0.0
    %4015 = vmatprep.subr.mxu0 0.0
    %4016 = vmatpush1.msra.mxu0 0.0
    %4017 = vmatprep.subr.mxu0 0.0
    %4018 = vmatpush1.msra.mxu0 0.0
    %4019 = vmatprep.subr.mxu0 0.0
    %4020 = vmatpush1.msra.mxu0 0.0
    %4021 = vmatprep.subr.mxu0 0.0
    %4022 = vmatpush1.msra.mxu0 0.0
    %4023 = vmatprep.subr.mxu0 0.0
    %4024 = vmatpush1.msra.mxu0 0.0
    %4025 = vmatprep.subr.mxu0 0.0
    %4026 = vmatpush1.msra.mxu0 0.0
    %4027 = vmatprep.subr.mxu0 0.0
    %4028 = vmatpush1.msra.mxu0 0.0
    %4029 = vmatprep.subr.mxu0 0.0
    %4030 = vmatpush1.msra.mxu0 0.0
    %4031 = vmatprep.subr.mxu0 0.0
    %4032 = vmatpush1.msra.mxu0 0.0
    %4033 = vmatprep.subr.mxu0 0.0
    %4034 = vmatpush1.msra.mxu0 0.0
    %4035 = vmatprep.subr.mxu0 0.0
    %4036 = vmatpush1.msra.mxu0 0.0
    %4037 = vmatprep.subr.mxu0 0.0
    %4038 = vmatpush1.msra.mxu0 0.0
    %4039 = vmatprep.subr.mxu0 0.0
    %4040 = vmatpush1.msra.mxu0 0.0
    %4041 = vmatprep.mubr.f32.mxu0 0.0
    %4042 = vmatmul.mubr.f32.gmra.mrb[0].mxu0 %v3949
    %v4043 = vpop.f32.mrb[0].mxu0
    %v4044 = vadd.f32 0.0, %v4043
    %v4045 = vpop.f32.mrb[0].mxu0
    %4046 = vmatprep.mubr.f32.mxu0 0.0
    %4047 = vmatmul.mubr.f32.gmra.mrb[0].mxu0 %v3950
    %v4048 = vpop.f32.mrb[0].mxu0
    %v4049 = vadd.f32 0.0, %v4048
    %v4050 = vpop.f32.mrb[0].mxu0
    %4051 = vmatprep.mubr.f32.mxu0 0.0
    %4052 = vmatmul.mubr.f32.gmra.mrb[0].mxu0 %v3951
    %v4053 = vpop.f32.mrb[0].mxu0
    %v4054 = vadd.f32 0.0, %v4053
    %v4055 = vpop.f32.mrb[0].mxu0
    %4056 = vmatprep.mubr.f32.mxu0 0.0
    %4057 = vmatmul.mubr.f32.gmra.mrb[0].mxu0 %v3952
    %v4058 = vpop.f32.mrb[0].mxu0
    %v4059 = vadd.f32 0.0, %v4058
    %v4060 = vpop.f32.mrb[0].mxu0
    %4061 = vmatprep.mubr.f32.mxu0 0.0
    %4062 = vmatmul.mubr.f32.gmra.mrb[0].mxu0 %v3953
    %v4063 = vpop.f32.mrb[0].mxu0
    %v4064 = vadd.f32 0.0, %v4063
    %v4065 = vpop.f32.mrb[0].mxu0
    %4066 = vmatprep.mubr.f32.mxu0 0.0
    %4067 = vmatmul.mubr.f32.gmra.mrb[0].mxu0 %v3954
    %v4068 = vpop.f32.mrb[0].mxu0
    %v4069 = vadd.f32 0.0, %v4068
    %v4070 = vpop.f32.mrb[0].mxu0
    %4071 = vmatprep.mubr.f32.mxu0 0.0
    %4072 = vmatmul.mubr.f32.gmra.mrb[0].mxu0 %v3955
    %v4073 = vpop.f32.mrb[0].mxu0
    %v4074 = vadd.f32 0.0, %v4073
    %v4075 = vpop.f32.mrb[0].mxu0
    %4076 = vmatprep.mubr.f32.mxu0 0.0
    %4077 = vmatmul.mubr.f32.gmra.mrb[0].mxu0 %v3956
    %v4078 = vpop.f32.mrb[0].mxu0
    %v4079 = vadd.f32 0.0, %v4078
    %v4080 = vpop.f32.mrb[0].mxu0
    %4081 = vmatprep.mubr.f32.mxu0 0.0
    %4082 = vmatmul.mubr.f32.gmra.mrb[0].mxu0 %v3957
    %v4083 = vpop.f32.mrb[0].mxu0
    %v4084 = vadd.f32 0.0, %v4083
    %v4085 = vpop.f32.mrb[0].mxu0
    %4086 = vmatprep.mubr.f32.mxu0 0.0
    %4087 = vmatmul.mubr.f32.gmra.mrb[0].mxu0 %v3958
    %v4088 = vpop.f32.mrb[0].mxu0
    %v4089 = vadd.f32 0.0, %v4088
    %v4090 = vpop.f32.mrb[0].mxu0
    %4091 = vmatprep.mubr.f32.mxu0 0.0
    %4092 = vmatmul.mubr.f32.gmra.mrb[0].mxu0 %v3959
    %v4093 = vpop.f32.mrb[0].mxu0
    %v4094 = vadd.f32 0.0, %v4093
    %v4095 = vpop.f32.mrb[0].mxu0
    %4096 = vmatprep.mubr.f32.mxu0 0.0
    %4097 = vmatmul.mubr.f32.gmra.mrb[0].mxu0 %v3960
    %v4098 = vpop.f32.mrb[0].mxu0
    %v4099 = vadd.f32 0.0, %v4098
    %v4100 = vpop.f32.mrb[0].mxu0
    %4101 = vdwg.mxu0
    %v4102 = vadd.f32 %v3301, %v4044
    %v4103 = vadd.f32 %v3302, %v4049
    %v4104 = vadd.f32 %v3303, %v4054
    %v4105 = vadd.f32 %v3304, %v4059
    %v4106 = vadd.f32 %v3305, %v4064
    %v4107 = vadd.f32 %v3306, %v4069
    %v4108 = vadd.f32 %v3307, %v4074
    %v4109 = vadd.f32 %v3308, %v4079
    %v4110 = vadd.f32 %v3309, %v4084
    %v4111 = vadd.f32 %v3310, %v4089
    %v4112 = vadd.f32 %v3311, %v4094
    %v4113 = vadd.f32 %v3312, %v4099
    %v4114 = vld [vmem:[#allocation2 + $0x3e8] sm:$0x1]
    %v4115 = vlaneseq
    %v4116 = vshrl.u32 %v4115, 7
    %v4117 = vsub.s32 0, %v4116
    %v4118 = vrot.slane %v4114, %v4117
    %v4119 = vadd.f32 %v4102, %v4118
    %v4120 = vadd.f32 %v4103, %v4118
    %v4121 = vadd.f32 %v4104, %v4118
    %v4122 = vadd.f32 %v4105, %v4118
    %v4123 = vadd.f32 %v4106, %v4118
    %v4124 = vadd.f32 %v4107, %v4118
    %v4125 = vadd.f32 %v4108, %v4118
    %v4126 = vadd.f32 %v4109, %v4118
    %v4127 = vadd.f32 %v4110, %v4118
    %v4128 = vadd.f32 %v4111, %v4118
    %v4129 = vadd.f32 %v4112, %v4118
    %v4130 = vadd.f32 %v4113, %v4118
    %v4131 = vsel %vm1158, %v4119, 0.0
    %4132 = vadd.xlane.f32.xlu0 %v4131
    %v4133 = vpop.xlane.xlu0 %4132
    %v4134 = vsel %vm1158, %v4120, 0.0
    %4135 = vadd.xlane.f32.xlu0 %v4134
    %v4136 = vpop.xlane.xlu0 %4135
    %v4137 = vsel %vm1158, %v4121, 0.0
    %4138 = vadd.xlane.f32.xlu0 %v4137
    %v4139 = vpop.xlane.xlu0 %4138
    %v4140 = vsel %vm1158, %v4122, 0.0
    %4141 = vadd.xlane.f32.xlu0 %v4140
    %v4142 = vpop.xlane.xlu0 %4141
    %v4143 = vsel %vm1158, %v4123, 0.0
    %4144 = vadd.xlane.f32.xlu0 %v4143
    %v4145 = vpop.xlane.xlu0 %4144
    %v4146 = vsel %vm1158, %v4124, 0.0
    %4147 = vadd.xlane.f32.xlu0 %v4146
    %v4148 = vpop.xlane.xlu0 %4147
    %v4149 = vsel %vm1158, %v4125, 0.0
    %4150 = vadd.xlane.f32.xlu0 %v4149
    %v4151 = vpop.xlane.xlu0 %4150
    %v4152 = vsel %vm1158, %v4126, 0.0
    %4153 = vadd.xlane.f32.xlu0 %v4152
    %v4154 = vpop.xlane.xlu0 %4153
    %v4155 = vsel %vm1158, %v4127, 0.0
    %4156 = vadd.xlane.f32.xlu0 %v4155
    %v4157 = vpop.xlane.xlu0 %4156
    %v4158 = vsel %vm1158, %v4128, 0.0
    %4159 = vadd.xlane.f32.xlu0 %v4158
    %v4160 = vpop.xlane.xlu0 %4159
    %v4161 = vsel %vm1158, %v4129, 0.0
    %4162 = vadd.xlane.f32.xlu0 %v4161
    %v4163 = vpop.xlane.xlu0 %4162
    %v4164 = vsel %vm1158, %v4130, 0.0
    %4165 = vadd.xlane.f32.xlu0 %v4164
    %v4166 = vpop.xlane.xlu0 %4165
    %v4167 = vmul.f32 %v4133, %v1195
    %v4168 = vmul.f32 %v4136, %v1195
    %v4169 = vmul.f32 %v4139, %v1195
    %v4170 = vmul.f32 %v4142, %v1195
    %v4171 = vmul.f32 %v4145, %v1195
    %v4172 = vmul.f32 %v4148, %v1195
    %v4173 = vmul.f32 %v4151, %v1195
    %v4174 = vmul.f32 %v4154, %v1195
    %v4175 = vmul.f32 %v4157, %v1195
    %v4176 = vmul.f32 %v4160, %v1195
    %v4177 = vmul.f32 %v4163, %v1195
    %v4178 = vmul.f32 %v4166, %v1195
    %v4179 = vsub.f32 %v4119, %v4167
    %v4180 = vsub.f32 %v4120, %v4168
    %v4181 = vsub.f32 %v4121, %v4169
    %v4182 = vsub.f32 %v4122, %v4170
    %v4183 = vsub.f32 %v4123, %v4171
    %v4184 = vsub.f32 %v4124, %v4172
    %v4185 = vsub.f32 %v4125, %v4173
    %v4186 = vsub.f32 %v4126, %v4174
    %v4187 = vsub.f32 %v4127, %v4175
    %v4188 = vsub.f32 %v4128, %v4176
    %v4189 = vsub.f32 %v4129, %v4177
    %v4190 = vsub.f32 %v4130, %v4178
    %v4191 = vmul.f32 %v4179, %v4179
    %v4192 = vmul.f32 %v4180, %v4180
    %v4193 = vmul.f32 %v4181, %v4181
    %v4194 = vmul.f32 %v4182, %v4182
    %v4195 = vmul.f32 %v4183, %v4183
    %v4196 = vmul.f32 %v4184, %v4184
    %v4197 = vmul.f32 %v4185, %v4185
    %v4198 = vmul.f32 %v4186, %v4186
    %v4199 = vmul.f32 %v4187, %v4187
    %v4200 = vmul.f32 %v4188, %v4188
    %v4201 = vmul.f32 %v4189, %v4189
    %v4202 = vmul.f32 %v4190, %v4190
    %v4203 = vsel %vm1158, %v4191, 0.0
    %4204 = vadd.xlane.f32.xlu0 %v4203
    %v4205 = vpop.xlane.xlu0 %4204
    %v4206 = vsel %vm1158, %v4192, 0.0
    %4207 = vadd.xlane.f32.xlu0 %v4206
    %v4208 = vpop.xlane.xlu0 %4207
    %v4209 = vsel %vm1158, %v4193, 0.0
    %4210 = vadd.xlane.f32.xlu0 %v4209
    %v4211 = vpop.xlane.xlu0 %4210
    %v4212 = vsel %vm1158, %v4194, 0.0
    %4213 = vadd.xlane.f32.xlu0 %v4212
    %v4214 = vpop.xlane.xlu0 %4213
    %v4215 = vsel %vm1158, %v4195, 0.0
    %4216 = vadd.xlane.f32.xlu0 %v4215
    %v4217 = vpop.xlane.xlu0 %4216
    %v4218 = vsel %vm1158, %v4196, 0.0
    %4219 = vadd.xlane.f32.xlu0 %v4218
    %v4220 = vpop.xlane.xlu0 %4219
    %v4221 = vsel %vm1158, %v4197, 0.0
    %4222 = vadd.xlane.f32.xlu0 %v4221
    %v4223 = vpop.xlane.xlu0 %4222
    %v4224 = vsel %vm1158, %v4198, 0.0
    %4225 = vadd.xlane.f32.xlu0 %v4224
    %v4226 = vpop.xlane.xlu0 %4225
    %v4227 = vsel %vm1158, %v4199, 0.0
    %4228 = vadd.xlane.f32.xlu0 %v4227
    %v4229 = vpop.xlane.xlu0 %4228
    %v4230 = vsel %vm1158, %v4200, 0.0
    %4231 = vadd.xlane.f32.xlu0 %v4230
    %v4232 = vpop.xlane.xlu0 %4231
    %v4233 = vsel %vm1158, %v4201, 0.0
    %4234 = vadd.xlane.f32.xlu0 %v4233
    %v4235 = vpop.xlane.xlu0 %4234
    %v4236 = vsel %vm1158, %v4202, 0.0
    %4237 = vadd.xlane.f32.xlu0 %v4236
    %v4238 = vpop.xlane.xlu0 %4237
    %v4239 = vmul.f32 %v4205, %v1195
    %v4240 = vmul.f32 %v4208, %v1195
    %v4241 = vmul.f32 %v4211, %v1195
    %v4242 = vmul.f32 %v4214, %v1195
    %v4243 = vmul.f32 %v4217, %v1195
    %v4244 = vmul.f32 %v4220, %v1195
    %v4245 = vmul.f32 %v4223, %v1195
    %v4246 = vmul.f32 %v4226, %v1195
    %v4247 = vmul.f32 %v4229, %v1195
    %v4248 = vmul.f32 %v4232, %v1195
    %v4249 = vmul.f32 %v4235, %v1195
    %v4250 = vmul.f32 %v4238, %v1195
    %v4251 = vadd.f32 %v4239, 1e-05
    %v4252 = vadd.f32 %v4240, 1e-05
    %v4253 = vadd.f32 %v4241, 1e-05
    %v4254 = vadd.f32 %v4242, 1e-05
    %v4255 = vadd.f32 %v4243, 1e-05
    %v4256 = vadd.f32 %v4244, 1e-05
    %v4257 = vadd.f32 %v4245, 1e-05
    %v4258 = vadd.f32 %v4246, 1e-05
    %v4259 = vadd.f32 %v4247, 1e-05
    %v4260 = vadd.f32 %v4248, 1e-05
    %v4261 = vadd.f32 %v4249, 1e-05
    %v4262 = vadd.f32 %v4250, 1e-05
    %v4263 = vrsqrt.pop %v4251
    %v4264 = vrsqrt.pop %v4252
    %v4265 = vrsqrt.pop %v4253
    %v4266 = vrsqrt.pop %v4254
    %v4267 = vrsqrt.pop %v4255
    %v4268 = vrsqrt.pop %v4256
    %v4269 = vrsqrt.pop %v4257
    %v4270 = vrsqrt.pop %v4258
    %v4271 = vrsqrt.pop %v4259
    %v4272 = vrsqrt.pop %v4260
    %v4273 = vrsqrt.pop %v4261
    %v4274 = vrsqrt.pop %v4262
    %v4275 = vmul.f32 %v4179, %v4263
    %v4276 = vmul.f32 %v4180, %v4264
    %v4277 = vmul.f32 %v4181, %v4265
    %v4278 = vmul.f32 %v4182, %v4266
    %v4279 = vmul.f32 %v4183, %v4267
    %v4280 = vmul.f32 %v4184, %v4268
    %v4281 = vmul.f32 %v4185, %v4269
    %v4282 = vmul.f32 %v4186, %v4270
    %v4283 = vmul.f32 %v4187, %v4271
    %v4284 = vmul.f32 %v4188, %v4272
    %v4285 = vmul.f32 %v4189, %v4273
    %v4286 = vmul.f32 %v4190, %v4274
    %v4287 = vld [vmem:[#allocation2 + $0x3f0] sm:$0xff]
    %v4288 = vld [vmem:[#allocation2 + $0x3f8] sm:$0xf]
    %v4290 = vsel %vm1360, %v4287, 0
    %v4293 = vsel %vm1360, %v4288, 0
    %4295 = vmatprep.subr.mxu0 0.0
    %4296 = vmatpush1.msra.mxu0 %v4275
    %4297 = vmatprep.subr.mxu0 0.0
    %4298 = vmatpush1.msra.mxu0 %v4276
    %4299 = vmatprep.subr.mxu0 0.0
    %4300 = vmatpush1.msra.mxu0 %v4277
    %4301 = vmatprep.subr.mxu0 0.0
    %4302 = vmatpush1.msra.mxu0 %v4278
    %4303 = vmatprep.subr.mxu0 0.0
    %4304 = vmatpush1.msra.mxu0 %v4279
    %4305 = vmatprep.subr.mxu0 0.0
    %4306 = vmatpush1.msra.mxu0 %v4280
    %4307 = vmatprep.subr.mxu0 0.0
    %4308 = vmatpush1.msra.mxu0 %v4281
    %4309 = vmatprep.subr.mxu0 0.0
    %4310 = vmatpush1.msra.mxu0 %v4282
    %4311 = vmatprep.subr.mxu0 0.0
    %4312 = vmatpush1.msra.mxu0 %v4283
    %4313 = vmatprep.subr.mxu0 0.0
    %4314 = vmatpush1.msra.mxu0 %v4284
    %4315 = vmatprep.subr.mxu0 0.0
    %4316 = vmatpush1.msra.mxu0 %v4285
    %4317 = vmatprep.subr.mxu0 0.0
    %4318 = vmatpush1.msra.mxu0 %v4286
    %4319 = vmatprep.subr.mxu0 0.0
    %4320 = vmatpush1.msra.mxu0 0.0
    %4321 = vmatprep.subr.mxu0 0.0
    %4322 = vmatpush1.msra.mxu0 0.0
    %4323 = vmatprep.subr.mxu0 0.0
    %4324 = vmatpush1.msra.mxu0 0.0
    %4325 = vmatprep.subr.mxu0 0.0
    %4326 = vmatpush1.msra.mxu0 0.0
    %4327 = vmatprep.subr.mxu0 0.0
    %4328 = vmatpush1.msra.mxu0 0.0
    %4329 = vmatprep.subr.mxu0 0.0
    %4330 = vmatpush1.msra.mxu0 0.0
    %4331 = vmatprep.subr.mxu0 0.0
    %4332 = vmatpush1.msra.mxu0 0.0
    %4333 = vmatprep.subr.mxu0 0.0
    %4334 = vmatpush1.msra.mxu0 0.0
    %4335 = vmatprep.subr.mxu0 0.0
    %4336 = vmatpush1.msra.mxu0 0.0
    %4337 = vmatprep.subr.mxu0 0.0
    %4338 = vmatpush1.msra.mxu0 0.0
    %4339 = vmatprep.subr.mxu0 0.0
    %4340 = vmatpush1.msra.mxu0 0.0
    %4341 = vmatprep.subr.mxu0 0.0
    %4342 = vmatpush1.msra.mxu0 0.0
    %4343 = vmatprep.subr.mxu0 0.0
    %4344 = vmatpush1.msra.mxu0 0.0
    %4345 = vmatprep.subr.mxu0 0.0
    %4346 = vmatpush1.msra.mxu0 0.0
    %4347 = vmatprep.subr.mxu0 0.0
    %4348 = vmatpush1.msra.mxu0 0.0
    %4349 = vmatprep.subr.mxu0 0.0
    %4350 = vmatpush1.msra.mxu0 0.0
    %4351 = vmatprep.subr.mxu0 0.0
    %4352 = vmatpush1.msra.mxu0 0.0
    %4353 = vmatprep.subr.mxu0 0.0
    %4354 = vmatpush1.msra.mxu0 0.0
    %4355 = vmatprep.subr.mxu0 0.0
    %4356 = vmatpush1.msra.mxu0 0.0
    %4357 = vmatprep.subr.mxu0 0.0
    %4358 = vmatpush1.msra.mxu0 0.0
    %4359 = vmatprep.mubr.f32.mxu0 0.0
    %4360 = vmatmul.mubr.f32.gmra.mrb[0].mxu0 %v4290
    %v4361 = vpop.f32.mrb[0].mxu0
    %v4362 = vadd.f32 0.0, %v4361
    %v4363 = vpop.f32.mrb[0].mxu0
    %4364 = vmatprep.mubr.f32.mxu0 0.0
    %4365 = vmatmul.mubr.f32.gmra.mrb[0].mxu0 %v4293
    %v4366 = vpop.f32.mrb[0].mxu0
    %v4367 = vadd.f32 0.0, %v4366
    %v4368 = vpop.f32.mrb[0].mxu0
    %4369 = vdwg.mxu0
    %v4370 = vld [vmem:[#allocation2 + $0x400] sm:$0xff]
    %v4371 = vld [vmem:[#allocation2 + $0x408] sm:$0xff]
    %v4372 = vld [vmem:[#allocation2 + $0x410] sm:$0xff]
    %v4373 = vld [vmem:[#allocation2 + $0x418] sm:$0xff]
    %v4374 = vld [vmem:[#allocation2 + $0x420] sm:$0x1]
    %v4375 = vlaneseq
    %v4376 = vshrl.u32 %v4375, 7
    %v4377 = vsub.s32 0, %v4376
    %v4378 = vrot.slane %v4374, %v4377
    %v4380 = vsel %vm1158, %v4362, 0
    %v4383 = vsel %vm1158, %v4367, 0
    %4385 = vmatprep.subr.mxu0 0.0
    %4386 = vmatpush1.msra.mxu0 %v4370
    %4387 = vmatprep.subr.mxu0 0.0
    %4388 = vmatpush1.msra.mxu0 %v4371
    %4389 = vmatprep.subr.mxu0 0.0
    %4390 = vmatpush1.msra.mxu0 %v4372
    %4391 = vmatprep.subr.mxu0 0.0
    %4392 = vmatpush1.msra.mxu0 %v4373
    %4393 = vmatprep.subr.mxu0 0.0
    %4394 = vmatpush1.msra.mxu0 0.0
    %4395 = vmatprep.subr.mxu0 0.0
    %4396 = vmatpush1.msra.mxu0 0.0
    %4397 = vmatprep.subr.mxu0 0.0
    %4398 = vmatpush1.msra.mxu0 0.0
    %4399 = vmatprep.subr.mxu0 0.0
    %4400 = vmatpush1.msra.mxu0 0.0
    %4401 = vmatprep.subr.mxu0 0.0
    %4402 = vmatpush1.msra.mxu0 0.0
    %4403 = vmatprep.subr.mxu0 0.0
    %4404 = vmatpush1.msra.mxu0 0.0
    %4405 = vmatprep.subr.mxu0 0.0
    %4406 = vmatpush1.msra.mxu0 0.0
    %4407 = vmatprep.subr.mxu0 0.0
    %4408 = vmatpush1.msra.mxu0 0.0
    %4409 = vmatprep.subr.mxu0 0.0
    %4410 = vmatpush1.msra.mxu0 0.0
    %4411 = vmatprep.subr.mxu0 0.0
    %4412 = vmatpush1.msra.mxu0 0.0
    %4413 = vmatprep.subr.mxu0 0.0
    %4414 = vmatpush1.msra.mxu0 0.0
    %4415 = vmatprep.subr.mxu0 0.0
    %4416 = vmatpush1.msra.mxu0 0.0
    %4417 = vmatprep.subr.mxu0 0.0
    %4418 = vmatpush1.msra.mxu0 0.0
    %4419 = vmatprep.subr.mxu0 0.0
    %4420 = vmatpush1.msra.mxu0 0.0
    %4421 = vmatprep.subr.mxu0 0.0
    %4422 = vmatpush1.msra.mxu0 0.0
    %4423 = vmatprep.subr.mxu0 0.0
    %4424 = vmatpush1.msra.mxu0 0.0
    %4425 = vmatprep.subr.mxu0 0.0
    %4426 = vmatpush1.msra.mxu0 0.0
    %4427 = vmatprep.subr.mxu0 0.0
    %4428 = vmatpush1.msra.mxu0 0.0
    %4429 = vmatprep.subr.mxu0 0.0
    %4430 = vmatpush1.msra.mxu0 0.0
    %4431 = vmatprep.subr.mxu0 0.0
    %4432 = vmatpush1.msra.mxu0 0.0
    %4433 = vmatprep.subr.mxu0 0.0
    %4434 = vmatpush1.msra.mxu0 0.0
    %4435 = vmatprep.subr.mxu0 0.0
    %4436 = vmatpush1.msra.mxu0 0.0
    %4437 = vmatprep.subr.mxu0 0.0
    %4438 = vmatpush1.msra.mxu0 0.0
    %4439 = vmatprep.subr.mxu0 0.0
    %4440 = vmatpush1.msra.mxu0 0.0
    %4441 = vmatprep.subr.mxu0 0.0
    %4442 = vmatpush1.msra.mxu0 0.0
    %4443 = vmatprep.subr.mxu0 0.0
    %4444 = vmatpush1.msra.mxu0 0.0
    %4445 = vmatprep.subr.mxu0 0.0
    %4446 = vmatpush1.msra.mxu0 0.0
    %4447 = vmatprep.subr.mxu0 0.0
    %4448 = vmatpush1.msra.mxu0 0.0
    %4449 = vmatprep.mubr.f32.mxu0 0.0
    %4450 = vmatmul.mubr.f32.gmra.mrb[0].mxu0 %v4380
    %v4451 = vpop.f32.mrb[0].mxu0
    %v4452 = vadd.f32 %v4378, %v4451
    %v4453 = vpop.f32.mrb[0].mxu0
    %4454 = vmatprep.mubr.f32.mxu0 0.0
    %4455 = vmatmul.mubr.f32.gmra.mrb[0].mxu0 %v4383
    %v4456 = vpop.f32.mrb[0].mxu0
    %v4457 = vadd.f32 %v4378, %v4456
    %v4458 = vpop.f32.mrb[0].mxu0
    %4459 = vdwg.mxu0
    %v4460 = vld [vmem:[#allocation2 + $0x428] sm:$0xff]
    %v4461 = vld [vmem:[#allocation2 + $0x430] sm:$0xff]
    %v4462 = vld [vmem:[#allocation2 + $0x438] sm:$0xff]
    %v4463 = vld [vmem:[#allocation2 + $0x440] sm:$0xff]
    %v4464 = vld [vmem:[#allocation2 + $0x448] sm:$0x1]
    %v4465 = vlaneseq
    %v4466 = vshrl.u32 %v4465, 7
    %v4467 = vsub.s32 0, %v4466
    %v4468 = vrot.slane %v4464, %v4467
    %v4470 = vsel %vm1158, %v4452, 0
    %4472 = vmatprep.subr.mxu0 0.0
    %4473 = vmatpush1.msra.mxu0 %v4460
    %4474 = vmatprep.subr.mxu0 0.0
    %4475 = vmatpush1.msra.mxu0 %v4461
    %4476 = vmatprep.subr.mxu0 0.0
    %4477 = vmatpush1.msra.mxu0 %v4462
    %4478 = vmatprep.subr.mxu0 0.0
    %4479 = vmatpush1.msra.mxu0 %v4463
    %4480 = vmatprep.subr.mxu0 0.0
    %4481 = vmatpush1.msra.mxu0 0.0
    %4482 = vmatprep.subr.mxu0 0.0
    %4483 = vmatpush1.msra.mxu0 0.0
    %4484 = vmatprep.subr.mxu0 0.0
    %4485 = vmatpush1.msra.mxu0 0.0
    %4486 = vmatprep.subr.mxu0 0.0
    %4487 = vmatpush1.msra.mxu0 0.0
    %4488 = vmatprep.subr.mxu0 0.0
    %4489 = vmatpush1.msra.mxu0 0.0
    %4490 = vmatprep.subr.mxu0 0.0
    %4491 = vmatpush1.msra.mxu0 0.0
    %4492 = vmatprep.subr.mxu0 0.0
    %4493 = vmatpush1.msra.mxu0 0.0
    %4494 = vmatprep.subr.mxu0 0.0
    %4495 = vmatpush1.msra.mxu0 0.0
    %4496 = vmatprep.subr.mxu0 0.0
    %4497 = vmatpush1.msra.mxu0 0.0
    %4498 = vmatprep.subr.mxu0 0.0
    %4499 = vmatpush1.msra.mxu0 0.0
    %4500 = vmatprep.subr.mxu0 0.0
    %4501 = vmatpush1.msra.mxu0 0.0
    %4502 = vmatprep.subr.mxu0 0.0
    %4503 = vmatpush1.msra.mxu0 0.0
    %4504 = vmatprep.subr.mxu0 0.0
    %4505 = vmatpush1.msra.mxu0 0.0
    %4506 = vmatprep.subr.mxu0 0.0
    %4507 = vmatpush1.msra.mxu0 0.0
    %4508 = vmatprep.subr.mxu0 0.0
    %4509 = vmatpush1.msra.mxu0 0.0
    %4510 = vmatprep.subr.mxu0 0.0
    %4511 = vmatpush1.msra.mxu0 0.0
    %4512 = vmatprep.subr.mxu0 0.0
    %4513 = vmatpush1.msra.mxu0 0.0
    %4514 = vmatprep.subr.mxu0 0.0
    %4515 = vmatpush1.msra.mxu0 0.0
    %4516 = vmatprep.subr.mxu0 0.0
    %4517 = vmatpush1.msra.mxu0 0.0
    %4518 = vmatprep.subr.mxu0 0.0
    %4519 = vmatpush1.msra.mxu0 0.0
    %4520 = vmatprep.subr.mxu0 0.0
    %4521 = vmatpush1.msra.mxu0 0.0
    %4522 = vmatprep.subr.mxu0 0.0
    %4523 = vmatpush1.msra.mxu0 0.0
    %4524 = vmatprep.subr.mxu0 0.0
    %4525 = vmatpush1.msra.mxu0 0.0
    %4526 = vmatprep.subr.mxu0 0.0
    %4527 = vmatpush1.msra.mxu0 0.0
    %4528 = vmatprep.subr.mxu0 0.0
    %4529 = vmatpush1.msra.mxu0 0.0
    %4530 = vmatprep.subr.mxu0 0.0
    %4531 = vmatpush1.msra.mxu0 0.0
    %4532 = vmatprep.subr.mxu0 0.0
    %4533 = vmatpush1.msra.mxu0 0.0
    %4534 = vmatprep.subr.mxu0 0.0
    %4535 = vmatpush1.msra.mxu0 0.0
    %4536 = vmatprep.mubr.f32.mxu0 0.0
    %4537 = vmatmul.mubr.f32.gmra.mrb[0].mxu0 %v4470
    %v4538 = vpop.f32.mrb[0].mxu0
    %v4539 = vadd.f32 %v4468, %v4538
    %v4540 = vpop.f32.mrb[0].mxu0
    %4541 = vdwg.mxu0
    %v4542 = vld [vmem:[#allocation2 + $0x450] sm:$0xff]
    %v4543 = vld [vmem:[#allocation2 + $0x458] sm:$0xff]
    %v4544 = vld [vmem:[#allocation2 + $0x460] sm:$0xff]
    %v4545 = vld [vmem:[#allocation2 + $0x468] sm:$0xff]
    %v4546 = vld [vmem:[#allocation2 + $0x470] sm:$0x1]
    %v4547 = vlaneseq
    %v4548 = vshrl.u32 %v4547, 7
    %v4549 = vsub.s32 0, %v4548
    %v4550 = vrot.slane %v4546, %v4549
    %vm4552 = vcmask 1043456
    %v4553 = vrot.slane %v4452, 4
    %v4554 = vrot.slane %v4457, 4
    %v4555 = vsel %vm4552, %v4553, %v4554
    %v4556 = vsel %vm1158, %v4555, 0
    %4558 = vmatprep.subr.mxu0 0.0
    %4559 = vmatpush1.msra.mxu0 %v4542
    %4560 = vmatprep.subr.mxu0 0.0
    %4561 = vmatpush1.msra.mxu0 %v4543
    %4562 = vmatprep.subr.mxu0 0.0
    %4563 = vmatpush1.msra.mxu0 %v4544
    %4564 = vmatprep.subr.mxu0 0.0
    %4565 = vmatpush1.msra.mxu0 %v4545
    %4566 = vmatprep.subr.mxu0 0.0
    %4567 = vmatpush1.msra.mxu0 0.0
    %4568 = vmatprep.subr.mxu0 0.0
    %4569 = vmatpush1.msra.mxu0 0.0
    %4570 = vmatprep.subr.mxu0 0.0
    %4571 = vmatpush1.msra.mxu0 0.0
    %4572 = vmatprep.subr.mxu0 0.0
    %4573 = vmatpush1.msra.mxu0 0.0
    %4574 = vmatprep.subr.mxu0 0.0
    %4575 = vmatpush1.msra.mxu0 0.0
    %4576 = vmatprep.subr.mxu0 0.0
    %4577 = vmatpush1.msra.mxu0 0.0
    %4578 = vmatprep.subr.mxu0 0.0
    %4579 = vmatpush1.msra.mxu0 0.0
    %4580 = vmatprep.subr.mxu0 0.0
    %4581 = vmatpush1.msra.mxu0 0.0
    %4582 = vmatprep.subr.mxu0 0.0
    %4583 = vmatpush1.msra.mxu0 0.0
    %4584 = vmatprep.subr.mxu0 0.0
    %4585 = vmatpush1.msra.mxu0 0.0
    %4586 = vmatprep.subr.mxu0 0.0
    %4587 = vmatpush1.msra.mxu0 0.0
    %4588 = vmatprep.subr.mxu0 0.0
    %4589 = vmatpush1.msra.mxu0 0.0
    %4590 = vmatprep.subr.mxu0 0.0
    %4591 = vmatpush1.msra.mxu0 0.0
    %4592 = vmatprep.subr.mxu0 0.0
    %4593 = vmatpush1.msra.mxu0 0.0
    %4594 = vmatprep.subr.mxu0 0.0
    %4595 = vmatpush1.msra.mxu0 0.0
    %4596 = vmatprep.subr.mxu0 0.0
    %4597 = vmatpush1.msra.mxu0 0.0
    %4598 = vmatprep.subr.mxu0 0.0
    %4599 = vmatpush1.msra.mxu0 0.0
    %4600 = vmatprep.subr.mxu0 0.0
    %4601 = vmatpush1.msra.mxu0 0.0
    %4602 = vmatprep.subr.mxu0 0.0
    %4603 = vmatpush1.msra.mxu0 0.0
    %4604 = vmatprep.subr.mxu0 0.0
    %4605 = vmatpush1.msra.mxu0 0.0
    %4606 = vmatprep.subr.mxu0 0.0
    %4607 = vmatpush1.msra.mxu0 0.0
    %4608 = vmatprep.subr.mxu0 0.0
    %4609 = vmatpush1.msra.mxu0 0.0
    %4610 = vmatprep.subr.mxu0 0.0
    %4611 = vmatpush1.msra.mxu0 0.0
    %4612 = vmatprep.subr.mxu0 0.0
    %4613 = vmatpush1.msra.mxu0 0.0
    %4614 = vmatprep.subr.mxu0 0.0
    %4615 = vmatpush1.msra.mxu0 0.0
    %4616 = vmatprep.subr.mxu0 0.0
    %4617 = vmatpush1.msra.mxu0 0.0
    %4618 = vmatprep.subr.mxu0 0.0
    %4619 = vmatpush1.msra.mxu0 0.0
    %4620 = vmatprep.subr.mxu0 0.0
    %4621 = vmatpush1.msra.mxu0 0.0
    %4622 = vmatprep.mubr.f32.mxu0 0.0
    %4623 = vmatmul.mubr.f32.gmra.mrb[0].mxu0 %v4556
    %v4624 = vpop.f32.mrb[0].mxu0
    %v4625 = vadd.f32 %v4550, %v4624
    %v4626 = vpop.f32.mrb[0].mxu0
    %4627 = vdwg.mxu0
    %v4629 = vrot.slane %v4539, 4
    %v4631 = vsel %vm4552, %v4539, %v4629
    %v4632 = vadd.f32 %v4631, %v4625
    %v4633 = vmax.f32 %v4632, 0.0
    %v4634 = vld [vmem:[#allocation2 + $0x478] sm:$0x1]
    %v4635 = vld [vmem:[#allocation2 + $0x479] sm:$0x1]
    %v4636 = vlaneseq
    %v4637 = vshrl.u32 %v4636, 7
    %v4638 = vsub.s32 0, %v4637
    %v4639 = vrot.slane %v4634, %v4638
    %v4640 = vmul.f32 %v4633, %v4639
    %4641 = vadd.xlane.f32.xlu0 %v4640
    %v4642 = vpop.xlane.xlu0 %4641
    %v4643 = vlaneseq
    %v4644 = vshrl.u32 %v4643, 7
    %v4645 = vsub.s32 0, %v4644
    %v4646 = vrot.slane %v4635, %v4645
    %v4647 = vadd.f32 %v4642, %v4646
    %vm4648 = vcmask 7168
    %4649 = vst.msk [vmem:[%s3] sm:$0xff] %vm4648, %v4647
    // Predicated region
    $region18: #{tpu_custom_call.1} parent=1 // pred_check
      _
    $region19: #{tpu_custom_call.1} parent=1 // pred_check_branch
      %4651 = sbr.rel (0) target = $region21
    $region20: #{tpu_custom_call.1} parent=1 // pred_region
      _
    $region21: #{tpu_custom_call.1} parent=1 // pred_fallthru
      _
    // Predicated region
    $region22: #{tpu_custom_call.1} parent=1 // pred_check
      _
    $region23: #{tpu_custom_call.1} parent=1 // pred_check_branch
      %4653 = sbr.rel (0) target = $region25
    $region24: #{tpu_custom_call.1} parent=1 // pred_region
      _
    $region25: #{tpu_custom_call.1} parent=1 // pred_fallthru
      _
    %4654 = vsyncpa [#allocation3], 1

</llo_original>
